<compile_context>
chip_gen: v6e
topology: v6e:2x2x1
jax: 0.10.0
libtpu: 0.0.40
codegen_flags: <defaults>
</compile_context>

<pallas_src>
import functools

import jax
import jax.numpy as jnp
from jax.experimental import pallas as pl
from jax.experimental.pallas import tpu as pltpu

# ----------------------------- config ---------------------------------------
VOCAB = 128
HIDDEN = 32
HEADS = 4
DHEAD = HIDDEN // HEADS
LAYERS = 2
INTER = 64
MAXPOS = 16
NUM_LABELS = 3
PAD_LABELS = 128          # lane-dense logits width (sliced to NUM_LABELS outside)
NVEC = 4 + 8 * LAYERS     # rows in the packed small-vector table
LN_EPS = 1e-12


# ----------------------------- kernel helpers --------------------------------
def _layernorm(x, g, b):
    mu = jnp.mean(x, axis=-1, keepdims=True)
    var = jnp.mean((x - mu) * (x - mu), axis=-1, keepdims=True)
    return (x - mu) * jax.lax.rsqrt(var + LN_EPS) * g + b


def _gelu(y):
    # TODO(synk): HF BERT uses exact erf GELU; tanh approximation is used here
    # (no guaranteed erf lowering in Mosaic), giving a small numeric delta.
    c = jnp.float32(0.7978845608028654)  # sqrt(2/pi)
    return 0.5 * y * (1.0 + jnp.tanh(c * (y + 0.044715 * y * y * y)))


# ----------------------------- fused forward kernel --------------------------
def _bert_forward_kernel(ids_ref, amask_ref, word_emb_ref, pos_type_ref,
                         wbig_ref, wo2_ref, vecs_ref, whead_ref,
                         logits_ref, *, batch, seqlen):
    bs = batch * seqlen
    f32 = jnp.float32
    scale = f32(1.0 / float(DHEAD) ** 0.5)

    def vrow(r, width):
        # One packed-parameter row: (1, width) from the (NVEC, 128) table.
        return vecs_ref[r:r + 1, :][:, 0:width]

    # Global small vectors.
    emb_ln_g = vrow(0, HIDDEN)
    emb_ln_b = vrow(1, HIDDEN)
    hb1 = vrow(2, HIDDEN)
    hb2 = vrow(3, PAD_LABELS)                               # padded (1, 128)

    # Head weights: [hw2 padded (H,128) | hw1 (H,H)] so slices start vreg-aligned.
    wh = whead_ref[...]                                     # (H, 128+H)
    hw2 = wh[:, 0:PAD_LABELS]                               # (H, 128)
    hw1 = wh[:, PAD_LABELS:PAD_LABELS + HIDDEN]             # (H, H)

    # Per-head lane masks: head h owns hidden columns [h*DHEAD, (h+1)*DHEAD).
    col = jax.lax.broadcasted_iota(jnp.int32, (1, HIDDEN), 1)
    head_masks = [
        jnp.logical_and(col >= h * DHEAD, col < (h + 1) * DHEAD).astype(f32)
        for h in range(HEADS)
    ]

    # --- in-kernel embedding gather (one-hot MXU matmul) ----------------------
    # TODO(synk): token_type_ids fixed to 0; pos+type embeddings pre-summed.
    ids = ids_ref[...]                                      # (B*S, 1) int32
    vocab_iota = jax.lax.broadcasted_iota(jnp.int32, (bs, VOCAB), 1)
    onehot = (vocab_iota == ids).astype(f32)                # (B*S, VOCAB)
    word = jnp.dot(onehot, word_emb_ref[...], preferred_element_type=f32)
    pos_type = pos_type_ref[0:seqlen, :]                    # (S, H)
    pos_full = jnp.concatenate([pos_type] * batch, axis=0)  # (B*S, H)
    x = _layernorm(word + pos_full, emb_ln_g, emb_ln_b)     # (B*S, H)

    # --- combined additive attention bias (built once, outside layer loop) ----
    # padding-mask bias per key column + cross-sequence block mask.
    key_bias = (1.0 - amask_ref[...]) * f32(-10000.0)       # (1, B*S)
    rows = jax.lax.broadcasted_iota(jnp.int32, (bs, bs), 0)
    cols = jax.lax.broadcasted_iota(jnp.int32, (bs, bs), 1)
    same_seq = jnp.zeros((bs, bs), jnp.bool_)
    for b in range(batch):
        in_row = jnp.logical_and(rows >= b * seqlen, rows < (b + 1) * seqlen)
        in_col = jnp.logical_and(cols >= b * seqlen, cols < (b + 1) * seqlen)
        same_seq = jnp.logical_or(same_seq, jnp.logical_and(in_row, in_col))
    block_bias = jnp.where(same_seq, 0.0, -1e9).astype(f32)
    attn_bias = key_bias + block_bias                       # (B*S, B*S)

    # --- transformer encoder (static unroll; all weights stay in VMEM) --------
    for l in range(LAYERS):
        # Per-layer weight slab [Wqkv (H,3H) | Wo (H,H) | Wi (H,I)].
        wl = wbig_ref[l * HIDDEN:(l + 1) * HIDDEN, :]       # (H, 3H+H+I)
        wqkv = wl[:, 0:3 * HIDDEN]
        wo = wl[:, 3 * HIDDEN:4 * HIDDEN]
        wi = wl[:, 4 * HIDDEN:4 * HIDDEN + INTER]
        wo2 = wo2_ref[l * INTER:(l + 1) * INTER, :]         # (I, H)

        base = 4 + 8 * l
        bqkv = vrow(base + 0, 3 * HIDDEN)
        bo = vrow(base + 1, HIDDEN)
        ln1_g = vrow(base + 2, HIDDEN)
        ln1_b = vrow(base + 3, HIDDEN)
        bi = vrow(base + 4, INTER)
        bo2 = vrow(base + 5, HIDDEN)
        ln2_g = vrow(base + 6, HIDDEN)
        ln2_b = vrow(base + 7, HIDDEN)

        # Fused QKV projection: one lane-dense (B*S, 3H) matmul.
        qkv = jnp.dot(x, wqkv, preferred_element_type=f32) + bqkv
        q = qkv[:, 0 * HIDDEN:1 * HIDDEN]                   # (B*S, H)
        k = qkv[:, 1 * HIDDEN:2 * HIDDEN]
        v = qkv[:, 2 * HIDDEN:3 * HIDDEN]

        # Block-diagonal attention over the whole batch.  Only q / v are
        # masked per head (k shared across heads); context for every head
        # accumulates directly into its hidden-column block ("concat" for free).
        ctx = jnp.zeros((bs, HIDDEN), f32)
        for h in range(HEADS):
            mh = head_masks[h]                              # (1, H)
            s = jax.lax.dot_general(
                q * mh, k, (((1,), (1,)), ((), ())),
                preferred_element_type=f32) * scale + attn_bias
            m = jnp.max(s, axis=-1, keepdims=True)
            p = jnp.exp(s - m)
            denom = jnp.sum(p, axis=-1, keepdims=True)
            p = p * pl.reciprocal(denom, approx=True)       # EUP slot
            ctx = ctx + jnp.dot(p, v * mh, preferred_element_type=f32)

        # Attention output projection + residual + LayerNorm.
        attn_out = jnp.dot(ctx, wo, preferred_element_type=f32) + bo
        x = _layernorm(attn_out + x, ln1_g, ln1_b)

        # Feed-forward + residual + LayerNorm.
        inter = _gelu(jnp.dot(x, wi, preferred_element_type=f32) + bi)
        ffn = jnp.dot(inter, wo2, preferred_element_type=f32) + bo2
        x = _layernorm(ffn + x, ln2_g, ln2_b)

    # --- classification head: matmul all rows, select CLS rows afterwards ----
    h1 = jnp.maximum(jnp.dot(x, hw1, preferred_element_type=f32) + hb1, 0.0)
    # TODO(synk): dropout(p=0.2) is the eval-mode identity (no train RNG path).
    logits_full = jnp.dot(h1, hw2, preferred_element_type=f32) + hb2  # (B*S,128)
    for b in range(batch):
        logits_ref[b:b + 1, :] = logits_full[
            b * seqlen:b * seqlen + 1, :].astype(logits_ref.dtype)


# ----------------------------- params ----------------------------------------
def init_params(key):
    def normal(k, shape, scale=0.02):
        return (scale * jax.random.normal(k, shape)).astype(jnp.float32)

    keys = jax.random.split(key, 5 + 6 * LAYERS)
    word_emb = normal(keys[0], (VOCAB, HIDDEN))
    pos_emb = normal(keys[1], (MAXPOS, HIDDEN))
    type_emb = normal(keys[2], (2, HIDDEN))
    head_w1 = normal(keys[3], (HIDDEN, HIDDEN))
    head_w2 = normal(keys[4], (HIDDEN, NUM_LABELS))

    wbig_layers, wo2_layers = [], []
    for li in range(LAYERS):
        lk = keys[5 + 6 * li:5 + 6 * (li + 1)]
        wq = normal(lk[0], (HIDDEN, HIDDEN))
        wk = normal(lk[1], (HIDDEN, HIDDEN))
        wv = normal(lk[2], (HIDDEN, HIDDEN))
        wo = normal(lk[3], (HIDDEN, HIDDEN))
        wi = normal(lk[4], (HIDDEN, INTER))
        wo2 = normal(lk[5], (INTER, HIDDEN))
        wbig_layers.append(jnp.concatenate([wq, wk, wv, wo, wi], axis=1))
        wo2_layers.append(wo2)

    # Packed small-vector table, one row per bias / LayerNorm vector (padded
    # to 128 lanes).  Row layout must match the kernel's `vrow` offsets.
    def row(v):
        v = jnp.asarray(v, jnp.float32).reshape(-1)
        return jnp.pad(v, (0, PAD_LABELS - v.shape[0]))

    rows = [
        row(jnp.ones(HIDDEN)),        # 0: emb_ln_g
        row(jnp.zeros(HIDDEN)),       # 1: emb_ln_b
        row(jnp.zeros(HIDDEN)),       # 2: head_b1
        row(jnp.zeros(NUM_LABELS)),   # 3: head_b2 (padded to 128)
    ]
    for _ in range(LAYERS):
        rows += [
            row(jnp.zeros(3 * HIDDEN)),  # bqkv
            row(jnp.zeros(HIDDEN)),      # bo
            row(jnp.ones(HIDDEN)),       # ln1_g
            row(jnp.zeros(HIDDEN)),      # ln1_b
            row(jnp.zeros(INTER)),       # bi
            row(jnp.zeros(HIDDEN)),      # bo2
            row(jnp.ones(HIDDEN)),       # ln2_g
            row(jnp.zeros(HIDDEN)),      # ln2_b
        ]
    vecs = jnp.stack(rows, axis=0)                          # (NVEC, 128)

    head_w2_p = jnp.pad(head_w2, ((0, 0), (0, PAD_LABELS - NUM_LABELS)))
    whead = jnp.concatenate([head_w2_p, head_w1], axis=1)   # (H, 128+H)

    return {
        "word_emb": word_emb,                               # (VOCAB, H)
        "pos_type_emb": pos_emb + type_emb[0][None, :],     # (MAXPOS, H)
        "wbig": jnp.concatenate(wbig_layers, axis=0),       # (L*H, 3H+H+I)
        "wo2": jnp.concatenate(wo2_layers, axis=0),         # (L*I, H)
        "vecs": vecs,                                       # (NVEC, 128)
        "whead": whead,                                     # (H, 128+H)
    }


# ----------------------------- forward ----------------------------------------
@jax.jit
def forward(params, input_ids, attention_mask, head_mask=None):
    assert attention_mask is not None, "attention mask is none"
    assert head_mask is None  # the wrapped module passes head_mask=None
    B, S = input_ids.shape

    ids = input_ids.astype(jnp.int32).reshape(B * S, 1)
    amask = attention_mask.astype(jnp.float32).reshape(1, B * S)

    # TODO(synk): for real BERT-base, weights no longer fit VMEM whole; switch
    # to a per-layer grid with streamed (bf16) weight BlockSpecs, and on v7x
    # add a parallel batch grid axis for the second TensorCore.
    kernel = functools.partial(_bert_forward_kernel, batch=B, seqlen=S)
    vmem = pl.BlockSpec(memory_space=pltpu.MemorySpace.VMEM)
    logits_pad = pl.pallas_call(
        kernel,
        out_shape=jax.ShapeDtypeStruct((B, PAD_LABELS), jnp.float32),
        in_specs=[vmem] * 8,
        out_specs=vmem,
    )(ids, amask,
      params["word_emb"], params["pos_type_emb"],
      params["wbig"], params["wo2"], params["vecs"], params["whead"])
    return logits_pad[:, :NUM_LABELS]


# ----------------------------- main ------------------------------------------
if __name__ == "__main__":
    key = jax.random.PRNGKey(0)
    pkey, ikey = jax.random.split(key)
    params = init_params(pkey)

    B, S = 2, 8
    input_ids = jax.random.randint(ikey, (B, S), 0, VOCAB, dtype=jnp.int32)
    # second example is padded after 5 tokens to exercise the mask path
    attention_mask = jnp.array([[1, 1, 1, 1, 1, 1, 1, 1],
                                [1, 1, 1, 1, 1, 0, 0, 0]], dtype=jnp.int32)

    logits = forward(params, input_ids, attention_mask)
    logits = jax.block_until_ready(logits)
    assert logits.shape == (B, NUM_LABELS)
    assert bool(jnp.all(jnp.isfinite(logits)))
    print("KERNEL_OK")
</pallas_src>

<mosaic_0001>
module attributes {stable_mosaic.version = 11 : i64} {
  func.func @_bert_forward_kernel(%arg0: memref<16x1xi32, #tpu.memory_space<vmem>>, %arg1: memref<1x16xf32, #tpu.memory_space<vmem>>, %arg2: memref<128x32xf32, #tpu.memory_space<vmem>>, %arg3: memref<16x32xf32, #tpu.memory_space<vmem>>, %arg4: memref<64x192xf32, #tpu.memory_space<vmem>>, %arg5: memref<128x32xf32, #tpu.memory_space<vmem>>, %arg6: memref<20x128xf32, #tpu.memory_space<vmem>>, %arg7: memref<32x160xf32, #tpu.memory_space<vmem>>, %arg8: memref<2x128xf32, #tpu.memory_space<vmem>>) attributes {dimension_semantics = [], scalar_prefetch = 0 : i64, scratch_operands = 0 : i64, tpu.core_type = #tpu.core_type<tc>} {
    %c0 = arith.constant 0 : index
    %c0_0 = arith.constant 0 : index
    %0 = vector.load %arg6[%c0, %c0_0] : memref<20x128xf32, #tpu.memory_space<vmem>>, vector<1x128xf32>
    %1 = vector.extract_strided_slice %0 {offsets = [0, 0], sizes = [1, 32], strides = [1, 1]} : vector<1x128xf32> to vector<1x32xf32>
    %c1 = arith.constant 1 : index
    %c0_1 = arith.constant 0 : index
    %2 = vector.load %arg6[%c1, %c0_1] : memref<20x128xf32, #tpu.memory_space<vmem>>, vector<1x128xf32>
    %3 = vector.extract_strided_slice %2 {offsets = [0, 0], sizes = [1, 32], strides = [1, 1]} : vector<1x128xf32> to vector<1x32xf32>
    %c2 = arith.constant 2 : index
    %c0_2 = arith.constant 0 : index
    %4 = vector.load %arg6[%c2, %c0_2] : memref<20x128xf32, #tpu.memory_space<vmem>>, vector<1x128xf32>
    %5 = vector.extract_strided_slice %4 {offsets = [0, 0], sizes = [1, 32], strides = [1, 1]} : vector<1x128xf32> to vector<1x32xf32>
    %c3 = arith.constant 3 : index
    %c0_3 = arith.constant 0 : index
    %6 = vector.load %arg6[%c3, %c0_3] : memref<20x128xf32, #tpu.memory_space<vmem>>, vector<1x128xf32>
    %c0_4 = arith.constant 0 : index
    %c0_5 = arith.constant 0 : index
    %7 = vector.load %arg7[%c0_4, %c0_5] : memref<32x160xf32, #tpu.memory_space<vmem>>, vector<32x160xf32>
    %8 = vector.extract_strided_slice %7 {offsets = [0, 0], sizes = [32, 128], strides = [1, 1]} : vector<32x160xf32> to vector<32x128xf32>
    %9 = vector.extract_strided_slice %7 {offsets = [0, 128], sizes = [32, 32], strides = [1, 1]} : vector<32x160xf32> to vector<32x32xf32>
    %10 = tpu.iota {dimensions = array<i32: 1>} : vector<1x32xi32>
    %c0_i32 = arith.constant 0 : i32
    %11 = vector.broadcast %c0_i32 : i32 to vector<1x32xi32>
    %12 = arith.cmpi sge, %10, %11 : vector<1x32xi32>
    %c8_i32 = arith.constant 8 : i32
    %13 = vector.broadcast %c8_i32 : i32 to vector<1x32xi32>
    %14 = arith.cmpi slt, %10, %13 : vector<1x32xi32>
    %15 = arith.andi %12, %14 : vector<1x32xi1>
    %16 = arith.extui %15 : vector<1x32xi1> to vector<1x32xi32>
    %17 = arith.sitofp %16 : vector<1x32xi32> to vector<1x32xf32>
    %c8_i32_6 = arith.constant 8 : i32
    %18 = vector.broadcast %c8_i32_6 : i32 to vector<1x32xi32>
    %19 = arith.cmpi sge, %10, %18 : vector<1x32xi32>
    %c16_i32 = arith.constant 16 : i32
    %20 = vector.broadcast %c16_i32 : i32 to vector<1x32xi32>
    %21 = arith.cmpi slt, %10, %20 : vector<1x32xi32>
    %22 = arith.andi %19, %21 : vector<1x32xi1>
    %23 = arith.extui %22 : vector<1x32xi1> to vector<1x32xi32>
    %24 = arith.sitofp %23 : vector<1x32xi32> to vector<1x32xf32>
    %c16_i32_7 = arith.constant 16 : i32
    %25 = vector.broadcast %c16_i32_7 : i32 to vector<1x32xi32>
    %26 = arith.cmpi sge, %10, %25 : vector<1x32xi32>
    %c24_i32 = arith.constant 24 : i32
    %27 = vector.broadcast %c24_i32 : i32 to vector<1x32xi32>
    %28 = arith.cmpi slt, %10, %27 : vector<1x32xi32>
    %29 = arith.andi %26, %28 : vector<1x32xi1>
    %30 = arith.extui %29 : vector<1x32xi1> to vector<1x32xi32>
    %31 = arith.sitofp %30 : vector<1x32xi32> to vector<1x32xf32>
    %c24_i32_8 = arith.constant 24 : i32
    %32 = vector.broadcast %c24_i32_8 : i32 to vector<1x32xi32>
    %33 = arith.cmpi sge, %10, %32 : vector<1x32xi32>
    %c32_i32 = arith.constant 32 : i32
    %34 = vector.broadcast %c32_i32 : i32 to vector<1x32xi32>
    %35 = arith.cmpi slt, %10, %34 : vector<1x32xi32>
    %36 = arith.andi %33, %35 : vector<1x32xi1>
    %37 = arith.extui %36 : vector<1x32xi1> to vector<1x32xi32>
    %38 = arith.sitofp %37 : vector<1x32xi32> to vector<1x32xf32>
    %c0_9 = arith.constant 0 : index
    %c0_10 = arith.constant 0 : index
    %39 = vector.load %arg0[%c0_9, %c0_10] : memref<16x1xi32, #tpu.memory_space<vmem>>, vector<16x1xi32>
    %40 = tpu.iota {dimensions = array<i32: 1>} : vector<16x128xi32>
    %41 = vector.broadcast %39 : vector<16x1xi32> to vector<16x128xi32>
    %42 = arith.cmpi eq, %40, %41 : vector<16x128xi32>
    %43 = arith.extui %42 : vector<16x128xi1> to vector<16x128xi32>
    %44 = arith.sitofp %43 : vector<16x128xi32> to vector<16x128xf32>
    %c0_11 = arith.constant 0 : index
    %c0_12 = arith.constant 0 : index
    %45 = vector.load %arg2[%c0_11, %c0_12] : memref<128x32xf32, #tpu.memory_space<vmem>>, vector<128x32xf32>
    %cst = arith.constant dense<0.000000e+00> : vector<16x32xf32>
    %46 = tpu.matmul %44, %45, %cst {dimension_numbers = #tpu.dot_dimension_numbers<[1], [0], [0], [1], [0, 0, 1, 1], [], []>} : vector<16x128xf32>, vector<128x32xf32>, vector<16x32xf32> -> vector<16x32xf32>
    %c0_13 = arith.constant 0 : index
    %c0_14 = arith.constant 0 : index
    %47 = vector.load %arg3[%c0_13, %c0_14] : memref<16x32xf32, #tpu.memory_space<vmem>>, vector<8x32xf32>
    %48 = tpu.concatenate %47, %47 in 0 : vector<8x32xf32>, vector<8x32xf32> -> vector<16x32xf32>
    %49 = arith.addf %46, %48 : vector<16x32xf32>
    %cst_15 = arith.constant dense<0.000000e+00> : vector<16xf32>
    %50 = vector.multi_reduction <add>, %49, %cst_15 [1] : vector<16x32xf32> to vector<16xf32>
    %51 = vector.shape_cast %50 : vector<16xf32> to vector<16x1xf32>
    %cst_16 = arith.constant 3.200000e+01 : f32
    %52 = vector.broadcast %cst_16 : f32 to vector<16x1xf32>
    %53 = arith.divf %51, %52 : vector<16x1xf32>
    %54 = vector.broadcast %53 : vector<16x1xf32> to vector<16x32xf32>
    %55 = arith.subf %49, %54 : vector<16x32xf32>
    %56 = vector.broadcast %53 : vector<16x1xf32> to vector<16x32xf32>
    %57 = arith.subf %49, %56 : vector<16x32xf32>
    %58 = arith.mulf %55, %57 : vector<16x32xf32>
    %cst_17 = arith.constant dense<0.000000e+00> : vector<16xf32>
    %59 = vector.multi_reduction <add>, %58, %cst_17 [1] : vector<16x32xf32> to vector<16xf32>
    %60 = vector.shape_cast %59 : vector<16xf32> to vector<16x1xf32>
    %cst_18 = arith.constant 3.200000e+01 : f32
    %61 = vector.broadcast %cst_18 : f32 to vector<16x1xf32>
    %62 = arith.divf %60, %61 : vector<16x1xf32>
    %63 = vector.broadcast %53 : vector<16x1xf32> to vector<16x32xf32>
    %64 = arith.subf %49, %63 : vector<16x32xf32>
    %cst_19 = arith.constant 9.99999996E-13 : f32
    %65 = vector.broadcast %cst_19 : f32 to vector<16x1xf32>
    %66 = arith.addf %62, %65 : vector<16x1xf32>
    %67 = math.rsqrt %66 : vector<16x1xf32>
    %68 = vector.broadcast %67 : vector<16x1xf32> to vector<16x32xf32>
    %69 = arith.mulf %64, %68 : vector<16x32xf32>
    %70 = vector.broadcast %1 : vector<1x32xf32> to vector<16x32xf32>
    %71 = arith.mulf %69, %70 : vector<16x32xf32>
    %72 = vector.broadcast %3 : vector<1x32xf32> to vector<16x32xf32>
    %73 = arith.addf %71, %72 : vector<16x32xf32>
    %c0_20 = arith.constant 0 : index
    %c0_21 = arith.constant 0 : index
    %74 = vector.load %arg1[%c0_20, %c0_21] : memref<1x16xf32, #tpu.memory_space<vmem>>, vector<1x16xf32>
    %cst_22 = arith.constant 1.000000e+00 : f32
    %75 = vector.broadcast %cst_22 : f32 to vector<1x16xf32>
    %76 = arith.subf %75, %74 : vector<1x16xf32>
    %cst_23 = arith.constant -1.000000e+04 : f32
    %77 = vector.broadcast %cst_23 : f32 to vector<1x16xf32>
    %78 = arith.mulf %76, %77 : vector<1x16xf32>
    %79 = tpu.iota {dimensions = array<i32: 0>} : vector<16x16xi32>
    %80 = tpu.iota {dimensions = array<i32: 1>} : vector<16x16xi32>
    %false = arith.constant false
    %81 = vector.broadcast %false : i1 to vector<16x16xi1>
    %c0_i32_24 = arith.constant 0 : i32
    %82 = vector.broadcast %c0_i32_24 : i32 to vector<16x16xi32>
    %83 = arith.cmpi sge, %79, %82 : vector<16x16xi32>
    %c8_i32_25 = arith.constant 8 : i32
    %84 = vector.broadcast %c8_i32_25 : i32 to vector<16x16xi32>
    %85 = arith.cmpi slt, %79, %84 : vector<16x16xi32>
    %86 = arith.andi %83, %85 : vector<16x16xi1>
    %c0_i32_26 = arith.constant 0 : i32
    %87 = vector.broadcast %c0_i32_26 : i32 to vector<16x16xi32>
    %88 = arith.cmpi sge, %80, %87 : vector<16x16xi32>
    %c8_i32_27 = arith.constant 8 : i32
    %89 = vector.broadcast %c8_i32_27 : i32 to vector<16x16xi32>
    %90 = arith.cmpi slt, %80, %89 : vector<16x16xi32>
    %91 = arith.andi %88, %90 : vector<16x16xi1>
    %92 = arith.andi %86, %91 : vector<16x16xi1>
    %93 = arith.ori %81, %92 : vector<16x16xi1>
    %c8_i32_28 = arith.constant 8 : i32
    %94 = vector.broadcast %c8_i32_28 : i32 to vector<16x16xi32>
    %95 = arith.cmpi sge, %79, %94 : vector<16x16xi32>
    %c16_i32_29 = arith.constant 16 : i32
    %96 = vector.broadcast %c16_i32_29 : i32 to vector<16x16xi32>
    %97 = arith.cmpi slt, %79, %96 : vector<16x16xi32>
    %98 = arith.andi %95, %97 : vector<16x16xi1>
    %c8_i32_30 = arith.constant 8 : i32
    %99 = vector.broadcast %c8_i32_30 : i32 to vector<16x16xi32>
    %100 = arith.cmpi sge, %80, %99 : vector<16x16xi32>
    %c16_i32_31 = arith.constant 16 : i32
    %101 = vector.broadcast %c16_i32_31 : i32 to vector<16x16xi32>
    %102 = arith.cmpi slt, %80, %101 : vector<16x16xi32>
    %103 = arith.andi %100, %102 : vector<16x16xi1>
    %104 = arith.andi %98, %103 : vector<16x16xi1>
    %105 = arith.ori %93, %104 : vector<16x16xi1>
    %cst_32 = arith.constant 0.000000e+00 : f32
    %cst_33 = arith.constant -1.000000e+09 : f32
    %106 = vector.broadcast %cst_32 : f32 to vector<16x16xf32>
    %107 = vector.broadcast %cst_33 : f32 to vector<16x16xf32>
    %108 = arith.select %105, %106, %107 : vector<16x16xi1>, vector<16x16xf32>
    %109 = vector.broadcast %78 : vector<1x16xf32> to vector<16x16xf32>
    %110 = arith.addf %109, %108 : vector<16x16xf32>
    %c0_34 = arith.constant 0 : index
    %c0_35 = arith.constant 0 : index
    %111 = vector.load %arg4[%c0_34, %c0_35] : memref<64x192xf32, #tpu.memory_space<vmem>>, vector<32x192xf32>
    %112 = vector.extract_strided_slice %111 {offsets = [0, 0], sizes = [32, 96], strides = [1, 1]} : vector<32x192xf32> to vector<32x96xf32>
    %113 = vector.extract_strided_slice %111 {offsets = [0, 96], sizes = [32, 32], strides = [1, 1]} : vector<32x192xf32> to vector<32x32xf32>
    %114 = vector.extract_strided_slice %111 {offsets = [0, 128], sizes = [32, 64], strides = [1, 1]} : vector<32x192xf32> to vector<32x64xf32>
    %c0_36 = arith.constant 0 : index
    %c0_37 = arith.constant 0 : index
    %115 = vector.load %arg5[%c0_36, %c0_37] : memref<128x32xf32, #tpu.memory_space<vmem>>, vector<64x32xf32>
    %c4 = arith.constant 4 : index
    %c0_38 = arith.constant 0 : index
    %116 = vector.load %arg6[%c4, %c0_38] : memref<20x128xf32, #tpu.memory_space<vmem>>, vector<1x128xf32>
    %117 = vector.extract_strided_slice %116 {offsets = [0, 0], sizes = [1, 96], strides = [1, 1]} : vector<1x128xf32> to vector<1x96xf32>
    %c5 = arith.constant 5 : index
    %c0_39 = arith.constant 0 : index
    %118 = vector.load %arg6[%c5, %c0_39] : memref<20x128xf32, #tpu.memory_space<vmem>>, vector<1x128xf32>
    %119 = vector.extract_strided_slice %118 {offsets = [0, 0], sizes = [1, 32], strides = [1, 1]} : vector<1x128xf32> to vector<1x32xf32>
    %c6 = arith.constant 6 : index
    %c0_40 = arith.constant 0 : index
    %120 = vector.load %arg6[%c6, %c0_40] : memref<20x128xf32, #tpu.memory_space<vmem>>, vector<1x128xf32>
    %121 = vector.extract_strided_slice %120 {offsets = [0, 0], sizes = [1, 32], strides = [1, 1]} : vector<1x128xf32> to vector<1x32xf32>
    %c7 = arith.constant 7 : index
    %c0_41 = arith.constant 0 : index
    %122 = vector.load %arg6[%c7, %c0_41] : memref<20x128xf32, #tpu.memory_space<vmem>>, vector<1x128xf32>
    %123 = vector.extract_strided_slice %122 {offsets = [0, 0], sizes = [1, 32], strides = [1, 1]} : vector<1x128xf32> to vector<1x32xf32>
    %c8 = arith.constant 8 : index
    %c0_42 = arith.constant 0 : index
    %124 = vector.load %arg6[%c8, %c0_42] : memref<20x128xf32, #tpu.memory_space<vmem>>, vector<1x128xf32>
    %125 = vector.extract_strided_slice %124 {offsets = [0, 0], sizes = [1, 64], strides = [1, 1]} : vector<1x128xf32> to vector<1x64xf32>
    %c9 = arith.constant 9 : index
    %c0_43 = arith.constant 0 : index
    %126 = vector.load %arg6[%c9, %c0_43] : memref<20x128xf32, #tpu.memory_space<vmem>>, vector<1x128xf32>
    %127 = vector.extract_strided_slice %126 {offsets = [0, 0], sizes = [1, 32], strides = [1, 1]} : vector<1x128xf32> to vector<1x32xf32>
    %c10 = arith.constant 10 : index
    %c0_44 = arith.constant 0 : index
    %128 = vector.load %arg6[%c10, %c0_44] : memref<20x128xf32, #tpu.memory_space<vmem>>, vector<1x128xf32>
    %129 = vector.extract_strided_slice %128 {offsets = [0, 0], sizes = [1, 32], strides = [1, 1]} : vector<1x128xf32> to vector<1x32xf32>
    %c11 = arith.constant 11 : index
    %c0_45 = arith.constant 0 : index
    %130 = vector.load %arg6[%c11, %c0_45] : memref<20x128xf32, #tpu.memory_space<vmem>>, vector<1x128xf32>
    %131 = vector.extract_strided_slice %130 {offsets = [0, 0], sizes = [1, 32], strides = [1, 1]} : vector<1x128xf32> to vector<1x32xf32>
    %cst_46 = arith.constant dense<0.000000e+00> : vector<16x96xf32>
    %132 = tpu.matmul %73, %112, %cst_46 {dimension_numbers = #tpu.dot_dimension_numbers<[1], [0], [0], [1], [0, 0, 1, 1], [], []>} : vector<16x32xf32>, vector<32x96xf32>, vector<16x96xf32> -> vector<16x96xf32>
    %133 = vector.broadcast %117 : vector<1x96xf32> to vector<16x96xf32>
    %134 = arith.addf %132, %133 : vector<16x96xf32>
    %135 = vector.extract_strided_slice %134 {offsets = [0, 0], sizes = [16, 32], strides = [1, 1]} : vector<16x96xf32> to vector<16x32xf32>
    %136 = vector.extract_strided_slice %134 {offsets = [0, 32], sizes = [16, 32], strides = [1, 1]} : vector<16x96xf32> to vector<16x32xf32>
    %137 = vector.extract_strided_slice %134 {offsets = [0, 64], sizes = [16, 32], strides = [1, 1]} : vector<16x96xf32> to vector<16x32xf32>
    %cst_47 = arith.constant 0.000000e+00 : f32
    %138 = vector.broadcast %cst_47 : f32 to vector<16x32xf32>
    %139 = vector.broadcast %17 : vector<1x32xf32> to vector<16x32xf32>
    %140 = arith.mulf %135, %139 : vector<16x32xf32>
    %cst_48 = arith.constant dense<0.000000e+00> : vector<16x16xf32>
    %141 = tpu.matmul %140, %136, %cst_48 {dimension_numbers = #tpu.dot_dimension_numbers<[1], [1], [0], [0], [0, 0, 1, 0], [], []>} : vector<16x32xf32>, vector<16x32xf32>, vector<16x16xf32> -> vector<16x16xf32>
    %cst_49 = arith.constant 0.353553385 : f32
    %142 = vector.broadcast %cst_49 : f32 to vector<16x16xf32>
    %143 = arith.mulf %141, %142 : vector<16x16xf32>
    %144 = arith.addf %143, %110 : vector<16x16xf32>
    %cst_50 = arith.constant dense<0xFF800000> : vector<16xf32>
    %145 = vector.multi_reduction <maximumf>, %144, %cst_50 [1] : vector<16x16xf32> to vector<16xf32>
    %146 = vector.shape_cast %145 : vector<16xf32> to vector<16x1xf32>
    %147 = vector.broadcast %146 : vector<16x1xf32> to vector<16x16xf32>
    %148 = arith.subf %144, %147 : vector<16x16xf32>
    %149 = math.exp %148 : vector<16x16xf32>
    %cst_51 = arith.constant dense<0.000000e+00> : vector<16xf32>
    %150 = vector.multi_reduction <add>, %149, %cst_51 [1] : vector<16x16xf32> to vector<16xf32>
    %151 = vector.shape_cast %150 : vector<16xf32> to vector<16x1xf32>
    %152 = tpu.reciprocal %151 {approx = true} : vector<16x1xf32> -> vector<16x1xf32>
    %153 = vector.broadcast %152 : vector<16x1xf32> to vector<16x16xf32>
    %154 = arith.mulf %149, %153 : vector<16x16xf32>
    %155 = vector.broadcast %17 : vector<1x32xf32> to vector<16x32xf32>
    %156 = arith.mulf %137, %155 : vector<16x32xf32>
    %cst_52 = arith.constant dense<0.000000e+00> : vector<16x32xf32>
    %157 = tpu.matmul %154, %156, %cst_52 {dimension_numbers = #tpu.dot_dimension_numbers<[1], [0], [0], [1], [0, 0, 1, 1], [], []>} : vector<16x16xf32>, vector<16x32xf32>, vector<16x32xf32> -> vector<16x32xf32>
    %158 = arith.addf %138, %157 : vector<16x32xf32>
    %159 = vector.broadcast %24 : vector<1x32xf32> to vector<16x32xf32>
    %160 = arith.mulf %135, %159 : vector<16x32xf32>
    %cst_53 = arith.constant dense<0.000000e+00> : vector<16x16xf32>
    %161 = tpu.matmul %160, %136, %cst_53 {dimension_numbers = #tpu.dot_dimension_numbers<[1], [1], [0], [0], [0, 0, 1, 0], [], []>} : vector<16x32xf32>, vector<16x32xf32>, vector<16x16xf32> -> vector<16x16xf32>
    %cst_54 = arith.constant 0.353553385 : f32
    %162 = vector.broadcast %cst_54 : f32 to vector<16x16xf32>
    %163 = arith.mulf %161, %162 : vector<16x16xf32>
    %164 = arith.addf %163, %110 : vector<16x16xf32>
    %cst_55 = arith.constant dense<0xFF800000> : vector<16xf32>
    %165 = vector.multi_reduction <maximumf>, %164, %cst_55 [1] : vector<16x16xf32> to vector<16xf32>
    %166 = vector.shape_cast %165 : vector<16xf32> to vector<16x1xf32>
    %167 = vector.broadcast %166 : vector<16x1xf32> to vector<16x16xf32>
    %168 = arith.subf %164, %167 : vector<16x16xf32>
    %169 = math.exp %168 : vector<16x16xf32>
    %cst_56 = arith.constant dense<0.000000e+00> : vector<16xf32>
    %170 = vector.multi_reduction <add>, %169, %cst_56 [1] : vector<16x16xf32> to vector<16xf32>
    %171 = vector.shape_cast %170 : vector<16xf32> to vector<16x1xf32>
    %172 = tpu.reciprocal %171 {approx = true} : vector<16x1xf32> -> vector<16x1xf32>
    %173 = vector.broadcast %172 : vector<16x1xf32> to vector<16x16xf32>
    %174 = arith.mulf %169, %173 : vector<16x16xf32>
    %175 = vector.broadcast %24 : vector<1x32xf32> to vector<16x32xf32>
    %176 = arith.mulf %137, %175 : vector<16x32xf32>
    %cst_57 = arith.constant dense<0.000000e+00> : vector<16x32xf32>
    %177 = tpu.matmul %174, %176, %cst_57 {dimension_numbers = #tpu.dot_dimension_numbers<[1], [0], [0], [1], [0, 0, 1, 1], [], []>} : vector<16x16xf32>, vector<16x32xf32>, vector<16x32xf32> -> vector<16x32xf32>
    %178 = arith.addf %158, %177 : vector<16x32xf32>
    %179 = vector.broadcast %31 : vector<1x32xf32> to vector<16x32xf32>
    %180 = arith.mulf %135, %179 : vector<16x32xf32>
    %cst_58 = arith.constant dense<0.000000e+00> : vector<16x16xf32>
    %181 = tpu.matmul %180, %136, %cst_58 {dimension_numbers = #tpu.dot_dimension_numbers<[1], [1], [0], [0], [0, 0, 1, 0], [], []>} : vector<16x32xf32>, vector<16x32xf32>, vector<16x16xf32> -> vector<16x16xf32>
    %cst_59 = arith.constant 0.353553385 : f32
    %182 = vector.broadcast %cst_59 : f32 to vector<16x16xf32>
    %183 = arith.mulf %181, %182 : vector<16x16xf32>
    %184 = arith.addf %183, %110 : vector<16x16xf32>
    %cst_60 = arith.constant dense<0xFF800000> : vector<16xf32>
    %185 = vector.multi_reduction <maximumf>, %184, %cst_60 [1] : vector<16x16xf32> to vector<16xf32>
    %186 = vector.shape_cast %185 : vector<16xf32> to vector<16x1xf32>
    %187 = vector.broadcast %186 : vector<16x1xf32> to vector<16x16xf32>
    %188 = arith.subf %184, %187 : vector<16x16xf32>
    %189 = math.exp %188 : vector<16x16xf32>
    %cst_61 = arith.constant dense<0.000000e+00> : vector<16xf32>
    %190 = vector.multi_reduction <add>, %189, %cst_61 [1] : vector<16x16xf32> to vector<16xf32>
    %191 = vector.shape_cast %190 : vector<16xf32> to vector<16x1xf32>
    %192 = tpu.reciprocal %191 {approx = true} : vector<16x1xf32> -> vector<16x1xf32>
    %193 = vector.broadcast %192 : vector<16x1xf32> to vector<16x16xf32>
    %194 = arith.mulf %189, %193 : vector<16x16xf32>
    %195 = vector.broadcast %31 : vector<1x32xf32> to vector<16x32xf32>
    %196 = arith.mulf %137, %195 : vector<16x32xf32>
    %cst_62 = arith.constant dense<0.000000e+00> : vector<16x32xf32>
    %197 = tpu.matmul %194, %196, %cst_62 {dimension_numbers = #tpu.dot_dimension_numbers<[1], [0], [0], [1], [0, 0, 1, 1], [], []>} : vector<16x16xf32>, vector<16x32xf32>, vector<16x32xf32> -> vector<16x32xf32>
    %198 = arith.addf %178, %197 : vector<16x32xf32>
    %199 = vector.broadcast %38 : vector<1x32xf32> to vector<16x32xf32>
    %200 = arith.mulf %135, %199 : vector<16x32xf32>
    %cst_63 = arith.constant dense<0.000000e+00> : vector<16x16xf32>
    %201 = tpu.matmul %200, %136, %cst_63 {dimension_numbers = #tpu.dot_dimension_numbers<[1], [1], [0], [0], [0, 0, 1, 0], [], []>} : vector<16x32xf32>, vector<16x32xf32>, vector<16x16xf32> -> vector<16x16xf32>
    %cst_64 = arith.constant 0.353553385 : f32
    %202 = vector.broadcast %cst_64 : f32 to vector<16x16xf32>
    %203 = arith.mulf %201, %202 : vector<16x16xf32>
    %204 = arith.addf %203, %110 : vector<16x16xf32>
    %cst_65 = arith.constant dense<0xFF800000> : vector<16xf32>
    %205 = vector.multi_reduction <maximumf>, %204, %cst_65 [1] : vector<16x16xf32> to vector<16xf32>
    %206 = vector.shape_cast %205 : vector<16xf32> to vector<16x1xf32>
    %207 = vector.broadcast %206 : vector<16x1xf32> to vector<16x16xf32>
    %208 = arith.subf %204, %207 : vector<16x16xf32>
    %209 = math.exp %208 : vector<16x16xf32>
    %cst_66 = arith.constant dense<0.000000e+00> : vector<16xf32>
    %210 = vector.multi_reduction <add>, %209, %cst_66 [1] : vector<16x16xf32> to vector<16xf32>
    %211 = vector.shape_cast %210 : vector<16xf32> to vector<16x1xf32>
    %212 = tpu.reciprocal %211 {approx = true} : vector<16x1xf32> -> vector<16x1xf32>
    %213 = vector.broadcast %212 : vector<16x1xf32> to vector<16x16xf32>
    %214 = arith.mulf %209, %213 : vector<16x16xf32>
    %215 = vector.broadcast %38 : vector<1x32xf32> to vector<16x32xf32>
    %216 = arith.mulf %137, %215 : vector<16x32xf32>
    %cst_67 = arith.constant dense<0.000000e+00> : vector<16x32xf32>
    %217 = tpu.matmul %214, %216, %cst_67 {dimension_numbers = #tpu.dot_dimension_numbers<[1], [0], [0], [1], [0, 0, 1, 1], [], []>} : vector<16x16xf32>, vector<16x32xf32>, vector<16x32xf32> -> vector<16x32xf32>
    %218 = arith.addf %198, %217 : vector<16x32xf32>
    %cst_68 = arith.constant dense<0.000000e+00> : vector<16x32xf32>
    %219 = tpu.matmul %218, %113, %cst_68 {dimension_numbers = #tpu.dot_dimension_numbers<[1], [0], [0], [1], [0, 0, 1, 1], [], []>} : vector<16x32xf32>, vector<32x32xf32>, vector<16x32xf32> -> vector<16x32xf32>
    %220 = vector.broadcast %119 : vector<1x32xf32> to vector<16x32xf32>
    %221 = arith.addf %219, %220 : vector<16x32xf32>
    %222 = arith.addf %221, %73 : vector<16x32xf32>
    %cst_69 = arith.constant dense<0.000000e+00> : vector<16xf32>
    %223 = vector.multi_reduction <add>, %222, %cst_69 [1] : vector<16x32xf32> to vector<16xf32>
    %224 = vector.shape_cast %223 : vector<16xf32> to vector<16x1xf32>
    %cst_70 = arith.constant 3.200000e+01 : f32
    %225 = vector.broadcast %cst_70 : f32 to vector<16x1xf32>
    %226 = arith.divf %224, %225 : vector<16x1xf32>
    %227 = vector.broadcast %226 : vector<16x1xf32> to vector<16x32xf32>
    %228 = arith.subf %222, %227 : vector<16x32xf32>
    %229 = vector.broadcast %226 : vector<16x1xf32> to vector<16x32xf32>
    %230 = arith.subf %222, %229 : vector<16x32xf32>
    %231 = arith.mulf %228, %230 : vector<16x32xf32>
    %cst_71 = arith.constant dense<0.000000e+00> : vector<16xf32>
    %232 = vector.multi_reduction <add>, %231, %cst_71 [1] : vector<16x32xf32> to vector<16xf32>
    %233 = vector.shape_cast %232 : vector<16xf32> to vector<16x1xf32>
    %cst_72 = arith.constant 3.200000e+01 : f32
    %234 = vector.broadcast %cst_72 : f32 to vector<16x1xf32>
    %235 = arith.divf %233, %234 : vector<16x1xf32>
    %236 = vector.broadcast %226 : vector<16x1xf32> to vector<16x32xf32>
    %237 = arith.subf %222, %236 : vector<16x32xf32>
    %cst_73 = arith.constant 9.99999996E-13 : f32
    %238 = vector.broadcast %cst_73 : f32 to vector<16x1xf32>
    %239 = arith.addf %235, %238 : vector<16x1xf32>
    %240 = math.rsqrt %239 : vector<16x1xf32>
    %241 = vector.broadcast %240 : vector<16x1xf32> to vector<16x32xf32>
    %242 = arith.mulf %237, %241 : vector<16x32xf32>
    %243 = vector.broadcast %121 : vector<1x32xf32> to vector<16x32xf32>
    %244 = arith.mulf %242, %243 : vector<16x32xf32>
    %245 = vector.broadcast %123 : vector<1x32xf32> to vector<16x32xf32>
    %246 = arith.addf %244, %245 : vector<16x32xf32>
    %cst_74 = arith.constant dense<0.000000e+00> : vector<16x64xf32>
    %247 = tpu.matmul %246, %114, %cst_74 {dimension_numbers = #tpu.dot_dimension_numbers<[1], [0], [0], [1], [0, 0, 1, 1], [], []>} : vector<16x32xf32>, vector<32x64xf32>, vector<16x64xf32> -> vector<16x64xf32>
    %248 = vector.broadcast %125 : vector<1x64xf32> to vector<16x64xf32>
    %249 = arith.addf %247, %248 : vector<16x64xf32>
    %cst_75 = arith.constant 5.000000e-01 : f32
    %250 = vector.broadcast %cst_75 : f32 to vector<16x64xf32>
    %251 = arith.mulf %250, %249 : vector<16x64xf32>
    %cst_76 = arith.constant 4.471500e-02 : f32
    %252 = vector.broadcast %cst_76 : f32 to vector<16x64xf32>
    %253 = arith.mulf %252, %249 : vector<16x64xf32>
    %254 = arith.mulf %253, %249 : vector<16x64xf32>
    %255 = arith.mulf %254, %249 : vector<16x64xf32>
    %256 = arith.addf %249, %255 : vector<16x64xf32>
    %cst_77 = arith.constant 0.797884583 : f32
    %257 = vector.broadcast %cst_77 : f32 to vector<16x64xf32>
    %258 = arith.mulf %257, %256 : vector<16x64xf32>
    %259 = math.tanh %258 : vector<16x64xf32>
    %cst_78 = arith.constant 1.000000e+00 : f32
    %260 = vector.broadcast %cst_78 : f32 to vector<16x64xf32>
    %261 = arith.addf %260, %259 : vector<16x64xf32>
    %262 = arith.mulf %251, %261 : vector<16x64xf32>
    %cst_79 = arith.constant dense<0.000000e+00> : vector<16x32xf32>
    %263 = tpu.matmul %262, %115, %cst_79 {dimension_numbers = #tpu.dot_dimension_numbers<[1], [0], [0], [1], [0, 0, 1, 1], [], []>} : vector<16x64xf32>, vector<64x32xf32>, vector<16x32xf32> -> vector<16x32xf32>
    %264 = vector.broadcast %127 : vector<1x32xf32> to vector<16x32xf32>
    %265 = arith.addf %263, %264 : vector<16x32xf32>
    %266 = arith.addf %265, %246 : vector<16x32xf32>
    %cst_80 = arith.constant dense<0.000000e+00> : vector<16xf32>
    %267 = vector.multi_reduction <add>, %266, %cst_80 [1] : vector<16x32xf32> to vector<16xf32>
    %268 = vector.shape_cast %267 : vector<16xf32> to vector<16x1xf32>
    %cst_81 = arith.constant 3.200000e+01 : f32
    %269 = vector.broadcast %cst_81 : f32 to vector<16x1xf32>
    %270 = arith.divf %268, %269 : vector<16x1xf32>
    %271 = vector.broadcast %270 : vector<16x1xf32> to vector<16x32xf32>
    %272 = arith.subf %266, %271 : vector<16x32xf32>
    %273 = vector.broadcast %270 : vector<16x1xf32> to vector<16x32xf32>
    %274 = arith.subf %266, %273 : vector<16x32xf32>
    %275 = arith.mulf %272, %274 : vector<16x32xf32>
    %cst_82 = arith.constant dense<0.000000e+00> : vector<16xf32>
    %276 = vector.multi_reduction <add>, %275, %cst_82 [1] : vector<16x32xf32> to vector<16xf32>
    %277 = vector.shape_cast %276 : vector<16xf32> to vector<16x1xf32>
    %cst_83 = arith.constant 3.200000e+01 : f32
    %278 = vector.broadcast %cst_83 : f32 to vector<16x1xf32>
    %279 = arith.divf %277, %278 : vector<16x1xf32>
    %280 = vector.broadcast %270 : vector<16x1xf32> to vector<16x32xf32>
    %281 = arith.subf %266, %280 : vector<16x32xf32>
    %cst_84 = arith.constant 9.99999996E-13 : f32
    %282 = vector.broadcast %cst_84 : f32 to vector<16x1xf32>
    %283 = arith.addf %279, %282 : vector<16x1xf32>
    %284 = math.rsqrt %283 : vector<16x1xf32>
    %285 = vector.broadcast %284 : vector<16x1xf32> to vector<16x32xf32>
    %286 = arith.mulf %281, %285 : vector<16x32xf32>
    %287 = vector.broadcast %129 : vector<1x32xf32> to vector<16x32xf32>
    %288 = arith.mulf %286, %287 : vector<16x32xf32>
    %289 = vector.broadcast %131 : vector<1x32xf32> to vector<16x32xf32>
    %290 = arith.addf %288, %289 : vector<16x32xf32>
    %c32 = arith.constant 32 : index
    %c0_85 = arith.constant 0 : index
    %291 = vector.load %arg4[%c32, %c0_85] : memref<64x192xf32, #tpu.memory_space<vmem>>, vector<32x192xf32>
    %292 = vector.extract_strided_slice %291 {offsets = [0, 0], sizes = [32, 96], strides = [1, 1]} : vector<32x192xf32> to vector<32x96xf32>
    %293 = vector.extract_strided_slice %291 {offsets = [0, 96], sizes = [32, 32], strides = [1, 1]} : vector<32x192xf32> to vector<32x32xf32>
    %294 = vector.extract_strided_slice %291 {offsets = [0, 128], sizes = [32, 64], strides = [1, 1]} : vector<32x192xf32> to vector<32x64xf32>
    %c64 = arith.constant 64 : index
    %c0_86 = arith.constant 0 : index
    %295 = vector.load %arg5[%c64, %c0_86] : memref<128x32xf32, #tpu.memory_space<vmem>>, vector<64x32xf32>
    %c12 = arith.constant 12 : index
    %c0_87 = arith.constant 0 : index
    %296 = vector.load %arg6[%c12, %c0_87] : memref<20x128xf32, #tpu.memory_space<vmem>>, vector<1x128xf32>
    %297 = vector.extract_strided_slice %296 {offsets = [0, 0], sizes = [1, 96], strides = [1, 1]} : vector<1x128xf32> to vector<1x96xf32>
    %c13 = arith.constant 13 : index
    %c0_88 = arith.constant 0 : index
    %298 = vector.load %arg6[%c13, %c0_88] : memref<20x128xf32, #tpu.memory_space<vmem>>, vector<1x128xf32>
    %299 = vector.extract_strided_slice %298 {offsets = [0, 0], sizes = [1, 32], strides = [1, 1]} : vector<1x128xf32> to vector<1x32xf32>
    %c14 = arith.constant 14 : index
    %c0_89 = arith.constant 0 : index
    %300 = vector.load %arg6[%c14, %c0_89] : memref<20x128xf32, #tpu.memory_space<vmem>>, vector<1x128xf32>
    %301 = vector.extract_strided_slice %300 {offsets = [0, 0], sizes = [1, 32], strides = [1, 1]} : vector<1x128xf32> to vector<1x32xf32>
    %c15 = arith.constant 15 : index
    %c0_90 = arith.constant 0 : index
    %302 = vector.load %arg6[%c15, %c0_90] : memref<20x128xf32, #tpu.memory_space<vmem>>, vector<1x128xf32>
    %303 = vector.extract_strided_slice %302 {offsets = [0, 0], sizes = [1, 32], strides = [1, 1]} : vector<1x128xf32> to vector<1x32xf32>
    %c16 = arith.constant 16 : index
    %c0_91 = arith.constant 0 : index
    %304 = vector.load %arg6[%c16, %c0_91] : memref<20x128xf32, #tpu.memory_space<vmem>>, vector<1x128xf32>
    %305 = vector.extract_strided_slice %304 {offsets = [0, 0], sizes = [1, 64], strides = [1, 1]} : vector<1x128xf32> to vector<1x64xf32>
    %c17 = arith.constant 17 : index
    %c0_92 = arith.constant 0 : index
    %306 = vector.load %arg6[%c17, %c0_92] : memref<20x128xf32, #tpu.memory_space<vmem>>, vector<1x128xf32>
    %307 = vector.extract_strided_slice %306 {offsets = [0, 0], sizes = [1, 32], strides = [1, 1]} : vector<1x128xf32> to vector<1x32xf32>
    %c18 = arith.constant 18 : index
    %c0_93 = arith.constant 0 : index
    %308 = vector.load %arg6[%c18, %c0_93] : memref<20x128xf32, #tpu.memory_space<vmem>>, vector<1x128xf32>
    %309 = vector.extract_strided_slice %308 {offsets = [0, 0], sizes = [1, 32], strides = [1, 1]} : vector<1x128xf32> to vector<1x32xf32>
    %c19 = arith.constant 19 : index
    %c0_94 = arith.constant 0 : index
    %310 = vector.load %arg6[%c19, %c0_94] : memref<20x128xf32, #tpu.memory_space<vmem>>, vector<1x128xf32>
    %311 = vector.extract_strided_slice %310 {offsets = [0, 0], sizes = [1, 32], strides = [1, 1]} : vector<1x128xf32> to vector<1x32xf32>
    %cst_95 = arith.constant dense<0.000000e+00> : vector<16x96xf32>
    %312 = tpu.matmul %290, %292, %cst_95 {dimension_numbers = #tpu.dot_dimension_numbers<[1], [0], [0], [1], [0, 0, 1, 1], [], []>} : vector<16x32xf32>, vector<32x96xf32>, vector<16x96xf32> -> vector<16x96xf32>
    %313 = vector.broadcast %297 : vector<1x96xf32> to vector<16x96xf32>
    %314 = arith.addf %312, %313 : vector<16x96xf32>
    %315 = vector.extract_strided_slice %314 {offsets = [0, 0], sizes = [16, 32], strides = [1, 1]} : vector<16x96xf32> to vector<16x32xf32>
    %316 = vector.extract_strided_slice %314 {offsets = [0, 32], sizes = [16, 32], strides = [1, 1]} : vector<16x96xf32> to vector<16x32xf32>
    %317 = vector.extract_strided_slice %314 {offsets = [0, 64], sizes = [16, 32], strides = [1, 1]} : vector<16x96xf32> to vector<16x32xf32>
    %cst_96 = arith.constant 0.000000e+00 : f32
    %318 = vector.broadcast %cst_96 : f32 to vector<16x32xf32>
    %319 = vector.broadcast %17 : vector<1x32xf32> to vector<16x32xf32>
    %320 = arith.mulf %315, %319 : vector<16x32xf32>
    %cst_97 = arith.constant dense<0.000000e+00> : vector<16x16xf32>
    %321 = tpu.matmul %320, %316, %cst_97 {dimension_numbers = #tpu.dot_dimension_numbers<[1], [1], [0], [0], [0, 0, 1, 0], [], []>} : vector<16x32xf32>, vector<16x32xf32>, vector<16x16xf32> -> vector<16x16xf32>
    %cst_98 = arith.constant 0.353553385 : f32
    %322 = vector.broadcast %cst_98 : f32 to vector<16x16xf32>
    %323 = arith.mulf %321, %322 : vector<16x16xf32>
    %324 = arith.addf %323, %110 : vector<16x16xf32>
    %cst_99 = arith.constant dense<0xFF800000> : vector<16xf32>
    %325 = vector.multi_reduction <maximumf>, %324, %cst_99 [1] : vector<16x16xf32> to vector<16xf32>
    %326 = vector.shape_cast %325 : vector<16xf32> to vector<16x1xf32>
    %327 = vector.broadcast %326 : vector<16x1xf32> to vector<16x16xf32>
    %328 = arith.subf %324, %327 : vector<16x16xf32>
    %329 = math.exp %328 : vector<16x16xf32>
    %cst_100 = arith.constant dense<0.000000e+00> : vector<16xf32>
    %330 = vector.multi_reduction <add>, %329, %cst_100 [1] : vector<16x16xf32> to vector<16xf32>
    %331 = vector.shape_cast %330 : vector<16xf32> to vector<16x1xf32>
    %332 = tpu.reciprocal %331 {approx = true} : vector<16x1xf32> -> vector<16x1xf32>
    %333 = vector.broadcast %332 : vector<16x1xf32> to vector<16x16xf32>
    %334 = arith.mulf %329, %333 : vector<16x16xf32>
    %335 = vector.broadcast %17 : vector<1x32xf32> to vector<16x32xf32>
    %336 = arith.mulf %317, %335 : vector<16x32xf32>
    %cst_101 = arith.constant dense<0.000000e+00> : vector<16x32xf32>
    %337 = tpu.matmul %334, %336, %cst_101 {dimension_numbers = #tpu.dot_dimension_numbers<[1], [0], [0], [1], [0, 0, 1, 1], [], []>} : vector<16x16xf32>, vector<16x32xf32>, vector<16x32xf32> -> vector<16x32xf32>
    %338 = arith.addf %318, %337 : vector<16x32xf32>
    %339 = vector.broadcast %24 : vector<1x32xf32> to vector<16x32xf32>
    %340 = arith.mulf %315, %339 : vector<16x32xf32>
    %cst_102 = arith.constant dense<0.000000e+00> : vector<16x16xf32>
    %341 = tpu.matmul %340, %316, %cst_102 {dimension_numbers = #tpu.dot_dimension_numbers<[1], [1], [0], [0], [0, 0, 1, 0], [], []>} : vector<16x32xf32>, vector<16x32xf32>, vector<16x16xf32> -> vector<16x16xf32>
    %cst_103 = arith.constant 0.353553385 : f32
    %342 = vector.broadcast %cst_103 : f32 to vector<16x16xf32>
    %343 = arith.mulf %341, %342 : vector<16x16xf32>
    %344 = arith.addf %343, %110 : vector<16x16xf32>
    %cst_104 = arith.constant dense<0xFF800000> : vector<16xf32>
    %345 = vector.multi_reduction <maximumf>, %344, %cst_104 [1] : vector<16x16xf32> to vector<16xf32>
    %346 = vector.shape_cast %345 : vector<16xf32> to vector<16x1xf32>
    %347 = vector.broadcast %346 : vector<16x1xf32> to vector<16x16xf32>
    %348 = arith.subf %344, %347 : vector<16x16xf32>
    %349 = math.exp %348 : vector<16x16xf32>
    %cst_105 = arith.constant dense<0.000000e+00> : vector<16xf32>
    %350 = vector.multi_reduction <add>, %349, %cst_105 [1] : vector<16x16xf32> to vector<16xf32>
    %351 = vector.shape_cast %350 : vector<16xf32> to vector<16x1xf32>
    %352 = tpu.reciprocal %351 {approx = true} : vector<16x1xf32> -> vector<16x1xf32>
    %353 = vector.broadcast %352 : vector<16x1xf32> to vector<16x16xf32>
    %354 = arith.mulf %349, %353 : vector<16x16xf32>
    %355 = vector.broadcast %24 : vector<1x32xf32> to vector<16x32xf32>
    %356 = arith.mulf %317, %355 : vector<16x32xf32>
    %cst_106 = arith.constant dense<0.000000e+00> : vector<16x32xf32>
    %357 = tpu.matmul %354, %356, %cst_106 {dimension_numbers = #tpu.dot_dimension_numbers<[1], [0], [0], [1], [0, 0, 1, 1], [], []>} : vector<16x16xf32>, vector<16x32xf32>, vector<16x32xf32> -> vector<16x32xf32>
    %358 = arith.addf %338, %357 : vector<16x32xf32>
    %359 = vector.broadcast %31 : vector<1x32xf32> to vector<16x32xf32>
    %360 = arith.mulf %315, %359 : vector<16x32xf32>
    %cst_107 = arith.constant dense<0.000000e+00> : vector<16x16xf32>
    %361 = tpu.matmul %360, %316, %cst_107 {dimension_numbers = #tpu.dot_dimension_numbers<[1], [1], [0], [0], [0, 0, 1, 0], [], []>} : vector<16x32xf32>, vector<16x32xf32>, vector<16x16xf32> -> vector<16x16xf32>
    %cst_108 = arith.constant 0.353553385 : f32
    %362 = vector.broadcast %cst_108 : f32 to vector<16x16xf32>
    %363 = arith.mulf %361, %362 : vector<16x16xf32>
    %364 = arith.addf %363, %110 : vector<16x16xf32>
    %cst_109 = arith.constant dense<0xFF800000> : vector<16xf32>
    %365 = vector.multi_reduction <maximumf>, %364, %cst_109 [1] : vector<16x16xf32> to vector<16xf32>
    %366 = vector.shape_cast %365 : vector<16xf32> to vector<16x1xf32>
    %367 = vector.broadcast %366 : vector<16x1xf32> to vector<16x16xf32>
    %368 = arith.subf %364, %367 : vector<16x16xf32>
    %369 = math.exp %368 : vector<16x16xf32>
    %cst_110 = arith.constant dense<0.000000e+00> : vector<16xf32>
    %370 = vector.multi_reduction <add>, %369, %cst_110 [1] : vector<16x16xf32> to vector<16xf32>
    %371 = vector.shape_cast %370 : vector<16xf32> to vector<16x1xf32>
    %372 = tpu.reciprocal %371 {approx = true} : vector<16x1xf32> -> vector<16x1xf32>
    %373 = vector.broadcast %372 : vector<16x1xf32> to vector<16x16xf32>
    %374 = arith.mulf %369, %373 : vector<16x16xf32>
    %375 = vector.broadcast %31 : vector<1x32xf32> to vector<16x32xf32>
    %376 = arith.mulf %317, %375 : vector<16x32xf32>
    %cst_111 = arith.constant dense<0.000000e+00> : vector<16x32xf32>
    %377 = tpu.matmul %374, %376, %cst_111 {dimension_numbers = #tpu.dot_dimension_numbers<[1], [0], [0], [1], [0, 0, 1, 1], [], []>} : vector<16x16xf32>, vector<16x32xf32>, vector<16x32xf32> -> vector<16x32xf32>
    %378 = arith.addf %358, %377 : vector<16x32xf32>
    %379 = vector.broadcast %38 : vector<1x32xf32> to vector<16x32xf32>
    %380 = arith.mulf %315, %379 : vector<16x32xf32>
    %cst_112 = arith.constant dense<0.000000e+00> : vector<16x16xf32>
    %381 = tpu.matmul %380, %316, %cst_112 {dimension_numbers = #tpu.dot_dimension_numbers<[1], [1], [0], [0], [0, 0, 1, 0], [], []>} : vector<16x32xf32>, vector<16x32xf32>, vector<16x16xf32> -> vector<16x16xf32>
    %cst_113 = arith.constant 0.353553385 : f32
    %382 = vector.broadcast %cst_113 : f32 to vector<16x16xf32>
    %383 = arith.mulf %381, %382 : vector<16x16xf32>
    %384 = arith.addf %383, %110 : vector<16x16xf32>
    %cst_114 = arith.constant dense<0xFF800000> : vector<16xf32>
    %385 = vector.multi_reduction <maximumf>, %384, %cst_114 [1] : vector<16x16xf32> to vector<16xf32>
    %386 = vector.shape_cast %385 : vector<16xf32> to vector<16x1xf32>
    %387 = vector.broadcast %386 : vector<16x1xf32> to vector<16x16xf32>
    %388 = arith.subf %384, %387 : vector<16x16xf32>
    %389 = math.exp %388 : vector<16x16xf32>
    %cst_115 = arith.constant dense<0.000000e+00> : vector<16xf32>
    %390 = vector.multi_reduction <add>, %389, %cst_115 [1] : vector<16x16xf32> to vector<16xf32>
    %391 = vector.shape_cast %390 : vector<16xf32> to vector<16x1xf32>
    %392 = tpu.reciprocal %391 {approx = true} : vector<16x1xf32> -> vector<16x1xf32>
    %393 = vector.broadcast %392 : vector<16x1xf32> to vector<16x16xf32>
    %394 = arith.mulf %389, %393 : vector<16x16xf32>
    %395 = vector.broadcast %38 : vector<1x32xf32> to vector<16x32xf32>
    %396 = arith.mulf %317, %395 : vector<16x32xf32>
    %cst_116 = arith.constant dense<0.000000e+00> : vector<16x32xf32>
    %397 = tpu.matmul %394, %396, %cst_116 {dimension_numbers = #tpu.dot_dimension_numbers<[1], [0], [0], [1], [0, 0, 1, 1], [], []>} : vector<16x16xf32>, vector<16x32xf32>, vector<16x32xf32> -> vector<16x32xf32>
    %398 = arith.addf %378, %397 : vector<16x32xf32>
    %cst_117 = arith.constant dense<0.000000e+00> : vector<16x32xf32>
    %399 = tpu.matmul %398, %293, %cst_117 {dimension_numbers = #tpu.dot_dimension_numbers<[1], [0], [0], [1], [0, 0, 1, 1], [], []>} : vector<16x32xf32>, vector<32x32xf32>, vector<16x32xf32> -> vector<16x32xf32>
    %400 = vector.broadcast %299 : vector<1x32xf32> to vector<16x32xf32>
    %401 = arith.addf %399, %400 : vector<16x32xf32>
    %402 = arith.addf %401, %290 : vector<16x32xf32>
    %cst_118 = arith.constant dense<0.000000e+00> : vector<16xf32>
    %403 = vector.multi_reduction <add>, %402, %cst_118 [1] : vector<16x32xf32> to vector<16xf32>
    %404 = vector.shape_cast %403 : vector<16xf32> to vector<16x1xf32>
    %cst_119 = arith.constant 3.200000e+01 : f32
    %405 = vector.broadcast %cst_119 : f32 to vector<16x1xf32>
    %406 = arith.divf %404, %405 : vector<16x1xf32>
    %407 = vector.broadcast %406 : vector<16x1xf32> to vector<16x32xf32>
    %408 = arith.subf %402, %407 : vector<16x32xf32>
    %409 = vector.broadcast %406 : vector<16x1xf32> to vector<16x32xf32>
    %410 = arith.subf %402, %409 : vector<16x32xf32>
    %411 = arith.mulf %408, %410 : vector<16x32xf32>
    %cst_120 = arith.constant dense<0.000000e+00> : vector<16xf32>
    %412 = vector.multi_reduction <add>, %411, %cst_120 [1] : vector<16x32xf32> to vector<16xf32>
    %413 = vector.shape_cast %412 : vector<16xf32> to vector<16x1xf32>
    %cst_121 = arith.constant 3.200000e+01 : f32
    %414 = vector.broadcast %cst_121 : f32 to vector<16x1xf32>
    %415 = arith.divf %413, %414 : vector<16x1xf32>
    %416 = vector.broadcast %406 : vector<16x1xf32> to vector<16x32xf32>
    %417 = arith.subf %402, %416 : vector<16x32xf32>
    %cst_122 = arith.constant 9.99999996E-13 : f32
    %418 = vector.broadcast %cst_122 : f32 to vector<16x1xf32>
    %419 = arith.addf %415, %418 : vector<16x1xf32>
    %420 = math.rsqrt %419 : vector<16x1xf32>
    %421 = vector.broadcast %420 : vector<16x1xf32> to vector<16x32xf32>
    %422 = arith.mulf %417, %421 : vector<16x32xf32>
    %423 = vector.broadcast %301 : vector<1x32xf32> to vector<16x32xf32>
    %424 = arith.mulf %422, %423 : vector<16x32xf32>
    %425 = vector.broadcast %303 : vector<1x32xf32> to vector<16x32xf32>
    %426 = arith.addf %424, %425 : vector<16x32xf32>
    %cst_123 = arith.constant dense<0.000000e+00> : vector<16x64xf32>
    %427 = tpu.matmul %426, %294, %cst_123 {dimension_numbers = #tpu.dot_dimension_numbers<[1], [0], [0], [1], [0, 0, 1, 1], [], []>} : vector<16x32xf32>, vector<32x64xf32>, vector<16x64xf32> -> vector<16x64xf32>
    %428 = vector.broadcast %305 : vector<1x64xf32> to vector<16x64xf32>
    %429 = arith.addf %427, %428 : vector<16x64xf32>
    %cst_124 = arith.constant 5.000000e-01 : f32
    %430 = vector.broadcast %cst_124 : f32 to vector<16x64xf32>
    %431 = arith.mulf %430, %429 : vector<16x64xf32>
    %cst_125 = arith.constant 4.471500e-02 : f32
    %432 = vector.broadcast %cst_125 : f32 to vector<16x64xf32>
    %433 = arith.mulf %432, %429 : vector<16x64xf32>
    %434 = arith.mulf %433, %429 : vector<16x64xf32>
    %435 = arith.mulf %434, %429 : vector<16x64xf32>
    %436 = arith.addf %429, %435 : vector<16x64xf32>
    %cst_126 = arith.constant 0.797884583 : f32
    %437 = vector.broadcast %cst_126 : f32 to vector<16x64xf32>
    %438 = arith.mulf %437, %436 : vector<16x64xf32>
    %439 = math.tanh %438 : vector<16x64xf32>
    %cst_127 = arith.constant 1.000000e+00 : f32
    %440 = vector.broadcast %cst_127 : f32 to vector<16x64xf32>
    %441 = arith.addf %440, %439 : vector<16x64xf32>
    %442 = arith.mulf %431, %441 : vector<16x64xf32>
    %cst_128 = arith.constant dense<0.000000e+00> : vector<16x32xf32>
    %443 = tpu.matmul %442, %295, %cst_128 {dimension_numbers = #tpu.dot_dimension_numbers<[1], [0], [0], [1], [0, 0, 1, 1], [], []>} : vector<16x64xf32>, vector<64x32xf32>, vector<16x32xf32> -> vector<16x32xf32>
    %444 = vector.broadcast %307 : vector<1x32xf32> to vector<16x32xf32>
    %445 = arith.addf %443, %444 : vector<16x32xf32>
    %446 = arith.addf %445, %426 : vector<16x32xf32>
    %cst_129 = arith.constant dense<0.000000e+00> : vector<16xf32>
    %447 = vector.multi_reduction <add>, %446, %cst_129 [1] : vector<16x32xf32> to vector<16xf32>
    %448 = vector.shape_cast %447 : vector<16xf32> to vector<16x1xf32>
    %cst_130 = arith.constant 3.200000e+01 : f32
    %449 = vector.broadcast %cst_130 : f32 to vector<16x1xf32>
    %450 = arith.divf %448, %449 : vector<16x1xf32>
    %451 = vector.broadcast %450 : vector<16x1xf32> to vector<16x32xf32>
    %452 = arith.subf %446, %451 : vector<16x32xf32>
    %453 = vector.broadcast %450 : vector<16x1xf32> to vector<16x32xf32>
    %454 = arith.subf %446, %453 : vector<16x32xf32>
    %455 = arith.mulf %452, %454 : vector<16x32xf32>
    %cst_131 = arith.constant dense<0.000000e+00> : vector<16xf32>
    %456 = vector.multi_reduction <add>, %455, %cst_131 [1] : vector<16x32xf32> to vector<16xf32>
    %457 = vector.shape_cast %456 : vector<16xf32> to vector<16x1xf32>
    %cst_132 = arith.constant 3.200000e+01 : f32
    %458 = vector.broadcast %cst_132 : f32 to vector<16x1xf32>
    %459 = arith.divf %457, %458 : vector<16x1xf32>
    %460 = vector.broadcast %450 : vector<16x1xf32> to vector<16x32xf32>
    %461 = arith.subf %446, %460 : vector<16x32xf32>
    %cst_133 = arith.constant 9.99999996E-13 : f32
    %462 = vector.broadcast %cst_133 : f32 to vector<16x1xf32>
    %463 = arith.addf %459, %462 : vector<16x1xf32>
    %464 = math.rsqrt %463 : vector<16x1xf32>
    %465 = vector.broadcast %464 : vector<16x1xf32> to vector<16x32xf32>
    %466 = arith.mulf %461, %465 : vector<16x32xf32>
    %467 = vector.broadcast %309 : vector<1x32xf32> to vector<16x32xf32>
    %468 = arith.mulf %466, %467 : vector<16x32xf32>
    %469 = vector.broadcast %311 : vector<1x32xf32> to vector<16x32xf32>
    %470 = arith.addf %468, %469 : vector<16x32xf32>
    %cst_134 = arith.constant dense<0.000000e+00> : vector<16x32xf32>
    %471 = tpu.matmul %470, %9, %cst_134 {dimension_numbers = #tpu.dot_dimension_numbers<[1], [0], [0], [1], [0, 0, 1, 1], [], []>} : vector<16x32xf32>, vector<32x32xf32>, vector<16x32xf32> -> vector<16x32xf32>
    %472 = vector.broadcast %5 : vector<1x32xf32> to vector<16x32xf32>
    %473 = arith.addf %471, %472 : vector<16x32xf32>
    %cst_135 = arith.constant 0.000000e+00 : f32
    %474 = vector.broadcast %cst_135 : f32 to vector<16x32xf32>
    %475 = arith.maximumf %473, %474 : vector<16x32xf32>
    %cst_136 = arith.constant dense<0.000000e+00> : vector<16x128xf32>
    %476 = tpu.matmul %475, %8, %cst_136 {dimension_numbers = #tpu.dot_dimension_numbers<[1], [0], [0], [1], [0, 0, 1, 1], [], []>} : vector<16x32xf32>, vector<32x128xf32>, vector<16x128xf32> -> vector<16x128xf32>
    %477 = vector.broadcast %6 : vector<1x128xf32> to vector<16x128xf32>
    %478 = arith.addf %476, %477 : vector<16x128xf32>
    %479 = vector.extract_strided_slice %478 {offsets = [0, 0], sizes = [1, 128], strides = [1, 1]} : vector<16x128xf32> to vector<1x128xf32>
    %c0_137 = arith.constant 0 : index
    %c0_138 = arith.constant 0 : index
    %480 = vector.load %arg8[%c0_137, %c0_138] : memref<2x128xf32, #tpu.memory_space<vmem>>, vector<1x128xf32>
    tpu.vector_store %arg8[%c0_137, %c0_138], %479 {strides = array<i32>} : memref<2x128xf32, #tpu.memory_space<vmem>>, vector<1x128xf32>,
    %481 = vector.extract_strided_slice %478 {offsets = [8, 0], sizes = [1, 128], strides = [1, 1]} : vector<16x128xf32> to vector<1x128xf32>
    %c1_139 = arith.constant 1 : index
    %c0_140 = arith.constant 0 : index
    %482 = vector.load %arg8[%c1_139, %c0_140] : memref<2x128xf32, #tpu.memory_space<vmem>>, vector<1x128xf32>
    tpu.vector_store %arg8[%c1_139, %c0_140], %481 {strides = array<i32>} : memref<2x128xf32, #tpu.memory_space<vmem>>, vector<1x128xf32>,
    return
  }
}

</mosaic_0001>

<llo_original>
// kernel: forward.1
$region0: #{forward.1}
  #allocation0 [shape = 'u32[]', space=smem, size = 0x4, offset = 0x4, fixed_abs, tag = 'smem constant byte address 0x4 - core index']
  #allocation1 [shape = 'u32[144,128]{1,0:T(1,128)}', space=vmem, size = 0x12000, scoped, tag = 'internal scratch']
  %s0 = inlined_call_operand.vmem [shape: s32[16,1], index: 0, kind: input, shape index: {}]
  %s1 = inlined_call_operand.vmem [shape: f32[1,16], index: 1, kind: input, shape index: {}]
  %s2 = inlined_call_operand.vmem [shape: f32[128,32], index: 2, kind: input, shape index: {}]
  %s3 = inlined_call_operand.vmem [shape: f32[16,32], index: 3, kind: input, shape index: {}]
  %s4 = inlined_call_operand.vmem [shape: f32[64,192], index: 4, kind: input, shape index: {}]
  %s5 = inlined_call_operand.vmem [shape: f32[128,32], index: 5, kind: input, shape index: {}]
  %s6 = inlined_call_operand.vmem [shape: f32[20,128], index: 6, kind: input, shape index: {}]
  %s7 = inlined_call_operand.vmem [shape: f32[32,160], index: 7, kind: input, shape index: {}]
  %s8 = inlined_call_operand.hbm [shape: f32[2,128], index: 8, kind: output, shape index: {}]
  %s9 = sld [smem:[#allocation0]]
  $region42: #{forward.1} parent=0
    _
  %s11 = ssub.s32 1, %s9
  %s12 = scalar_select 0, %s11, %s9
  $region1: #{forward.1} parent=0
    #allocation2 [shape = 'u8[1024]{0}', space=vmem, size = 0x400, scoped, tag = 'output window, operand 0, single buffered']
    #allocation3 [shape = 's32[1]{0}', space=sflag, size = 0x4, scoped, tag = 'scoped memory for forward.1']
    %13 = vsyncpa [#allocation3], 0
    // Predicated region
    $region2: #{forward.1} parent=1 // pred_check
      _
    $region3: #{forward.1} parent=1 // pred_check_branch
      %15 = sbr.rel (0) target = $region5
    $region4: #{forward.1} parent=1 // pred_region
      _
    $region5: #{forward.1} parent=1 // pred_fallthru
      _
    // Predicated region
    $region6: #{forward.1} parent=1 // pred_check
      _
    $region7: #{forward.1} parent=1 // pred_check_branch
      %17 = sbr.rel (0) target = $region9
    $region8: #{forward.1} parent=1 // pred_region
      _
    $region9: #{forward.1} parent=1 // pred_fallthru
      _
    // Predicated region
    $region10: #{forward.1} parent=1 // pred_check
      _
    $region11: #{forward.1} parent=1 // pred_check_branch
      %19 = sbr.rel (0) target = $region13
    $region12: #{forward.1} parent=1 // pred_region
      _
    $region13: #{forward.1} parent=1 // pred_fallthru
      _
    // Predicated region
    $region14: #{forward.1} parent=1 // pred_check
      _
    $region15: #{forward.1} parent=1 // pred_check_branch
      %21 = sbr.rel (0) target = $region17
    $region16: #{forward.1} parent=1 // pred_region
      _
    $region17: #{forward.1} parent=1 // pred_fallthru
      _
    // Predicated region
    $region18: #{forward.1} parent=1 // pred_check
      _
    $region19: #{forward.1} parent=1 // pred_check_branch
      %23 = sbr.rel (0) target = $region21
    $region20: #{forward.1} parent=1 // pred_region
      _
    $region21: #{forward.1} parent=1 // pred_fallthru
      _
    // Predicated region
    $region22: #{forward.1} parent=1 // pred_check
      _
    $region23: #{forward.1} parent=1 // pred_check_branch
      %25 = sbr.rel (0) target = $region25
    $region24: #{forward.1} parent=1 // pred_region
      _
    $region25: #{forward.1} parent=1 // pred_fallthru
      _
    // Predicated region
    $region26: #{forward.1} parent=1 // pred_check
      _
    $region27: #{forward.1} parent=1 // pred_check_branch
      %27 = sbr.rel (0) target = $region29
    $region28: #{forward.1} parent=1 // pred_region
      _
    $region29: #{forward.1} parent=1 // pred_fallthru
      _
    // Predicated region
    $region30: #{forward.1} parent=1 // pred_check
      _
    $region31: #{forward.1} parent=1 // pred_check_branch
      %29 = sbr.rel (0) target = $region33
    $region32: #{forward.1} parent=1 // pred_region
      _
    $region33: #{forward.1} parent=1 // pred_fallthru
      _
    %v30 = vld [vmem:[%s6] sm:$0x1]
    %v31 = vld [vmem:[%s6 + $0x1] sm:$0x1]
    %v32 = vld [vmem:[%s6 + $0x2] sm:$0x1]
    %v33 = vld [vmem:[%s6 + $0x3] sm:$0x1]
    %v34 = vld [vmem:[%s7] sm:$0xff]
    %v35 = vld [vmem:[%s7 + $0x8] sm:$0xff]
    %v36 = vld [vmem:[%s7 + $0x10] sm:$0xff]
    %v37 = vld [vmem:[%s7 + $0x18] sm:$0xff]
    %v38 = vld [vmem:[%s7 + $0x20] sm:$0xff]
    %v39 = vld [vmem:[%s7 + $0x28] sm:$0xff]
    %v40 = vld [vmem:[%s7 + $0x30] sm:$0xff]
    %v41 = vld [vmem:[%s7 + $0x38] sm:$0xff]
    %v42 = vlaneseq
    %v43 = vand.u32 %v42, 127
    %vm44 = vcmp.ge.s32.totalorder %v43, 0
    %vm45 = vcmp.lt.s32.totalorder %v43, 8
    %vm46 = vmand %vm44, %vm45
    %v47 = vsel %vm46, 1, 0
    %v48 = vcvt.s32.f32 %v47
    %vm49 = vcmp.ge.s32.totalorder %v43, 8
    %vm50 = vcmp.lt.s32.totalorder %v43, 16
    %vm51 = vmand %vm49, %vm50
    %v52 = vsel %vm51, 1, 0
    %v53 = vcvt.s32.f32 %v52
    %vm54 = vcmp.ge.s32.totalorder %v43, 16
    %vm55 = vcmp.lt.s32.totalorder %v43, 24
    %vm56 = vmand %vm54, %vm55
    %v57 = vsel %vm56, 1, 0
    %v58 = vcvt.s32.f32 %v57
    %vm59 = vcmp.ge.s32.totalorder %v43, 24
    %vm60 = vcmp.lt.s32.totalorder %v43, 32
    %vm61 = vmand %vm59, %vm60
    %v62 = vsel %vm61, 1, 0
    %v63 = vcvt.s32.f32 %v62
    %v64 = vld [vmem:[%s0] sm:$0xff]
    %v65 = vld [vmem:[%s0 + $0x8] sm:$0xff]
    %66 = vset.pattern.permute.xlu0 0
    %67 = vperm.xlu0 %66, %v64
    %v68 = vpop.permute.xlu0 %67
    %69 = vset.pattern.permute.xlu0 0
    %70 = vperm.xlu0 %69, %v65
    %v71 = vpop.permute.xlu0 %70
    %vm72 = vcmp.eq.s32.totalorder %v43, %v68
    %vm73 = vcmp.eq.s32.totalorder %v43, %v71
    %v74 = vsel %vm72, 1, 0
    %v75 = vsel %vm73, 1, 0
    %v76 = vcvt.s32.f32 %v74
    %v77 = vcvt.s32.f32 %v75
    %v78 = vld [vmem:[%s2] sm:$0xff]
    %v79 = vld [vmem:[%s2 + $0x8] sm:$0xff]
    %v80 = vld [vmem:[%s2 + $0x10] sm:$0xff]
    %v81 = vld [vmem:[%s2 + $0x18] sm:$0xff]
    %v82 = vld [vmem:[%s2 + $0x20] sm:$0xff]
    %v83 = vld [vmem:[%s2 + $0x28] sm:$0xff]
    %v84 = vld [vmem:[%s2 + $0x30] sm:$0xff]
    %v85 = vld [vmem:[%s2 + $0x38] sm:$0xff]
    %v86 = vld [vmem:[%s2 + $0x40] sm:$0xff]
    %v87 = vld [vmem:[%s2 + $0x48] sm:$0xff]
    %v88 = vld [vmem:[%s2 + $0x50] sm:$0xff]
    %v89 = vld [vmem:[%s2 + $0x58] sm:$0xff]
    %v90 = vld [vmem:[%s2 + $0x60] sm:$0xff]
    %v91 = vld [vmem:[%s2 + $0x68] sm:$0xff]
    %v92 = vld [vmem:[%s2 + $0x70] sm:$0xff]
    %v93 = vld [vmem:[%s2 + $0x78] sm:$0xff]
    %v94 = vld [vmem:[%s3] sm:$0xff]
    %95 = vmatprep.subr.mxu0 0.0
    %96 = vmatpush1.msra.mxu0 %v93
    %97 = vmatprep.subr.mxu0 0.0
    %98 = vmatpush1.msra.mxu0 %v92
    %99 = vmatprep.subr.mxu0 0.0
    %100 = vmatpush1.msra.mxu0 %v91
    %101 = vmatprep.subr.mxu0 0.0
    %102 = vmatpush1.msra.mxu0 %v90
    %103 = vmatprep.subr.mxu0 0.0
    %104 = vmatpush1.msra.mxu0 %v89
    %105 = vmatprep.subr.mxu0 0.0
    %106 = vmatpush1.msra.mxu0 %v88
    %107 = vmatprep.subr.mxu0 0.0
    %108 = vmatpush1.msra.mxu0 %v87
    %109 = vmatprep.subr.mxu0 0.0
    %110 = vmatpush1.msra.mxu0 %v86
    %111 = vmatprep.subr.mxu0 0.0
    %112 = vmatpush1.msra.mxu0 %v85
    %113 = vmatprep.subr.mxu0 0.0
    %114 = vmatpush1.msra.mxu0 %v84
    %115 = vmatprep.subr.mxu0 0.0
    %116 = vmatpush1.msra.mxu0 %v83
    %117 = vmatprep.subr.mxu0 0.0
    %118 = vmatpush1.msra.mxu0 %v82
    %119 = vmatprep.subr.mxu0 0.0
    %120 = vmatpush1.msra.mxu0 %v81
    %121 = vmatprep.subr.mxu0 0.0
    %122 = vmatpush1.msra.mxu0 %v80
    %123 = vmatprep.subr.mxu0 0.0
    %124 = vmatpush1.msra.mxu0 %v79
    %125 = vmatprep.subr.mxu0 0.0
    %126 = vmatpush1.msra.mxu0 %v78
    %127 = vmatprep.subr.mxu0 0.0
    %128 = vmatpush2.msra.mxu0 0.0
    %129 = vmatprep.subr.mxu0 0.0
    %130 = vmatpush2.msra.mxu0 0.0
    %131 = vmatprep.subr.mxu0 0.0
    %132 = vmatpush2.msra.mxu0 0.0
    %133 = vmatprep.subr.mxu0 0.0
    %134 = vmatpush2.msra.mxu0 0.0
    %135 = vmatprep.subr.mxu0 0.0
    %136 = vmatpush2.msra.mxu0 0.0
    %137 = vmatprep.subr.mxu0 0.0
    %138 = vmatpush2.msra.mxu0 0.0
    %139 = vmatprep.subr.mxu0 0.0
    %140 = vmatpush2.msra.mxu0 0.0
    %141 = vmatprep.subr.mxu0 0.0
    %142 = vmatpush2.msra.mxu0 0.0
    %143 = vmatprep.subr.mxu0 0.0
    %144 = vmatpush2.msra.mxu0 0.0
    %145 = vmatprep.subr.mxu0 0.0
    %146 = vmatpush2.msra.mxu0 0.0
    %147 = vmatprep.subr.mxu0 0.0
    %148 = vmatpush2.msra.mxu0 0.0
    %149 = vmatprep.subr.mxu0 0.0
    %150 = vmatpush2.msra.mxu0 0.0
    %151 = vmatprep.subr.mxu0 0.0
    %152 = vmatpush2.msra.mxu0 0.0
    %153 = vmatprep.subr.mxu0 0.0
    %154 = vmatpush2.msra.mxu0 0.0
    %155 = vmatprep.subr.mxu0 0.0
    %156 = vmatpush2.msra.mxu0 0.0
    %157 = vmatprep.subr.mxu0 0.0
    %158 = vmatpush2.msra.mxu0 0.0
    %159 = vmatprep.mubr.f32.mxu0 0.0
    %160 = vmatmul.mubr.f32.gmra.mxu0 %v76
    %v161 = vpop.f32.mrf.mxu0
    %v162 = vadd.f32 %v94, %v161
    %v163 = vpop.f32.mrf.mxu0
    %164 = vmatprep.mubr.f32.mxu0 0.0
    %165 = vmatmul.mubr.f32.gmra.mxu0 %v77
    %v166 = vpop.f32.mrf.mxu0
    %v167 = vadd.f32 %v94, %v166
    %v168 = vpop.f32.mrf.mxu0
    %169 = vdwg.mxu0
    %vm170 = vcmask 261120
    %v171 = vsel %vm170, %v162, 0.0
    %172 = vadd.xlane.f32.xlu0 %v171
    %v173 = vpop.xlane.xlu0 %172
    %v174 = vsel %vm170, %v167, 0.0
    %175 = vadd.xlane.f32.xlu0 %v174
    %v176 = vpop.xlane.xlu0 %175
    %v177 = vrcp.pop 32.0
    %v178 = vmul.f32 %v173, %v177
    %v179 = vmul.f32 %v176, %v177
    %v180 = vsub.f32 %v162, %v178
    %v181 = vsub.f32 %v167, %v179
    %v182 = vmul.f32 %v180, %v180
    %v183 = vmul.f32 %v181, %v181
    %v184 = vsel %vm170, %v182, 0.0
    %185 = vadd.xlane.f32.xlu0 %v184
    %v186 = vpop.xlane.xlu0 %185
    %v187 = vsel %vm170, %v183, 0.0
    %188 = vadd.xlane.f32.xlu0 %v187
    %v189 = vpop.xlane.xlu0 %188
    %v190 = vmul.f32 %v186, %v177
    %v191 = vmul.f32 %v189, %v177
    %v192 = vadd.f32 %v190, 1e-12
    %v193 = vadd.f32 %v191, 1e-12
    %v194 = vrsqrt.pop %v192
    %v195 = vrsqrt.pop %v193
    %v196 = vmul.f32 %v180, %v194
    %v197 = vmul.f32 %v181, %v195
    %v198 = vlaneseq
    %v199 = vshrl.u32 %v198, 7
    %v200 = vsub.s32 0, %v199
    %v201 = vrot.slane %v30, %v200
    %v202 = vmul.f32 %v196, %v201
    %v203 = vmul.f32 %v197, %v201
    %v204 = vlaneseq
    %v205 = vshrl.u32 %v204, 7
    %v206 = vsub.s32 0, %v205
    %v207 = vrot.slane %v31, %v206
    %v208 = vadd.f32 %v202, %v207
    %v209 = vadd.f32 %v203, %v207
    %v210 = vld [vmem:[%s1] sm:$0x1]
    %v211 = vsub.f32 1.0, %v210
    %v212 = vmul.f32 %v211, -10000.0
    %v213 = vlaneseq
    %v214 = vshrl.u32 %v213, 7
    %v215 = vadd.s32 %v214, 8
    %vm216 = vcmp.ge.s32.totalorder %v214, 0
    %vm217 = vcmp.ge.s32.totalorder %v215, 0
    %vm218 = vcmp.lt.s32.totalorder %v214, 8
    %vm219 = vcmp.lt.s32.totalorder %v215, 8
    %vm220 = vmand %vm216, %vm218
    %vm221 = vmand %vm217, %vm219
    %vm222 = vmand %vm220, %vm46
    %vm223 = vmand %vm221, %vm46
    %vm224 = vcmp.ge.s32.totalorder %v214, 8
    %vm225 = vcmp.ge.s32.totalorder %v215, 8
    %vm226 = vcmp.lt.s32.totalorder %v214, 16
    %vm227 = vcmp.lt.s32.totalorder %v215, 16
    %vm228 = vmand %vm224, %vm226
    %vm229 = vmand %vm225, %vm227
    %vm230 = vmand %vm228, %vm51
    %vm231 = vmand %vm229, %vm51
    %vm232 = vmor %vm222, %vm230
    %vm233 = vmor %vm223, %vm231
    %v234 = vsel %vm232, 0.0, -1e+09
    %v235 = vsel %vm233, 0.0, -1e+09
    %v237 = vlaneseq
    %v238 = vshrl.u32 %v237, 7
    %v239 = vsub.s32 0, %v238
    %v240 = vrot.slane %v212, %v239
    %v242 = vadd.f32 %v240, %v234
    %v243 = vadd.f32 %v240, %v235
    %v244 = vld [vmem:[%s4] sm:$0xff]
    %v245 = vld [vmem:[%s4 + $0x8] sm:$0xff]
    %v246 = vld [vmem:[%s4 + $0x10] sm:$0xff]
    %v247 = vld [vmem:[%s4 + $0x18] sm:$0xff]
    %v248 = vld [vmem:[%s4 + $0x20] sm:$0xff]
    %v249 = vld [vmem:[%s4 + $0x28] sm:$0xff]
    %v250 = vld [vmem:[%s4 + $0x30] sm:$0xff]
    %v251 = vld [vmem:[%s4 + $0x38] sm:$0xff]
    %v252 = vld [vmem:[%s5] sm:$0xff]
    %v253 = vld [vmem:[%s5 + $0x8] sm:$0xff]
    %v254 = vld [vmem:[%s5 + $0x10] sm:$0xff]
    %v255 = vld [vmem:[%s5 + $0x18] sm:$0xff]
    %v256 = vld [vmem:[%s5 + $0x20] sm:$0xff]
    %v257 = vld [vmem:[%s5 + $0x28] sm:$0xff]
    %v258 = vld [vmem:[%s5 + $0x30] sm:$0xff]
    %v259 = vld [vmem:[%s5 + $0x38] sm:$0xff]
    %v260 = vld [vmem:[%s6 + $0x4] sm:$0x1]
    %v261 = vld [vmem:[%s6 + $0x5] sm:$0x1]
    %v262 = vld [vmem:[%s6 + $0x6] sm:$0x1]
    %v263 = vld [vmem:[%s6 + $0x7] sm:$0x1]
    %v264 = vld [vmem:[%s6 + $0x8] sm:$0x1]
    %v265 = vld [vmem:[%s6 + $0x9] sm:$0x1]
    %v266 = vld [vmem:[%s6 + $0xa] sm:$0x1]
    %v267 = vld [vmem:[%s6 + $0xb] sm:$0x1]
    %v268 = vlaneseq
    %v269 = vshrl.u32 %v268, 7
    %v270 = vsub.s32 0, %v269
    %v271 = vrot.slane %v260, %v270
    %v273 = vsel %vm170, %v208, 0
    %v276 = vsel %vm170, %v209, 0
    %278 = vmatprep.subr.mxu0 0.0
    %279 = vmatpush1.msra.mxu0 0.0
    %280 = vmatprep.subr.mxu0 0.0
    %281 = vmatpush1.msra.mxu0 0.0
    %282 = vmatprep.subr.mxu0 0.0
    %283 = vmatpush1.msra.mxu0 0.0
    %284 = vmatprep.subr.mxu0 0.0
    %285 = vmatpush1.msra.mxu0 0.0
    %286 = vmatprep.subr.mxu0 0.0
    %287 = vmatpush1.msra.mxu0 0.0
    %288 = vmatprep.subr.mxu0 0.0
    %289 = vmatpush1.msra.mxu0 0.0
    %290 = vmatprep.subr.mxu0 0.0
    %291 = vmatpush1.msra.mxu0 0.0
    %292 = vmatprep.subr.mxu0 0.0
    %293 = vmatpush1.msra.mxu0 0.0
    %294 = vmatprep.subr.mxu0 0.0
    %295 = vmatpush1.msra.mxu0 0.0
    %296 = vmatprep.subr.mxu0 0.0
    %297 = vmatpush1.msra.mxu0 0.0
    %298 = vmatprep.subr.mxu0 0.0
    %299 = vmatpush1.msra.mxu0 0.0
    %300 = vmatprep.subr.mxu0 0.0
    %301 = vmatpush1.msra.mxu0 0.0
    %302 = vmatprep.subr.mxu0 0.0
    %303 = vmatpush1.msra.mxu0 %v250
    %304 = vmatprep.subr.mxu0 0.0
    %305 = vmatpush1.msra.mxu0 %v248
    %306 = vmatprep.subr.mxu0 0.0
    %307 = vmatpush1.msra.mxu0 %v246
    %308 = vmatprep.subr.mxu0 0.0
    %309 = vmatpush1.msra.mxu0 %v244
    %310 = vmatprep.subr.mxu0 0.0
    %311 = vmatpush2.msra.mxu0 0.0
    %312 = vmatprep.subr.mxu0 0.0
    %313 = vmatpush2.msra.mxu0 0.0
    %314 = vmatprep.subr.mxu0 0.0
    %315 = vmatpush2.msra.mxu0 0.0
    %316 = vmatprep.subr.mxu0 0.0
    %317 = vmatpush2.msra.mxu0 0.0
    %318 = vmatprep.subr.mxu0 0.0
    %319 = vmatpush2.msra.mxu0 0.0
    %320 = vmatprep.subr.mxu0 0.0
    %321 = vmatpush2.msra.mxu0 0.0
    %322 = vmatprep.subr.mxu0 0.0
    %323 = vmatpush2.msra.mxu0 0.0
    %324 = vmatprep.subr.mxu0 0.0
    %325 = vmatpush2.msra.mxu0 0.0
    %326 = vmatprep.subr.mxu0 0.0
    %327 = vmatpush2.msra.mxu0 0.0
    %328 = vmatprep.subr.mxu0 0.0
    %329 = vmatpush2.msra.mxu0 0.0
    %330 = vmatprep.subr.mxu0 0.0
    %331 = vmatpush2.msra.mxu0 0.0
    %332 = vmatprep.subr.mxu0 0.0
    %333 = vmatpush2.msra.mxu0 0.0
    %334 = vmatprep.subr.mxu0 0.0
    %335 = vmatpush2.msra.mxu0 0.0
    %336 = vmatprep.subr.mxu0 0.0
    %337 = vmatpush2.msra.mxu0 0.0
    %338 = vmatprep.subr.mxu0 0.0
    %339 = vmatpush2.msra.mxu0 0.0
    %340 = vmatprep.subr.mxu0 0.0
    %341 = vmatpush2.msra.mxu0 0.0
    %342 = vmatprep.mubr.f32.mxu0 0.0
    %343 = vmatmul.mubr.f32.gmra.mxu0 %v273
    %v344 = vpop.f32.mrf.mxu0
    %v345 = vadd.f32 %v271, %v344
    %v346 = vpop.f32.mrf.mxu0
    %347 = vmatprep.mubr.f32.mxu0 0.0
    %348 = vmatmul.mubr.f32.gmra.mxu0 %v276
    %v349 = vpop.f32.mrf.mxu0
    %v350 = vadd.f32 %v271, %v349
    %v351 = vpop.f32.mrf.mxu0
    %352 = vdwg.mxu0
    %v353 = vmul.f32 %v345, %v48
    %v354 = vmul.f32 %v350, %v48
    %357 = vrot.lane.b32.xlu0 %v345, 96
    %v358 = vpop.permute.xlu0 %357
    %359 = vrot.lane.b32.xlu0 %v350, 96
    %v360 = vpop.permute.xlu0 %359
    %v362 = vsel %vm170, %v353, 0
    %v365 = vsel %vm170, %v354, 0
    %v367 = vsel %vm170, %v358, 0
    %v369 = vsel %vm170, %v360, 0
    %371 = vmatprep.subr.mxu0 0.0
    %372 = vmatpush1.xpose.msra.mxu0 0.0
    %373 = vmatprep.subr.mxu0 0.0
    %374 = vmatpush1.xpose.msra.mxu0 0.0
    %375 = vmatprep.subr.mxu0 0.0
    %376 = vmatpush1.xpose.msra.mxu0 0.0
    %377 = vmatprep.subr.mxu0 0.0
    %378 = vmatpush1.xpose.msra.mxu0 0.0
    %379 = vmatprep.subr.mxu0 0.0
    %380 = vmatpush1.xpose.msra.mxu0 0.0
    %381 = vmatprep.subr.mxu0 0.0
    %382 = vmatpush1.xpose.msra.mxu0 0.0
    %383 = vmatprep.subr.mxu0 0.0
    %384 = vmatpush1.xpose.msra.mxu0 0.0
    %385 = vmatprep.subr.mxu0 0.0
    %386 = vmatpush1.xpose.msra.mxu0 0.0
    %387 = vmatprep.subr.mxu0 0.0
    %388 = vmatpush1.xpose.msra.mxu0 0.0
    %389 = vmatprep.subr.mxu0 0.0
    %390 = vmatpush1.xpose.msra.mxu0 0.0
    %391 = vmatprep.subr.mxu0 0.0
    %392 = vmatpush1.xpose.msra.mxu0 0.0
    %393 = vmatprep.subr.mxu0 0.0
    %394 = vmatpush1.xpose.msra.mxu0 0.0
    %395 = vmatprep.subr.mxu0 0.0
    %396 = vmatpush1.xpose.msra.mxu0 0.0
    %397 = vmatprep.subr.mxu0 0.0
    %398 = vmatpush1.xpose.msra.mxu0 0.0
    %399 = vmatprep.subr.mxu0 0.0
    %400 = vmatpush1.xpose.msra.mxu0 %v369
    %401 = vmatprep.subr.mxu0 0.0
    %402 = vmatpush1.xpose.msra.mxu0 %v367
    %403 = vmatprep.subr.mxu0 0.0
    %404 = vmatpush2.xpose.msra.mxu0 0.0
    %405 = vmatprep.subr.mxu0 0.0
    %406 = vmatpush2.xpose.msra.mxu0 0.0
    %407 = vmatprep.subr.mxu0 0.0
    %408 = vmatpush2.xpose.msra.mxu0 0.0
    %409 = vmatprep.subr.mxu0 0.0
    %410 = vmatpush2.xpose.msra.mxu0 0.0
    %411 = vmatprep.subr.mxu0 0.0
    %412 = vmatpush2.xpose.msra.mxu0 0.0
    %413 = vmatprep.subr.mxu0 0.0
    %414 = vmatpush2.xpose.msra.mxu0 0.0
    %415 = vmatprep.subr.mxu0 0.0
    %416 = vmatpush2.xpose.msra.mxu0 0.0
    %417 = vmatprep.subr.mxu0 0.0
    %418 = vmatpush2.xpose.msra.mxu0 0.0
    %419 = vmatprep.subr.mxu0 0.0
    %420 = vmatpush2.xpose.msra.mxu0 0.0
    %421 = vmatprep.subr.mxu0 0.0
    %422 = vmatpush2.xpose.msra.mxu0 0.0
    %423 = vmatprep.subr.mxu0 0.0
    %424 = vmatpush2.xpose.msra.mxu0 0.0
    %425 = vmatprep.subr.mxu0 0.0
    %426 = vmatpush2.xpose.msra.mxu0 0.0
    %427 = vmatprep.subr.mxu0 0.0
    %428 = vmatpush2.xpose.msra.mxu0 0.0
    %429 = vmatprep.subr.mxu0 0.0
    %430 = vmatpush2.xpose.msra.mxu0 0.0
    %431 = vmatprep.subr.mxu0 0.0
    %432 = vmatpush2.xpose.msra.mxu0 0.0
    %433 = vmatprep.subr.mxu0 0.0
    %434 = vmatpush2.xpose.msra.mxu0 0.0
    %435 = vmatprep.mubr.f32.mxu0 0.0
    %436 = vmatmul.mubr.f32.gmra.mxu0 %v362
    %v437 = vpop.f32.mrf.mxu0
    %v438 = vadd.f32 0.0, %v437
    %v439 = vpop.f32.mrf.mxu0
    %440 = vmatprep.mubr.f32.mxu0 0.0
    %441 = vmatmul.mubr.f32.gmra.mxu0 %v365
    %v442 = vpop.f32.mrf.mxu0
    %v443 = vadd.f32 0.0, %v442
    %v444 = vpop.f32.mrf.mxu0
    %445 = vdwg.mxu0
    %v446 = vmul.f32 %v438, 0.35355338
    %v447 = vmul.f32 %v443, 0.35355338
    %v448 = vadd.f32 %v446, %v242
    %v449 = vadd.f32 %v447, %v243
    %vm450 = vcmask 130048
    %v451 = vsel %vm450, %v448, -inf
    %452 = vmax.xlane.f32.xlu0 %v451
    %v453 = vpop.xlane.xlu0 %452
    %v454 = vsel %vm450, %v449, -inf
    %455 = vmax.xlane.f32.xlu0 %v454
    %v456 = vpop.xlane.xlu0 %455
    %v457 = vsub.f32 %v448, %v453
    %v458 = vsub.f32 %v449, %v456
    %v459 = vmul.f32 %v457, 1.442695
    %v460 = vpow.pop %v459
    %v461 = vmul.f32 %v458, 1.442695
    %v462 = vpow.pop %v461
    %v463 = vsel %vm450, %v460, 0.0
    %464 = vadd.xlane.f32.xlu0 %v463
    %v465 = vpop.xlane.xlu0 %464
    %v466 = vsel %vm450, %v462, 0.0
    %467 = vadd.xlane.f32.xlu0 %v466
    %v468 = vpop.xlane.xlu0 %467
    %v469 = vrcp.pop %v465
    %v470 = vrcp.pop %v468
    %v471 = vmul.f32 %v460, %v469
    %v472 = vmul.f32 %v462, %v470
    %474 = vrot.lane.b32.xlu0 %v48, 64
    %v475 = vpop.permute.xlu0 %474
    %v477 = vmul.f32 %v345, %v475
    %v478 = vmul.f32 %v350, %v475
    %v479 = vmul.f32 %v345, %v53
    %v480 = vmul.f32 %v350, %v53
    %v482 = vsel %vm170, %v479, 0
    %v485 = vsel %vm170, %v480, 0
    %487 = vmatprep.subr.mxu0 0.0
    %488 = vmatpush1.xpose.msra.mxu0 0.0
    %489 = vmatprep.subr.mxu0 0.0
    %490 = vmatpush1.xpose.msra.mxu0 0.0
    %491 = vmatprep.subr.mxu0 0.0
    %492 = vmatpush1.xpose.msra.mxu0 0.0
    %493 = vmatprep.subr.mxu0 0.0
    %494 = vmatpush1.xpose.msra.mxu0 0.0
    %495 = vmatprep.subr.mxu0 0.0
    %496 = vmatpush1.xpose.msra.mxu0 0.0
    %497 = vmatprep.subr.mxu0 0.0
    %498 = vmatpush1.xpose.msra.mxu0 0.0
    %499 = vmatprep.subr.mxu0 0.0
    %500 = vmatpush1.xpose.msra.mxu0 0.0
    %501 = vmatprep.subr.mxu0 0.0
    %502 = vmatpush1.xpose.msra.mxu0 0.0
    %503 = vmatprep.subr.mxu0 0.0
    %504 = vmatpush1.xpose.msra.mxu0 0.0
    %505 = vmatprep.subr.mxu0 0.0
    %506 = vmatpush1.xpose.msra.mxu0 0.0
    %507 = vmatprep.subr.mxu0 0.0
    %508 = vmatpush1.xpose.msra.mxu0 0.0
    %509 = vmatprep.subr.mxu0 0.0
    %510 = vmatpush1.xpose.msra.mxu0 0.0
    %511 = vmatprep.subr.mxu0 0.0
    %512 = vmatpush1.xpose.msra.mxu0 0.0
    %513 = vmatprep.subr.mxu0 0.0
    %514 = vmatpush1.xpose.msra.mxu0 0.0
    %515 = vmatprep.subr.mxu0 0.0
    %516 = vmatpush1.xpose.msra.mxu0 %v369
    %517 = vmatprep.subr.mxu0 0.0
    %518 = vmatpush1.xpose.msra.mxu0 %v367
    %519 = vmatprep.subr.mxu0 0.0
    %520 = vmatpush2.xpose.msra.mxu0 0.0
    %521 = vmatprep.subr.mxu0 0.0
    %522 = vmatpush2.xpose.msra.mxu0 0.0
    %523 = vmatprep.subr.mxu0 0.0
    %524 = vmatpush2.xpose.msra.mxu0 0.0
    %525 = vmatprep.subr.mxu0 0.0
    %526 = vmatpush2.xpose.msra.mxu0 0.0
    %527 = vmatprep.subr.mxu0 0.0
    %528 = vmatpush2.xpose.msra.mxu0 0.0
    %529 = vmatprep.subr.mxu0 0.0
    %530 = vmatpush2.xpose.msra.mxu0 0.0
    %531 = vmatprep.subr.mxu0 0.0
    %532 = vmatpush2.xpose.msra.mxu0 0.0
    %533 = vmatprep.subr.mxu0 0.0
    %534 = vmatpush2.xpose.msra.mxu0 0.0
    %535 = vmatprep.subr.mxu0 0.0
    %536 = vmatpush2.xpose.msra.mxu0 0.0
    %537 = vmatprep.subr.mxu0 0.0
    %538 = vmatpush2.xpose.msra.mxu0 0.0
    %539 = vmatprep.subr.mxu0 0.0
    %540 = vmatpush2.xpose.msra.mxu0 0.0
    %541 = vmatprep.subr.mxu0 0.0
    %542 = vmatpush2.xpose.msra.mxu0 0.0
    %543 = vmatprep.subr.mxu0 0.0
    %544 = vmatpush2.xpose.msra.mxu0 0.0
    %545 = vmatprep.subr.mxu0 0.0
    %546 = vmatpush2.xpose.msra.mxu0 0.0
    %547 = vmatprep.subr.mxu0 0.0
    %548 = vmatpush2.xpose.msra.mxu0 0.0
    %549 = vmatprep.subr.mxu0 0.0
    %550 = vmatpush2.xpose.msra.mxu0 0.0
    %551 = vmatprep.mubr.f32.mxu0 0.0
    %552 = vmatmul.mubr.f32.gmra.mxu0 %v482
    %v553 = vpop.f32.mrf.mxu0
    %v554 = vadd.f32 0.0, %v553
    %v555 = vpop.f32.mrf.mxu0
    %556 = vmatprep.mubr.f32.mxu0 0.0
    %557 = vmatmul.mubr.f32.gmra.mxu0 %v485
    %v558 = vpop.f32.mrf.mxu0
    %v559 = vadd.f32 0.0, %v558
    %v560 = vpop.f32.mrf.mxu0
    %561 = vdwg.mxu0
    %v562 = vmul.f32 %v554, 0.35355338
    %v563 = vmul.f32 %v559, 0.35355338
    %v564 = vadd.f32 %v562, %v242
    %v565 = vadd.f32 %v563, %v243
    %v566 = vsel %vm450, %v564, -inf
    %567 = vmax.xlane.f32.xlu0 %v566
    %v568 = vpop.xlane.xlu0 %567
    %v569 = vsel %vm450, %v565, -inf
    %570 = vmax.xlane.f32.xlu0 %v569
    %v571 = vpop.xlane.xlu0 %570
    %v572 = vsub.f32 %v564, %v568
    %v573 = vsub.f32 %v565, %v571
    %v574 = vmul.f32 %v572, 1.442695
    %v575 = vpow.pop %v574
    %v576 = vmul.f32 %v573, 1.442695
    %v577 = vpow.pop %v576
    %v578 = vsel %vm450, %v575, 0.0
    %579 = vadd.xlane.f32.xlu0 %v578
    %v580 = vpop.xlane.xlu0 %579
    %v581 = vsel %vm450, %v577, 0.0
    %582 = vadd.xlane.f32.xlu0 %v581
    %v583 = vpop.xlane.xlu0 %582
    %v584 = vrcp.pop %v580
    %v585 = vrcp.pop %v583
    %v586 = vmul.f32 %v575, %v584
    %v587 = vmul.f32 %v577, %v585
    %589 = vrot.lane.b32.xlu0 %v53, 64
    %v590 = vpop.permute.xlu0 %589
    %v592 = vmul.f32 %v345, %v590
    %v593 = vmul.f32 %v350, %v590
    %596 = vrot.lane.b32.xlu0 %v592, 64
    %v597 = vpop.permute.xlu0 %596
    %598 = vrot.lane.b32.xlu0 %v593, 64
    %v599 = vpop.permute.xlu0 %598
    %v603 = vsel %vm450, %v586, 0
    %v606 = vsel %vm450, %v587, 0
    %608 = vmatprep.subr.mxu0 0.0
    %609 = vmatpush1.msra.mxu0 0.0
    %610 = vmatprep.subr.mxu0 0.0
    %611 = vmatpush1.msra.mxu0 0.0
    %612 = vmatprep.subr.mxu0 0.0
    %613 = vmatpush1.msra.mxu0 0.0
    %614 = vmatprep.subr.mxu0 0.0
    %615 = vmatpush1.msra.mxu0 0.0
    %616 = vmatprep.subr.mxu0 0.0
    %617 = vmatpush1.msra.mxu0 0.0
    %618 = vmatprep.subr.mxu0 0.0
    %619 = vmatpush1.msra.mxu0 0.0
    %620 = vmatprep.subr.mxu0 0.0
    %621 = vmatpush1.msra.mxu0 0.0
    %622 = vmatprep.subr.mxu0 0.0
    %623 = vmatpush1.msra.mxu0 0.0
    %624 = vmatprep.subr.mxu0 0.0
    %625 = vmatpush1.msra.mxu0 0.0
    %626 = vmatprep.subr.mxu0 0.0
    %627 = vmatpush1.msra.mxu0 0.0
    %628 = vmatprep.subr.mxu0 0.0
    %629 = vmatpush1.msra.mxu0 0.0
    %630 = vmatprep.subr.mxu0 0.0
    %631 = vmatpush1.msra.mxu0 0.0
    %632 = vmatprep.subr.mxu0 0.0
    %633 = vmatpush1.msra.mxu0 0.0
    %634 = vmatprep.subr.mxu0 0.0
    %635 = vmatpush1.msra.mxu0 0.0
    %636 = vmatprep.subr.mxu0 0.0
    %637 = vmatpush1.msra.mxu0 %v599
    %638 = vmatprep.subr.mxu0 0.0
    %639 = vmatpush1.msra.mxu0 %v597
    %640 = vmatprep.subr.mxu0 0.0
    %641 = vmatpush2.msra.mxu0 0.0
    %642 = vmatprep.subr.mxu0 0.0
    %643 = vmatpush2.msra.mxu0 0.0
    %644 = vmatprep.subr.mxu0 0.0
    %645 = vmatpush2.msra.mxu0 0.0
    %646 = vmatprep.subr.mxu0 0.0
    %647 = vmatpush2.msra.mxu0 0.0
    %648 = vmatprep.subr.mxu0 0.0
    %649 = vmatpush2.msra.mxu0 0.0
    %650 = vmatprep.subr.mxu0 0.0
    %651 = vmatpush2.msra.mxu0 0.0
    %652 = vmatprep.subr.mxu0 0.0
    %653 = vmatpush2.msra.mxu0 0.0
    %654 = vmatprep.subr.mxu0 0.0
    %655 = vmatpush2.msra.mxu0 0.0
    %656 = vmatprep.subr.mxu0 0.0
    %657 = vmatpush2.msra.mxu0 0.0
    %658 = vmatprep.subr.mxu0 0.0
    %659 = vmatpush2.msra.mxu0 0.0
    %660 = vmatprep.subr.mxu0 0.0
    %661 = vmatpush2.msra.mxu0 0.0
    %662 = vmatprep.subr.mxu0 0.0
    %663 = vmatpush2.msra.mxu0 0.0
    %664 = vmatprep.subr.mxu0 0.0
    %665 = vmatpush2.msra.mxu0 0.0
    %666 = vmatprep.subr.mxu0 0.0
    %667 = vmatpush2.msra.mxu0 0.0
    %668 = vmatprep.subr.mxu0 0.0
    %669 = vmatpush2.msra.mxu0 0.0
    %670 = vmatprep.subr.mxu0 0.0
    %671 = vmatpush2.msra.mxu0 0.0
    %672 = vmatprep.mubr.f32.mxu0 0.0
    %673 = vmatmul.mubr.f32.gmra.mxu0 %v603
    %v674 = vpop.f32.mrf.mxu0
    %v675 = vadd.f32 0.0, %v674
    %v676 = vpop.f32.mrf.mxu0
    %677 = vmatprep.mubr.f32.mxu0 0.0
    %678 = vmatmul.mubr.f32.gmra.mxu0 %v606
    %v679 = vpop.f32.mrf.mxu0
    %v680 = vadd.f32 0.0, %v679
    %v681 = vpop.f32.mrf.mxu0
    %682 = vdwg.mxu0
    %685 = vrot.lane.b32.xlu0 %v477, 64
    %v686 = vpop.permute.xlu0 %685
    %687 = vrot.lane.b32.xlu0 %v478, 64
    %v688 = vpop.permute.xlu0 %687
    %v692 = vsel %vm450, %v471, 0
    %v695 = vsel %vm450, %v472, 0
    %697 = vmatprep.subr.mxu0 0.0
    %698 = vmatpush1.msra.mxu0 0.0
    %699 = vmatprep.subr.mxu0 0.0
    %700 = vmatpush1.msra.mxu0 0.0
    %701 = vmatprep.subr.mxu0 0.0
    %702 = vmatpush1.msra.mxu0 0.0
    %703 = vmatprep.subr.mxu0 0.0
    %704 = vmatpush1.msra.mxu0 0.0
    %705 = vmatprep.subr.mxu0 0.0
    %706 = vmatpush1.msra.mxu0 0.0
    %707 = vmatprep.subr.mxu0 0.0
    %708 = vmatpush1.msra.mxu0 0.0
    %709 = vmatprep.subr.mxu0 0.0
    %710 = vmatpush1.msra.mxu0 0.0
    %711 = vmatprep.subr.mxu0 0.0
    %712 = vmatpush1.msra.mxu0 0.0
    %713 = vmatprep.subr.mxu0 0.0
    %714 = vmatpush1.msra.mxu0 0.0
    %715 = vmatprep.subr.mxu0 0.0
    %716 = vmatpush1.msra.mxu0 0.0
    %717 = vmatprep.subr.mxu0 0.0
    %718 = vmatpush1.msra.mxu0 0.0
    %719 = vmatprep.subr.mxu0 0.0
    %720 = vmatpush1.msra.mxu0 0.0
    %721 = vmatprep.subr.mxu0 0.0
    %722 = vmatpush1.msra.mxu0 0.0
    %723 = vmatprep.subr.mxu0 0.0
    %724 = vmatpush1.msra.mxu0 0.0
    %725 = vmatprep.subr.mxu0 0.0
    %726 = vmatpush1.msra.mxu0 %v688
    %727 = vmatprep.subr.mxu0 0.0
    %728 = vmatpush1.msra.mxu0 %v686
    %729 = vmatprep.subr.mxu0 0.0
    %730 = vmatpush2.msra.mxu0 0.0
    %731 = vmatprep.subr.mxu0 0.0
    %732 = vmatpush2.msra.mxu0 0.0
    %733 = vmatprep.subr.mxu0 0.0
    %734 = vmatpush2.msra.mxu0 0.0
    %735 = vmatprep.subr.mxu0 0.0
    %736 = vmatpush2.msra.mxu0 0.0
    %737 = vmatprep.subr.mxu0 0.0
    %738 = vmatpush2.msra.mxu0 0.0
    %739 = vmatprep.subr.mxu0 0.0
    %740 = vmatpush2.msra.mxu0 0.0
    %741 = vmatprep.subr.mxu0 0.0
    %742 = vmatpush2.msra.mxu0 0.0
    %743 = vmatprep.subr.mxu0 0.0
    %744 = vmatpush2.msra.mxu0 0.0
    %745 = vmatprep.subr.mxu0 0.0
    %746 = vmatpush2.msra.mxu0 0.0
    %747 = vmatprep.subr.mxu0 0.0
    %748 = vmatpush2.msra.mxu0 0.0
    %749 = vmatprep.subr.mxu0 0.0
    %750 = vmatpush2.msra.mxu0 0.0
    %751 = vmatprep.subr.mxu0 0.0
    %752 = vmatpush2.msra.mxu0 0.0
    %753 = vmatprep.subr.mxu0 0.0
    %754 = vmatpush2.msra.mxu0 0.0
    %755 = vmatprep.subr.mxu0 0.0
    %756 = vmatpush2.msra.mxu0 0.0
    %757 = vmatprep.subr.mxu0 0.0
    %758 = vmatpush2.msra.mxu0 0.0
    %759 = vmatprep.subr.mxu0 0.0
    %760 = vmatpush2.msra.mxu0 0.0
    %761 = vmatprep.mubr.f32.mxu0 0.0
    %762 = vmatmul.mubr.f32.gmra.mxu0 %v692
    %v763 = vpop.f32.mrf.mxu0
    %v764 = vadd.f32 %v675, %v763
    %v765 = vpop.f32.mrf.mxu0
    %766 = vmatprep.mubr.f32.mxu0 0.0
    %767 = vmatmul.mubr.f32.gmra.mxu0 %v695
    %v768 = vpop.f32.mrf.mxu0
    %v769 = vadd.f32 %v680, %v768
    %v770 = vpop.f32.mrf.mxu0
    %771 = vdwg.mxu0
    %v772 = vmul.f32 %v345, %v58
    %v773 = vmul.f32 %v350, %v58
    %v775 = vsel %vm170, %v772, 0
    %v778 = vsel %vm170, %v773, 0
    %780 = vmatprep.subr.mxu0 0.0
    %781 = vmatpush1.xpose.msra.mxu0 0.0
    %782 = vmatprep.subr.mxu0 0.0
    %783 = vmatpush1.xpose.msra.mxu0 0.0
    %784 = vmatprep.subr.mxu0 0.0
    %785 = vmatpush1.xpose.msra.mxu0 0.0
    %786 = vmatprep.subr.mxu0 0.0
    %787 = vmatpush1.xpose.msra.mxu0 0.0
    %788 = vmatprep.subr.mxu0 0.0
    %789 = vmatpush1.xpose.msra.mxu0 0.0
    %790 = vmatprep.subr.mxu0 0.0
    %791 = vmatpush1.xpose.msra.mxu0 0.0
    %792 = vmatprep.subr.mxu0 0.0
    %793 = vmatpush1.xpose.msra.mxu0 0.0
    %794 = vmatprep.subr.mxu0 0.0
    %795 = vmatpush1.xpose.msra.mxu0 0.0
    %796 = vmatprep.subr.mxu0 0.0
    %797 = vmatpush1.xpose.msra.mxu0 0.0
    %798 = vmatprep.subr.mxu0 0.0
    %799 = vmatpush1.xpose.msra.mxu0 0.0
    %800 = vmatprep.subr.mxu0 0.0
    %801 = vmatpush1.xpose.msra.mxu0 0.0
    %802 = vmatprep.subr.mxu0 0.0
    %803 = vmatpush1.xpose.msra.mxu0 0.0
    %804 = vmatprep.subr.mxu0 0.0
    %805 = vmatpush1.xpose.msra.mxu0 0.0
    %806 = vmatprep.subr.mxu0 0.0
    %807 = vmatpush1.xpose.msra.mxu0 0.0
    %808 = vmatprep.subr.mxu0 0.0
    %809 = vmatpush1.xpose.msra.mxu0 %v369
    %810 = vmatprep.subr.mxu0 0.0
    %811 = vmatpush1.xpose.msra.mxu0 %v367
    %812 = vmatprep.subr.mxu0 0.0
    %813 = vmatpush2.xpose.msra.mxu0 0.0
    %814 = vmatprep.subr.mxu0 0.0
    %815 = vmatpush2.xpose.msra.mxu0 0.0
    %816 = vmatprep.subr.mxu0 0.0
    %817 = vmatpush2.xpose.msra.mxu0 0.0
    %818 = vmatprep.subr.mxu0 0.0
    %819 = vmatpush2.xpose.msra.mxu0 0.0
    %820 = vmatprep.subr.mxu0 0.0
    %821 = vmatpush2.xpose.msra.mxu0 0.0
    %822 = vmatprep.subr.mxu0 0.0
    %823 = vmatpush2.xpose.msra.mxu0 0.0
    %824 = vmatprep.subr.mxu0 0.0
    %825 = vmatpush2.xpose.msra.mxu0 0.0
    %826 = vmatprep.subr.mxu0 0.0
    %827 = vmatpush2.xpose.msra.mxu0 0.0
    %828 = vmatprep.subr.mxu0 0.0
    %829 = vmatpush2.xpose.msra.mxu0 0.0
    %830 = vmatprep.subr.mxu0 0.0
    %831 = vmatpush2.xpose.msra.mxu0 0.0
    %832 = vmatprep.subr.mxu0 0.0
    %833 = vmatpush2.xpose.msra.mxu0 0.0
    %834 = vmatprep.subr.mxu0 0.0
    %835 = vmatpush2.xpose.msra.mxu0 0.0
    %836 = vmatprep.subr.mxu0 0.0
    %837 = vmatpush2.xpose.msra.mxu0 0.0
    %838 = vmatprep.subr.mxu0 0.0
    %839 = vmatpush2.xpose.msra.mxu0 0.0
    %840 = vmatprep.subr.mxu0 0.0
    %841 = vmatpush2.xpose.msra.mxu0 0.0
    %842 = vmatprep.subr.mxu0 0.0
    %843 = vmatpush2.xpose.msra.mxu0 0.0
    %844 = vmatprep.mubr.f32.mxu0 0.0
    %845 = vmatmul.mubr.f32.gmra.mxu0 %v775
    %v846 = vpop.f32.mrf.mxu0
    %v847 = vadd.f32 0.0, %v846
    %v848 = vpop.f32.mrf.mxu0
    %849 = vmatprep.mubr.f32.mxu0 0.0
    %850 = vmatmul.mubr.f32.gmra.mxu0 %v778
    %v851 = vpop.f32.mrf.mxu0
    %v852 = vadd.f32 0.0, %v851
    %v853 = vpop.f32.mrf.mxu0
    %854 = vdwg.mxu0
    %v855 = vmul.f32 %v847, 0.35355338
    %v856 = vmul.f32 %v852, 0.35355338
    %v857 = vadd.f32 %v855, %v242
    %v858 = vadd.f32 %v856, %v243
    %v859 = vsel %vm450, %v857, -inf
    %860 = vmax.xlane.f32.xlu0 %v859
    %v861 = vpop.xlane.xlu0 %860
    %v862 = vsel %vm450, %v858, -inf
    %863 = vmax.xlane.f32.xlu0 %v862
    %v864 = vpop.xlane.xlu0 %863
    %v865 = vsub.f32 %v857, %v861
    %v866 = vsub.f32 %v858, %v864
    %v867 = vmul.f32 %v865, 1.442695
    %v868 = vpow.pop %v867
    %v869 = vmul.f32 %v866, 1.442695
    %v870 = vpow.pop %v869
    %v871 = vsel %vm450, %v868, 0.0
    %872 = vadd.xlane.f32.xlu0 %v871
    %v873 = vpop.xlane.xlu0 %872
    %v874 = vsel %vm450, %v870, 0.0
    %875 = vadd.xlane.f32.xlu0 %v874
    %v876 = vpop.xlane.xlu0 %875
    %v877 = vrcp.pop %v873
    %v878 = vrcp.pop %v876
    %v879 = vmul.f32 %v868, %v877
    %v880 = vmul.f32 %v870, %v878
    %882 = vrot.lane.b32.xlu0 %v58, 64
    %v883 = vpop.permute.xlu0 %882
    %v885 = vmul.f32 %v345, %v883
    %v886 = vmul.f32 %v350, %v883
    %889 = vrot.lane.b32.xlu0 %v885, 64
    %v890 = vpop.permute.xlu0 %889
    %891 = vrot.lane.b32.xlu0 %v886, 64
    %v892 = vpop.permute.xlu0 %891
    %v896 = vsel %vm450, %v879, 0
    %v899 = vsel %vm450, %v880, 0
    %901 = vmatprep.subr.mxu0 0.0
    %902 = vmatpush1.msra.mxu0 0.0
    %903 = vmatprep.subr.mxu0 0.0
    %904 = vmatpush1.msra.mxu0 0.0
    %905 = vmatprep.subr.mxu0 0.0
    %906 = vmatpush1.msra.mxu0 0.0
    %907 = vmatprep.subr.mxu0 0.0
    %908 = vmatpush1.msra.mxu0 0.0
    %909 = vmatprep.subr.mxu0 0.0
    %910 = vmatpush1.msra.mxu0 0.0
    %911 = vmatprep.subr.mxu0 0.0
    %912 = vmatpush1.msra.mxu0 0.0
    %913 = vmatprep.subr.mxu0 0.0
    %914 = vmatpush1.msra.mxu0 0.0
    %915 = vmatprep.subr.mxu0 0.0
    %916 = vmatpush1.msra.mxu0 0.0
    %917 = vmatprep.subr.mxu0 0.0
    %918 = vmatpush1.msra.mxu0 0.0
    %919 = vmatprep.subr.mxu0 0.0
    %920 = vmatpush1.msra.mxu0 0.0
    %921 = vmatprep.subr.mxu0 0.0
    %922 = vmatpush1.msra.mxu0 0.0
    %923 = vmatprep.subr.mxu0 0.0
    %924 = vmatpush1.msra.mxu0 0.0
    %925 = vmatprep.subr.mxu0 0.0
    %926 = vmatpush1.msra.mxu0 0.0
    %927 = vmatprep.subr.mxu0 0.0
    %928 = vmatpush1.msra.mxu0 0.0
    %929 = vmatprep.subr.mxu0 0.0
    %930 = vmatpush1.msra.mxu0 %v892
    %931 = vmatprep.subr.mxu0 0.0
    %932 = vmatpush1.msra.mxu0 %v890
    %933 = vmatprep.subr.mxu0 0.0
    %934 = vmatpush2.msra.mxu0 0.0
    %935 = vmatprep.subr.mxu0 0.0
    %936 = vmatpush2.msra.mxu0 0.0
    %937 = vmatprep.subr.mxu0 0.0
    %938 = vmatpush2.msra.mxu0 0.0
    %939 = vmatprep.subr.mxu0 0.0
    %940 = vmatpush2.msra.mxu0 0.0
    %941 = vmatprep.subr.mxu0 0.0
    %942 = vmatpush2.msra.mxu0 0.0
    %943 = vmatprep.subr.mxu0 0.0
    %944 = vmatpush2.msra.mxu0 0.0
    %945 = vmatprep.subr.mxu0 0.0
    %946 = vmatpush2.msra.mxu0 0.0
    %947 = vmatprep.subr.mxu0 0.0
    %948 = vmatpush2.msra.mxu0 0.0
    %949 = vmatprep.subr.mxu0 0.0
    %950 = vmatpush2.msra.mxu0 0.0
    %951 = vmatprep.subr.mxu0 0.0
    %952 = vmatpush2.msra.mxu0 0.0
    %953 = vmatprep.subr.mxu0 0.0
    %954 = vmatpush2.msra.mxu0 0.0
    %955 = vmatprep.subr.mxu0 0.0
    %956 = vmatpush2.msra.mxu0 0.0
    %957 = vmatprep.subr.mxu0 0.0
    %958 = vmatpush2.msra.mxu0 0.0
    %959 = vmatprep.subr.mxu0 0.0
    %960 = vmatpush2.msra.mxu0 0.0
    %961 = vmatprep.subr.mxu0 0.0
    %962 = vmatpush2.msra.mxu0 0.0
    %963 = vmatprep.subr.mxu0 0.0
    %964 = vmatpush2.msra.mxu0 0.0
    %965 = vmatprep.mubr.f32.mxu0 0.0
    %966 = vmatmul.mubr.f32.gmra.mxu0 %v896
    %v967 = vpop.f32.mrf.mxu0
    %v968 = vadd.f32 0.0, %v967
    %v969 = vpop.f32.mrf.mxu0
    %970 = vmatprep.mubr.f32.mxu0 0.0
    %971 = vmatmul.mubr.f32.gmra.mxu0 %v899
    %v972 = vpop.f32.mrf.mxu0
    %v973 = vadd.f32 0.0, %v972
    %v974 = vpop.f32.mrf.mxu0
    %975 = vdwg.mxu0
    %v976 = vadd.f32 %v764, %v968
    %v977 = vadd.f32 %v769, %v973
    %v978 = vmul.f32 %v345, %v63
    %v979 = vmul.f32 %v350, %v63
    %v981 = vsel %vm170, %v978, 0
    %v984 = vsel %vm170, %v979, 0
    %986 = vmatprep.subr.mxu0 0.0
    %987 = vmatpush1.xpose.msra.mxu0 0.0
    %988 = vmatprep.subr.mxu0 0.0
    %989 = vmatpush1.xpose.msra.mxu0 0.0
    %990 = vmatprep.subr.mxu0 0.0
    %991 = vmatpush1.xpose.msra.mxu0 0.0
    %992 = vmatprep.subr.mxu0 0.0
    %993 = vmatpush1.xpose.msra.mxu0 0.0
    %994 = vmatprep.subr.mxu0 0.0
    %995 = vmatpush1.xpose.msra.mxu0 0.0
    %996 = vmatprep.subr.mxu0 0.0
    %997 = vmatpush1.xpose.msra.mxu0 0.0
    %998 = vmatprep.subr.mxu0 0.0
    %999 = vmatpush1.xpose.msra.mxu0 0.0
    %1000 = vmatprep.subr.mxu0 0.0
    %1001 = vmatpush1.xpose.msra.mxu0 0.0
    %1002 = vmatprep.subr.mxu0 0.0
    %1003 = vmatpush1.xpose.msra.mxu0 0.0
    %1004 = vmatprep.subr.mxu0 0.0
    %1005 = vmatpush1.xpose.msra.mxu0 0.0
    %1006 = vmatprep.subr.mxu0 0.0
    %1007 = vmatpush1.xpose.msra.mxu0 0.0
    %1008 = vmatprep.subr.mxu0 0.0
    %1009 = vmatpush1.xpose.msra.mxu0 0.0
    %1010 = vmatprep.subr.mxu0 0.0
    %1011 = vmatpush1.xpose.msra.mxu0 0.0
    %1012 = vmatprep.subr.mxu0 0.0
    %1013 = vmatpush1.xpose.msra.mxu0 0.0
    %1014 = vmatprep.subr.mxu0 0.0
    %1015 = vmatpush1.xpose.msra.mxu0 %v369
    %1016 = vmatprep.subr.mxu0 0.0
    %1017 = vmatpush1.xpose.msra.mxu0 %v367
    %1018 = vmatprep.subr.mxu0 0.0
    %1019 = vmatpush2.xpose.msra.mxu0 0.0
    %1020 = vmatprep.subr.mxu0 0.0
    %1021 = vmatpush2.xpose.msra.mxu0 0.0
    %1022 = vmatprep.subr.mxu0 0.0
    %1023 = vmatpush2.xpose.msra.mxu0 0.0
    %1024 = vmatprep.subr.mxu0 0.0
    %1025 = vmatpush2.xpose.msra.mxu0 0.0
    %1026 = vmatprep.subr.mxu0 0.0
    %1027 = vmatpush2.xpose.msra.mxu0 0.0
    %1028 = vmatprep.subr.mxu0 0.0
    %1029 = vmatpush2.xpose.msra.mxu0 0.0
    %1030 = vmatprep.subr.mxu0 0.0
    %1031 = vmatpush2.xpose.msra.mxu0 0.0
    %1032 = vmatprep.subr.mxu0 0.0
    %1033 = vmatpush2.xpose.msra.mxu0 0.0
    %1034 = vmatprep.subr.mxu0 0.0
    %1035 = vmatpush2.xpose.msra.mxu0 0.0
    %1036 = vmatprep.subr.mxu0 0.0
    %1037 = vmatpush2.xpose.msra.mxu0 0.0
    %1038 = vmatprep.subr.mxu0 0.0
    %1039 = vmatpush2.xpose.msra.mxu0 0.0
    %1040 = vmatprep.subr.mxu0 0.0
    %1041 = vmatpush2.xpose.msra.mxu0 0.0
    %1042 = vmatprep.subr.mxu0 0.0
    %1043 = vmatpush2.xpose.msra.mxu0 0.0
    %1044 = vmatprep.subr.mxu0 0.0
    %1045 = vmatpush2.xpose.msra.mxu0 0.0
    %1046 = vmatprep.subr.mxu0 0.0
    %1047 = vmatpush2.xpose.msra.mxu0 0.0
    %1048 = vmatprep.subr.mxu0 0.0
    %1049 = vmatpush2.xpose.msra.mxu0 0.0
    %1050 = vmatprep.mubr.f32.mxu0 0.0
    %1051 = vmatmul.mubr.f32.gmra.mxu0 %v981
    %v1052 = vpop.f32.mrf.mxu0
    %v1053 = vadd.f32 0.0, %v1052
    %v1054 = vpop.f32.mrf.mxu0
    %1055 = vmatprep.mubr.f32.mxu0 0.0
    %1056 = vmatmul.mubr.f32.gmra.mxu0 %v984
    %v1057 = vpop.f32.mrf.mxu0
    %v1058 = vadd.f32 0.0, %v1057
    %v1059 = vpop.f32.mrf.mxu0
    %1060 = vdwg.mxu0
    %v1061 = vmul.f32 %v1053, 0.35355338
    %v1062 = vmul.f32 %v1058, 0.35355338
    %v1063 = vadd.f32 %v1061, %v242
    %v1064 = vadd.f32 %v1062, %v243
    %v1065 = vsel %vm450, %v1063, -inf
    %1066 = vmax.xlane.f32.xlu0 %v1065
    %v1067 = vpop.xlane.xlu0 %1066
    %v1068 = vsel %vm450, %v1064, -inf
    %1069 = vmax.xlane.f32.xlu0 %v1068
    %v1070 = vpop.xlane.xlu0 %1069
    %v1071 = vsub.f32 %v1063, %v1067
    %v1072 = vsub.f32 %v1064, %v1070
    %v1073 = vmul.f32 %v1071, 1.442695
    %v1074 = vpow.pop %v1073
    %v1075 = vmul.f32 %v1072, 1.442695
    %v1076 = vpow.pop %v1075
    %v1077 = vsel %vm450, %v1074, 0.0
    %1078 = vadd.xlane.f32.xlu0 %v1077
    %v1079 = vpop.xlane.xlu0 %1078
    %v1080 = vsel %vm450, %v1076, 0.0
    %1081 = vadd.xlane.f32.xlu0 %v1080
    %v1082 = vpop.xlane.xlu0 %1081
    %v1083 = vrcp.pop %v1079
    %v1084 = vrcp.pop %v1082
    %v1085 = vmul.f32 %v1074, %v1083
    %v1086 = vmul.f32 %v1076, %v1084
    %1088 = vrot.lane.b32.xlu0 %v63, 64
    %v1089 = vpop.permute.xlu0 %1088
    %v1091 = vmul.f32 %v345, %v1089
    %v1092 = vmul.f32 %v350, %v1089
    %1095 = vrot.lane.b32.xlu0 %v1091, 64
    %v1096 = vpop.permute.xlu0 %1095
    %1097 = vrot.lane.b32.xlu0 %v1092, 64
    %v1098 = vpop.permute.xlu0 %1097
    %v1102 = vsel %vm450, %v1085, 0
    %v1105 = vsel %vm450, %v1086, 0
    %1107 = vmatprep.subr.mxu0 0.0
    %1108 = vmatpush1.msra.mxu0 0.0
    %1109 = vmatprep.subr.mxu0 0.0
    %1110 = vmatpush1.msra.mxu0 0.0
    %1111 = vmatprep.subr.mxu0 0.0
    %1112 = vmatpush1.msra.mxu0 0.0
    %1113 = vmatprep.subr.mxu0 0.0
    %1114 = vmatpush1.msra.mxu0 0.0
    %1115 = vmatprep.subr.mxu0 0.0
    %1116 = vmatpush1.msra.mxu0 0.0
    %1117 = vmatprep.subr.mxu0 0.0
    %1118 = vmatpush1.msra.mxu0 0.0
    %1119 = vmatprep.subr.mxu0 0.0
    %1120 = vmatpush1.msra.mxu0 0.0
    %1121 = vmatprep.subr.mxu0 0.0
    %1122 = vmatpush1.msra.mxu0 0.0
    %1123 = vmatprep.subr.mxu0 0.0
    %1124 = vmatpush1.msra.mxu0 0.0
    %1125 = vmatprep.subr.mxu0 0.0
    %1126 = vmatpush1.msra.mxu0 0.0
    %1127 = vmatprep.subr.mxu0 0.0
    %1128 = vmatpush1.msra.mxu0 0.0
    %1129 = vmatprep.subr.mxu0 0.0
    %1130 = vmatpush1.msra.mxu0 0.0
    %1131 = vmatprep.subr.mxu0 0.0
    %1132 = vmatpush1.msra.mxu0 0.0
    %1133 = vmatprep.subr.mxu0 0.0
    %1134 = vmatpush1.msra.mxu0 0.0
    %1135 = vmatprep.subr.mxu0 0.0
    %1136 = vmatpush1.msra.mxu0 %v1098
    %1137 = vmatprep.subr.mxu0 0.0
    %1138 = vmatpush1.msra.mxu0 %v1096
    %1139 = vmatprep.subr.mxu0 0.0
    %1140 = vmatpush2.msra.mxu0 0.0
    %1141 = vmatprep.subr.mxu0 0.0
    %1142 = vmatpush2.msra.mxu0 0.0
    %1143 = vmatprep.subr.mxu0 0.0
    %1144 = vmatpush2.msra.mxu0 0.0
    %1145 = vmatprep.subr.mxu0 0.0
    %1146 = vmatpush2.msra.mxu0 0.0
    %1147 = vmatprep.subr.mxu0 0.0
    %1148 = vmatpush2.msra.mxu0 0.0
    %1149 = vmatprep.subr.mxu0 0.0
    %1150 = vmatpush2.msra.mxu0 0.0
    %1151 = vmatprep.subr.mxu0 0.0
    %1152 = vmatpush2.msra.mxu0 0.0
    %1153 = vmatprep.subr.mxu0 0.0
    %1154 = vmatpush2.msra.mxu0 0.0
    %1155 = vmatprep.subr.mxu0 0.0
    %1156 = vmatpush2.msra.mxu0 0.0
    %1157 = vmatprep.subr.mxu0 0.0
    %1158 = vmatpush2.msra.mxu0 0.0
    %1159 = vmatprep.subr.mxu0 0.0
    %1160 = vmatpush2.msra.mxu0 0.0
    %1161 = vmatprep.subr.mxu0 0.0
    %1162 = vmatpush2.msra.mxu0 0.0
    %1163 = vmatprep.subr.mxu0 0.0
    %1164 = vmatpush2.msra.mxu0 0.0
    %1165 = vmatprep.subr.mxu0 0.0
    %1166 = vmatpush2.msra.mxu0 0.0
    %1167 = vmatprep.subr.mxu0 0.0
    %1168 = vmatpush2.msra.mxu0 0.0
    %1169 = vmatprep.subr.mxu0 0.0
    %1170 = vmatpush2.msra.mxu0 0.0
    %1171 = vmatprep.mubr.f32.mxu0 0.0
    %1172 = vmatmul.mubr.f32.gmra.mxu0 %v1102
    %v1173 = vpop.f32.mrf.mxu0
    %v1174 = vadd.f32 0.0, %v1173
    %v1175 = vpop.f32.mrf.mxu0
    %1176 = vmatprep.mubr.f32.mxu0 0.0
    %1177 = vmatmul.mubr.f32.gmra.mxu0 %v1105
    %v1178 = vpop.f32.mrf.mxu0
    %v1179 = vadd.f32 0.0, %v1178
    %v1180 = vpop.f32.mrf.mxu0
    %1181 = vdwg.mxu0
    %v1182 = vadd.f32 %v976, %v1174
    %v1183 = vadd.f32 %v977, %v1179
    %v1184 = vlaneseq
    %v1185 = vshrl.u32 %v1184, 7
    %v1186 = vsub.s32 0, %v1185
    %v1187 = vrot.slane %v261, %v1186
    %1192 = vrot.lane.b32.xlu0 %v244, 32
    %v1193 = vpop.permute.xlu0 %1192
    %1194 = vrot.lane.b32.xlu0 %v246, 32
    %v1195 = vpop.permute.xlu0 %1194
    %1196 = vrot.lane.b32.xlu0 %v248, 32
    %v1197 = vpop.permute.xlu0 %1196
    %1198 = vrot.lane.b32.xlu0 %v250, 32
    %v1199 = vpop.permute.xlu0 %1198
    %v1205 = vsel %vm170, %v1182, 0
    %v1208 = vsel %vm170, %v1183, 0
    %1210 = vmatprep.subr.mxu0 0.0
    %1211 = vmatpush1.msra.mxu0 0.0
    %1212 = vmatprep.subr.mxu0 0.0
    %1213 = vmatpush1.msra.mxu0 0.0
    %1214 = vmatprep.subr.mxu0 0.0
    %1215 = vmatpush1.msra.mxu0 0.0
    %1216 = vmatprep.subr.mxu0 0.0
    %1217 = vmatpush1.msra.mxu0 0.0
    %1218 = vmatprep.subr.mxu0 0.0
    %1219 = vmatpush1.msra.mxu0 0.0
    %1220 = vmatprep.subr.mxu0 0.0
    %1221 = vmatpush1.msra.mxu0 0.0
    %1222 = vmatprep.subr.mxu0 0.0
    %1223 = vmatpush1.msra.mxu0 0.0
    %1224 = vmatprep.subr.mxu0 0.0
    %1225 = vmatpush1.msra.mxu0 0.0
    %1226 = vmatprep.subr.mxu0 0.0
    %1227 = vmatpush1.msra.mxu0 0.0
    %1228 = vmatprep.subr.mxu0 0.0
    %1229 = vmatpush1.msra.mxu0 0.0
    %1230 = vmatprep.subr.mxu0 0.0
    %1231 = vmatpush1.msra.mxu0 0.0
    %1232 = vmatprep.subr.mxu0 0.0
    %1233 = vmatpush1.msra.mxu0 0.0
    %1234 = vmatprep.subr.mxu0 0.0
    %1235 = vmatpush1.msra.mxu0 %v1199
    %1236 = vmatprep.subr.mxu0 0.0
    %1237 = vmatpush1.msra.mxu0 %v1197
    %1238 = vmatprep.subr.mxu0 0.0
    %1239 = vmatpush1.msra.mxu0 %v1195
    %1240 = vmatprep.subr.mxu0 0.0
    %1241 = vmatpush1.msra.mxu0 %v1193
    %1242 = vmatprep.subr.mxu0 0.0
    %1243 = vmatpush2.msra.mxu0 0.0
    %1244 = vmatprep.subr.mxu0 0.0
    %1245 = vmatpush2.msra.mxu0 0.0
    %1246 = vmatprep.subr.mxu0 0.0
    %1247 = vmatpush2.msra.mxu0 0.0
    %1248 = vmatprep.subr.mxu0 0.0
    %1249 = vmatpush2.msra.mxu0 0.0
    %1250 = vmatprep.subr.mxu0 0.0
    %1251 = vmatpush2.msra.mxu0 0.0
    %1252 = vmatprep.subr.mxu0 0.0
    %1253 = vmatpush2.msra.mxu0 0.0
    %1254 = vmatprep.subr.mxu0 0.0
    %1255 = vmatpush2.msra.mxu0 0.0
    %1256 = vmatprep.subr.mxu0 0.0
    %1257 = vmatpush2.msra.mxu0 0.0
    %1258 = vmatprep.subr.mxu0 0.0
    %1259 = vmatpush2.msra.mxu0 0.0
    %1260 = vmatprep.subr.mxu0 0.0
    %1261 = vmatpush2.msra.mxu0 0.0
    %1262 = vmatprep.subr.mxu0 0.0
    %1263 = vmatpush2.msra.mxu0 0.0
    %1264 = vmatprep.subr.mxu0 0.0
    %1265 = vmatpush2.msra.mxu0 0.0
    %1266 = vmatprep.subr.mxu0 0.0
    %1267 = vmatpush2.msra.mxu0 0.0
    %1268 = vmatprep.subr.mxu0 0.0
    %1269 = vmatpush2.msra.mxu0 0.0
    %1270 = vmatprep.subr.mxu0 0.0
    %1271 = vmatpush2.msra.mxu0 0.0
    %1272 = vmatprep.subr.mxu0 0.0
    %1273 = vmatpush2.msra.mxu0 0.0
    %1274 = vmatprep.mubr.f32.mxu0 0.0
    %1275 = vmatmul.mubr.f32.gmra.mxu0 %v1205
    %v1276 = vpop.f32.mrf.mxu0
    %v1277 = vadd.f32 %v1187, %v1276
    %v1278 = vpop.f32.mrf.mxu0
    %1279 = vmatprep.mubr.f32.mxu0 0.0
    %1280 = vmatmul.mubr.f32.gmra.mxu0 %v1208
    %v1281 = vpop.f32.mrf.mxu0
    %v1282 = vadd.f32 %v1187, %v1281
    %v1283 = vpop.f32.mrf.mxu0
    %1284 = vdwg.mxu0
    %v1285 = vadd.f32 %v1277, %v208
    %v1286 = vadd.f32 %v1282, %v209
    %v1287 = vsel %vm170, %v1285, 0.0
    %1288 = vadd.xlane.f32.xlu0 %v1287
    %v1289 = vpop.xlane.xlu0 %1288
    %v1290 = vsel %vm170, %v1286, 0.0
    %1291 = vadd.xlane.f32.xlu0 %v1290
    %v1292 = vpop.xlane.xlu0 %1291
    %v1293 = vmul.f32 %v1289, %v177
    %v1294 = vmul.f32 %v1292, %v177
    %v1295 = vsub.f32 %v1285, %v1293
    %v1296 = vsub.f32 %v1286, %v1294
    %v1297 = vmul.f32 %v1295, %v1295
    %v1298 = vmul.f32 %v1296, %v1296
    %v1299 = vsel %vm170, %v1297, 0.0
    %1300 = vadd.xlane.f32.xlu0 %v1299
    %v1301 = vpop.xlane.xlu0 %1300
    %v1302 = vsel %vm170, %v1298, 0.0
    %1303 = vadd.xlane.f32.xlu0 %v1302
    %v1304 = vpop.xlane.xlu0 %1303
    %v1305 = vmul.f32 %v1301, %v177
    %v1306 = vmul.f32 %v1304, %v177
    %v1307 = vadd.f32 %v1305, 1e-12
    %v1308 = vadd.f32 %v1306, 1e-12
    %v1309 = vrsqrt.pop %v1307
    %v1310 = vrsqrt.pop %v1308
    %v1311 = vmul.f32 %v1295, %v1309
    %v1312 = vmul.f32 %v1296, %v1310
    %v1313 = vlaneseq
    %v1314 = vshrl.u32 %v1313, 7
    %v1315 = vsub.s32 0, %v1314
    %v1316 = vrot.slane %v262, %v1315
    %v1317 = vmul.f32 %v1311, %v1316
    %v1318 = vmul.f32 %v1312, %v1316
    %v1319 = vlaneseq
    %v1320 = vshrl.u32 %v1319, 7
    %v1321 = vsub.s32 0, %v1320
    %v1322 = vrot.slane %v263, %v1321
    %v1323 = vadd.f32 %v1317, %v1322
    %v1324 = vadd.f32 %v1318, %v1322
    %v1325 = vlaneseq
    %v1326 = vshrl.u32 %v1325, 7
    %v1327 = vsub.s32 0, %v1326
    %v1328 = vrot.slane %v264, %v1327
    %v1330 = vsel %vm170, %v1323, 0
    %v1333 = vsel %vm170, %v1324, 0
    %1335 = vmatprep.subr.mxu0 0.0
    %1336 = vmatpush1.msra.mxu0 0.0
    %1337 = vmatprep.subr.mxu0 0.0
    %1338 = vmatpush1.msra.mxu0 0.0
    %1339 = vmatprep.subr.mxu0 0.0
    %1340 = vmatpush1.msra.mxu0 0.0
    %1341 = vmatprep.subr.mxu0 0.0
    %1342 = vmatpush1.msra.mxu0 0.0
    %1343 = vmatprep.subr.mxu0 0.0
    %1344 = vmatpush1.msra.mxu0 0.0
    %1345 = vmatprep.subr.mxu0 0.0
    %1346 = vmatpush1.msra.mxu0 0.0
    %1347 = vmatprep.subr.mxu0 0.0
    %1348 = vmatpush1.msra.mxu0 0.0
    %1349 = vmatprep.subr.mxu0 0.0
    %1350 = vmatpush1.msra.mxu0 0.0
    %1351 = vmatprep.subr.mxu0 0.0
    %1352 = vmatpush1.msra.mxu0 0.0
    %1353 = vmatprep.subr.mxu0 0.0
    %1354 = vmatpush1.msra.mxu0 0.0
    %1355 = vmatprep.subr.mxu0 0.0
    %1356 = vmatpush1.msra.mxu0 0.0
    %1357 = vmatprep.subr.mxu0 0.0
    %1358 = vmatpush1.msra.mxu0 0.0
    %1359 = vmatprep.subr.mxu0 0.0
    %1360 = vmatpush1.msra.mxu0 %v251
    %1361 = vmatprep.subr.mxu0 0.0
    %1362 = vmatpush1.msra.mxu0 %v249
    %1363 = vmatprep.subr.mxu0 0.0
    %1364 = vmatpush1.msra.mxu0 %v247
    %1365 = vmatprep.subr.mxu0 0.0
    %1366 = vmatpush1.msra.mxu0 %v245
    %1367 = vmatprep.subr.mxu0 0.0
    %1368 = vmatpush2.msra.mxu0 0.0
    %1369 = vmatprep.subr.mxu0 0.0
    %1370 = vmatpush2.msra.mxu0 0.0
    %1371 = vmatprep.subr.mxu0 0.0
    %1372 = vmatpush2.msra.mxu0 0.0
    %1373 = vmatprep.subr.mxu0 0.0
    %1374 = vmatpush2.msra.mxu0 0.0
    %1375 = vmatprep.subr.mxu0 0.0
    %1376 = vmatpush2.msra.mxu0 0.0
    %1377 = vmatprep.subr.mxu0 0.0
    %1378 = vmatpush2.msra.mxu0 0.0
    %1379 = vmatprep.subr.mxu0 0.0
    %1380 = vmatpush2.msra.mxu0 0.0
    %1381 = vmatprep.subr.mxu0 0.0
    %1382 = vmatpush2.msra.mxu0 0.0
    %1383 = vmatprep.subr.mxu0 0.0
    %1384 = vmatpush2.msra.mxu0 0.0
    %1385 = vmatprep.subr.mxu0 0.0
    %1386 = vmatpush2.msra.mxu0 0.0
    %1387 = vmatprep.subr.mxu0 0.0
    %1388 = vmatpush2.msra.mxu0 0.0
    %1389 = vmatprep.subr.mxu0 0.0
    %1390 = vmatpush2.msra.mxu0 0.0
    %1391 = vmatprep.subr.mxu0 0.0
    %1392 = vmatpush2.msra.mxu0 0.0
    %1393 = vmatprep.subr.mxu0 0.0
    %1394 = vmatpush2.msra.mxu0 0.0
    %1395 = vmatprep.subr.mxu0 0.0
    %1396 = vmatpush2.msra.mxu0 0.0
    %1397 = vmatprep.subr.mxu0 0.0
    %1398 = vmatpush2.msra.mxu0 0.0
    %1399 = vmatprep.mubr.f32.mxu0 0.0
    %1400 = vmatmul.mubr.f32.gmra.mxu0 %v1330
    %v1401 = vpop.f32.mrf.mxu0
    %v1402 = vadd.f32 %v1328, %v1401
    %v1403 = vpop.f32.mrf.mxu0
    %1404 = vmatprep.mubr.f32.mxu0 0.0
    %1405 = vmatmul.mubr.f32.gmra.mxu0 %v1333
    %v1406 = vpop.f32.mrf.mxu0
    %v1407 = vadd.f32 %v1328, %v1406
    %v1408 = vpop.f32.mrf.mxu0
    %1409 = vdwg.mxu0
    %v1410 = vmul.f32 %v1402, 0.5
    %v1411 = vmul.f32 %v1407, 0.5
    %v1412 = vmul.f32 %v1402, 0.044715
    %v1413 = vmul.f32 %v1407, 0.044715
    %v1414 = vmul.f32 %v1412, %v1402
    %v1415 = vmul.f32 %v1413, %v1407
    %v1416 = vmul.f32 %v1414, %v1402
    %v1417 = vmul.f32 %v1415, %v1407
    %v1418 = vadd.f32 %v1402, %v1416
    %v1419 = vadd.f32 %v1407, %v1417
    %v1420 = vmul.f32 %v1418, 0.7978846
    %v1421 = vmul.f32 %v1419, 0.7978846
    %v1422 = vtanh.pop %v1420
    %v1423 = vtanh.pop %v1421
    %v1424 = vadd.f32 %v1422, 1.0
    %v1425 = vadd.f32 %v1423, 1.0
    %v1426 = vmul.f32 %v1410, %v1424
    %v1427 = vmul.f32 %v1411, %v1425
    %v1428 = vlaneseq
    %v1429 = vshrl.u32 %v1428, 7
    %v1430 = vsub.s32 0, %v1429
    %v1431 = vrot.slane %v265, %v1430
    %vm1432 = vcmask 523264
    %v1434 = vsel %vm1432, %v1426, 0
    %v1437 = vsel %vm1432, %v1427, 0
    %1439 = vmatprep.subr.mxu0 0.0
    %1440 = vmatpush1.msra.mxu0 0.0
    %1441 = vmatprep.subr.mxu0 0.0
    %1442 = vmatpush1.msra.mxu0 0.0
    %1443 = vmatprep.subr.mxu0 0.0
    %1444 = vmatpush1.msra.mxu0 0.0
    %1445 = vmatprep.subr.mxu0 0.0
    %1446 = vmatpush1.msra.mxu0 0.0
    %1447 = vmatprep.subr.mxu0 0.0
    %1448 = vmatpush1.msra.mxu0 0.0
    %1449 = vmatprep.subr.mxu0 0.0
    %1450 = vmatpush1.msra.mxu0 0.0
    %1451 = vmatprep.subr.mxu0 0.0
    %1452 = vmatpush1.msra.mxu0 0.0
    %1453 = vmatprep.subr.mxu0 0.0
    %1454 = vmatpush1.msra.mxu0 0.0
    %1455 = vmatprep.subr.mxu0 0.0
    %1456 = vmatpush1.msra.mxu0 %v259
    %1457 = vmatprep.subr.mxu0 0.0
    %1458 = vmatpush1.msra.mxu0 %v258
    %1459 = vmatprep.subr.mxu0 0.0
    %1460 = vmatpush1.msra.mxu0 %v257
    %1461 = vmatprep.subr.mxu0 0.0
    %1462 = vmatpush1.msra.mxu0 %v256
    %1463 = vmatprep.subr.mxu0 0.0
    %1464 = vmatpush1.msra.mxu0 %v255
    %1465 = vmatprep.subr.mxu0 0.0
    %1466 = vmatpush1.msra.mxu0 %v254
    %1467 = vmatprep.subr.mxu0 0.0
    %1468 = vmatpush1.msra.mxu0 %v253
    %1469 = vmatprep.subr.mxu0 0.0
    %1470 = vmatpush1.msra.mxu0 %v252
    %1471 = vmatprep.subr.mxu0 0.0
    %1472 = vmatpush2.msra.mxu0 0.0
    %1473 = vmatprep.subr.mxu0 0.0
    %1474 = vmatpush2.msra.mxu0 0.0
    %1475 = vmatprep.subr.mxu0 0.0
    %1476 = vmatpush2.msra.mxu0 0.0
    %1477 = vmatprep.subr.mxu0 0.0
    %1478 = vmatpush2.msra.mxu0 0.0
    %1479 = vmatprep.subr.mxu0 0.0
    %1480 = vmatpush2.msra.mxu0 0.0
    %1481 = vmatprep.subr.mxu0 0.0
    %1482 = vmatpush2.msra.mxu0 0.0
    %1483 = vmatprep.subr.mxu0 0.0
    %1484 = vmatpush2.msra.mxu0 0.0
    %1485 = vmatprep.subr.mxu0 0.0
    %1486 = vmatpush2.msra.mxu0 0.0
    %1487 = vmatprep.subr.mxu0 0.0
    %1488 = vmatpush2.msra.mxu0 0.0
    %1489 = vmatprep.subr.mxu0 0.0
    %1490 = vmatpush2.msra.mxu0 0.0
    %1491 = vmatprep.subr.mxu0 0.0
    %1492 = vmatpush2.msra.mxu0 0.0
    %1493 = vmatprep.subr.mxu0 0.0
    %1494 = vmatpush2.msra.mxu0 0.0
    %1495 = vmatprep.subr.mxu0 0.0
    %1496 = vmatpush2.msra.mxu0 0.0
    %1497 = vmatprep.subr.mxu0 0.0
    %1498 = vmatpush2.msra.mxu0 0.0
    %1499 = vmatprep.subr.mxu0 0.0
    %1500 = vmatpush2.msra.mxu0 0.0
    %1501 = vmatprep.subr.mxu0 0.0
    %1502 = vmatpush2.msra.mxu0 0.0
    %1503 = vmatprep.mubr.f32.mxu0 0.0
    %1504 = vmatmul.mubr.f32.gmra.mxu0 %v1434
    %v1505 = vpop.f32.mrf.mxu0
    %v1506 = vadd.f32 %v1431, %v1505
    %v1507 = vpop.f32.mrf.mxu0
    %1508 = vmatprep.mubr.f32.mxu0 0.0
    %1509 = vmatmul.mubr.f32.gmra.mxu0 %v1437
    %v1510 = vpop.f32.mrf.mxu0
    %v1511 = vadd.f32 %v1431, %v1510
    %v1512 = vpop.f32.mrf.mxu0
    %1513 = vdwg.mxu0
    %v1514 = vadd.f32 %v1506, %v1323
    %v1515 = vadd.f32 %v1511, %v1324
    %v1516 = vsel %vm170, %v1514, 0.0
    %1517 = vadd.xlane.f32.xlu0 %v1516
    %v1518 = vpop.xlane.xlu0 %1517
    %v1519 = vsel %vm170, %v1515, 0.0
    %1520 = vadd.xlane.f32.xlu0 %v1519
    %v1521 = vpop.xlane.xlu0 %1520
    %v1522 = vmul.f32 %v1518, %v177
    %v1523 = vmul.f32 %v1521, %v177
    %v1524 = vsub.f32 %v1514, %v1522
    %v1525 = vsub.f32 %v1515, %v1523
    %v1526 = vmul.f32 %v1524, %v1524
    %v1527 = vmul.f32 %v1525, %v1525
    %v1528 = vsel %vm170, %v1526, 0.0
    %1529 = vadd.xlane.f32.xlu0 %v1528
    %v1530 = vpop.xlane.xlu0 %1529
    %v1531 = vsel %vm170, %v1527, 0.0
    %1532 = vadd.xlane.f32.xlu0 %v1531
    %v1533 = vpop.xlane.xlu0 %1532
    %v1534 = vmul.f32 %v1530, %v177
    %v1535 = vmul.f32 %v1533, %v177
    %v1536 = vadd.f32 %v1534, 1e-12
    %v1537 = vadd.f32 %v1535, 1e-12
    %v1538 = vrsqrt.pop %v1536
    %v1539 = vrsqrt.pop %v1537
    %v1540 = vmul.f32 %v1524, %v1538
    %v1541 = vmul.f32 %v1525, %v1539
    %v1542 = vlaneseq
    %v1543 = vshrl.u32 %v1542, 7
    %v1544 = vsub.s32 0, %v1543
    %v1545 = vrot.slane %v266, %v1544
    %v1546 = vmul.f32 %v1540, %v1545
    %v1547 = vmul.f32 %v1541, %v1545
    %v1548 = vlaneseq
    %v1549 = vshrl.u32 %v1548, 7
    %v1550 = vsub.s32 0, %v1549
    %v1551 = vrot.slane %v267, %v1550
    %v1552 = vadd.f32 %v1546, %v1551
    %v1553 = vadd.f32 %v1547, %v1551
    %v1554 = vld [vmem:[%s4 + $0x40] sm:$0xff]
    %v1555 = vld [vmem:[%s4 + $0x48] sm:$0xff]
    %v1556 = vld [vmem:[%s4 + $0x50] sm:$0xff]
    %v1557 = vld [vmem:[%s4 + $0x58] sm:$0xff]
    %v1558 = vld [vmem:[%s4 + $0x60] sm:$0xff]
    %v1559 = vld [vmem:[%s4 + $0x68] sm:$0xff]
    %v1560 = vld [vmem:[%s4 + $0x70] sm:$0xff]
    %v1561 = vld [vmem:[%s4 + $0x78] sm:$0xff]
    %v1562 = vld [vmem:[%s5 + $0x40] sm:$0xff]
    %v1563 = vld [vmem:[%s5 + $0x48] sm:$0xff]
    %v1564 = vld [vmem:[%s5 + $0x50] sm:$0xff]
    %v1565 = vld [vmem:[%s5 + $0x58] sm:$0xff]
    %v1566 = vld [vmem:[%s5 + $0x60] sm:$0xff]
    %v1567 = vld [vmem:[%s5 + $0x68] sm:$0xff]
    %v1568 = vld [vmem:[%s5 + $0x70] sm:$0xff]
    %v1569 = vld [vmem:[%s5 + $0x78] sm:$0xff]
    %v1570 = vld [vmem:[%s6 + $0xc] sm:$0x1]
    %v1571 = vld [vmem:[%s6 + $0xd] sm:$0x1]
    %v1572 = vld [vmem:[%s6 + $0xe] sm:$0x1]
    %v1573 = vld [vmem:[%s6 + $0xf] sm:$0x1]
    %v1574 = vld [vmem:[%s6 + $0x10] sm:$0x1]
    %v1575 = vld [vmem:[%s6 + $0x11] sm:$0x1]
    %v1576 = vld [vmem:[%s6 + $0x12] sm:$0x1]
    %v1577 = vld [vmem:[%s6 + $0x13] sm:$0x1]
    %v1578 = vlaneseq
    %v1579 = vshrl.u32 %v1578, 7
    %v1580 = vsub.s32 0, %v1579
    %v1581 = vrot.slane %v1570, %v1580
    %v1583 = vsel %vm170, %v1552, 0
    %v1586 = vsel %vm170, %v1553, 0
    %1588 = vmatprep.subr.mxu0 0.0
    %1589 = vmatpush1.msra.mxu0 0.0
    %1590 = vmatprep.subr.mxu0 0.0
    %1591 = vmatpush1.msra.mxu0 0.0
    %1592 = vmatprep.subr.mxu0 0.0
    %1593 = vmatpush1.msra.mxu0 0.0
    %1594 = vmatprep.subr.mxu0 0.0
    %1595 = vmatpush1.msra.mxu0 0.0
    %1596 = vmatprep.subr.mxu0 0.0
    %1597 = vmatpush1.msra.mxu0 0.0
    %1598 = vmatprep.subr.mxu0 0.0
    %1599 = vmatpush1.msra.mxu0 0.0
    %1600 = vmatprep.subr.mxu0 0.0
    %1601 = vmatpush1.msra.mxu0 0.0
    %1602 = vmatprep.subr.mxu0 0.0
    %1603 = vmatpush1.msra.mxu0 0.0
    %1604 = vmatprep.subr.mxu0 0.0
    %1605 = vmatpush1.msra.mxu0 0.0
    %1606 = vmatprep.subr.mxu0 0.0
    %1607 = vmatpush1.msra.mxu0 0.0
    %1608 = vmatprep.subr.mxu0 0.0
    %1609 = vmatpush1.msra.mxu0 0.0
    %1610 = vmatprep.subr.mxu0 0.0
    %1611 = vmatpush1.msra.mxu0 0.0
    %1612 = vmatprep.subr.mxu0 0.0
    %1613 = vmatpush1.msra.mxu0 %v1560
    %1614 = vmatprep.subr.mxu0 0.0
    %1615 = vmatpush1.msra.mxu0 %v1558
    %1616 = vmatprep.subr.mxu0 0.0
    %1617 = vmatpush1.msra.mxu0 %v1556
    %1618 = vmatprep.subr.mxu0 0.0
    %1619 = vmatpush1.msra.mxu0 %v1554
    %1620 = vmatprep.subr.mxu0 0.0
    %1621 = vmatpush2.msra.mxu0 0.0
    %1622 = vmatprep.subr.mxu0 0.0
    %1623 = vmatpush2.msra.mxu0 0.0
    %1624 = vmatprep.subr.mxu0 0.0
    %1625 = vmatpush2.msra.mxu0 0.0
    %1626 = vmatprep.subr.mxu0 0.0
    %1627 = vmatpush2.msra.mxu0 0.0
    %1628 = vmatprep.subr.mxu0 0.0
    %1629 = vmatpush2.msra.mxu0 0.0
    %1630 = vmatprep.subr.mxu0 0.0
    %1631 = vmatpush2.msra.mxu0 0.0
    %1632 = vmatprep.subr.mxu0 0.0
    %1633 = vmatpush2.msra.mxu0 0.0
    %1634 = vmatprep.subr.mxu0 0.0
    %1635 = vmatpush2.msra.mxu0 0.0
    %1636 = vmatprep.subr.mxu0 0.0
    %1637 = vmatpush2.msra.mxu0 0.0
    %1638 = vmatprep.subr.mxu0 0.0
    %1639 = vmatpush2.msra.mxu0 0.0
    %1640 = vmatprep.subr.mxu0 0.0
    %1641 = vmatpush2.msra.mxu0 0.0
    %1642 = vmatprep.subr.mxu0 0.0
    %1643 = vmatpush2.msra.mxu0 0.0
    %1644 = vmatprep.subr.mxu0 0.0
    %1645 = vmatpush2.msra.mxu0 0.0
    %1646 = vmatprep.subr.mxu0 0.0
    %1647 = vmatpush2.msra.mxu0 0.0
    %1648 = vmatprep.subr.mxu0 0.0
    %1649 = vmatpush2.msra.mxu0 0.0
    %1650 = vmatprep.subr.mxu0 0.0
    %1651 = vmatpush2.msra.mxu0 0.0
    %1652 = vmatprep.mubr.f32.mxu0 0.0
    %1653 = vmatmul.mubr.f32.gmra.mxu0 %v1583
    %v1654 = vpop.f32.mrf.mxu0
    %v1655 = vadd.f32 %v1581, %v1654
    %v1656 = vpop.f32.mrf.mxu0
    %1657 = vmatprep.mubr.f32.mxu0 0.0
    %1658 = vmatmul.mubr.f32.gmra.mxu0 %v1586
    %v1659 = vpop.f32.mrf.mxu0
    %v1660 = vadd.f32 %v1581, %v1659
    %v1661 = vpop.f32.mrf.mxu0
    %1662 = vdwg.mxu0
    %v1663 = vmul.f32 %v1655, %v48
    %v1664 = vmul.f32 %v1660, %v48
    %1667 = vrot.lane.b32.xlu0 %v1655, 96
    %v1668 = vpop.permute.xlu0 %1667
    %1669 = vrot.lane.b32.xlu0 %v1660, 96
    %v1670 = vpop.permute.xlu0 %1669
    %v1672 = vsel %vm170, %v1663, 0
    %v1675 = vsel %vm170, %v1664, 0
    %v1677 = vsel %vm170, %v1668, 0
    %v1679 = vsel %vm170, %v1670, 0
    %1681 = vmatprep.subr.mxu0 0.0
    %1682 = vmatpush1.xpose.msra.mxu0 0.0
    %1683 = vmatprep.subr.mxu0 0.0
    %1684 = vmatpush1.xpose.msra.mxu0 0.0
    %1685 = vmatprep.subr.mxu0 0.0
    %1686 = vmatpush1.xpose.msra.mxu0 0.0
    %1687 = vmatprep.subr.mxu0 0.0
    %1688 = vmatpush1.xpose.msra.mxu0 0.0
    %1689 = vmatprep.subr.mxu0 0.0
    %1690 = vmatpush1.xpose.msra.mxu0 0.0
    %1691 = vmatprep.subr.mxu0 0.0
    %1692 = vmatpush1.xpose.msra.mxu0 0.0
    %1693 = vmatprep.subr.mxu0 0.0
    %1694 = vmatpush1.xpose.msra.mxu0 0.0
    %1695 = vmatprep.subr.mxu0 0.0
    %1696 = vmatpush1.xpose.msra.mxu0 0.0
    %1697 = vmatprep.subr.mxu0 0.0
    %1698 = vmatpush1.xpose.msra.mxu0 0.0
    %1699 = vmatprep.subr.mxu0 0.0
    %1700 = vmatpush1.xpose.msra.mxu0 0.0
    %1701 = vmatprep.subr.mxu0 0.0
    %1702 = vmatpush1.xpose.msra.mxu0 0.0
    %1703 = vmatprep.subr.mxu0 0.0
    %1704 = vmatpush1.xpose.msra.mxu0 0.0
    %1705 = vmatprep.subr.mxu0 0.0
    %1706 = vmatpush1.xpose.msra.mxu0 0.0
    %1707 = vmatprep.subr.mxu0 0.0
    %1708 = vmatpush1.xpose.msra.mxu0 0.0
    %1709 = vmatprep.subr.mxu0 0.0
    %1710 = vmatpush1.xpose.msra.mxu0 %v1679
    %1711 = vmatprep.subr.mxu0 0.0
    %1712 = vmatpush1.xpose.msra.mxu0 %v1677
    %1713 = vmatprep.subr.mxu0 0.0
    %1714 = vmatpush2.xpose.msra.mxu0 0.0
    %1715 = vmatprep.subr.mxu0 0.0
    %1716 = vmatpush2.xpose.msra.mxu0 0.0
    %1717 = vmatprep.subr.mxu0 0.0
    %1718 = vmatpush2.xpose.msra.mxu0 0.0
    %1719 = vmatprep.subr.mxu0 0.0
    %1720 = vmatpush2.xpose.msra.mxu0 0.0
    %1721 = vmatprep.subr.mxu0 0.0
    %1722 = vmatpush2.xpose.msra.mxu0 0.0
    %1723 = vmatprep.subr.mxu0 0.0
    %1724 = vmatpush2.xpose.msra.mxu0 0.0
    %1725 = vmatprep.subr.mxu0 0.0
    %1726 = vmatpush2.xpose.msra.mxu0 0.0
    %1727 = vmatprep.subr.mxu0 0.0
    %1728 = vmatpush2.xpose.msra.mxu0 0.0
    %1729 = vmatprep.subr.mxu0 0.0
    %1730 = vmatpush2.xpose.msra.mxu0 0.0
    %1731 = vmatprep.subr.mxu0 0.0
    %1732 = vmatpush2.xpose.msra.mxu0 0.0
    %1733 = vmatprep.subr.mxu0 0.0
    %1734 = vmatpush2.xpose.msra.mxu0 0.0
    %1735 = vmatprep.subr.mxu0 0.0
    %1736 = vmatpush2.xpose.msra.mxu0 0.0
    %1737 = vmatprep.subr.mxu0 0.0
    %1738 = vmatpush2.xpose.msra.mxu0 0.0
    %1739 = vmatprep.subr.mxu0 0.0
    %1740 = vmatpush2.xpose.msra.mxu0 0.0
    %1741 = vmatprep.subr.mxu0 0.0
    %1742 = vmatpush2.xpose.msra.mxu0 0.0
    %1743 = vmatprep.subr.mxu0 0.0
    %1744 = vmatpush2.xpose.msra.mxu0 0.0
    %1745 = vmatprep.mubr.f32.mxu0 0.0
    %1746 = vmatmul.mubr.f32.gmra.mxu0 %v1672
    %v1747 = vpop.f32.mrf.mxu0
    %v1748 = vadd.f32 0.0, %v1747
    %v1749 = vpop.f32.mrf.mxu0
    %1750 = vmatprep.mubr.f32.mxu0 0.0
    %1751 = vmatmul.mubr.f32.gmra.mxu0 %v1675
    %v1752 = vpop.f32.mrf.mxu0
    %v1753 = vadd.f32 0.0, %v1752
    %v1754 = vpop.f32.mrf.mxu0
    %1755 = vdwg.mxu0
    %v1756 = vmul.f32 %v1748, 0.35355338
    %v1757 = vmul.f32 %v1753, 0.35355338
    %v1758 = vadd.f32 %v1756, %v242
    %v1759 = vadd.f32 %v1757, %v243
    %v1760 = vsel %vm450, %v1758, -inf
    %1761 = vmax.xlane.f32.xlu0 %v1760
    %v1762 = vpop.xlane.xlu0 %1761
    %v1763 = vsel %vm450, %v1759, -inf
    %1764 = vmax.xlane.f32.xlu0 %v1763
    %v1765 = vpop.xlane.xlu0 %1764
    %v1766 = vsub.f32 %v1758, %v1762
    %v1767 = vsub.f32 %v1759, %v1765
    %v1768 = vmul.f32 %v1766, 1.442695
    %v1769 = vpow.pop %v1768
    %v1770 = vmul.f32 %v1767, 1.442695
    %v1771 = vpow.pop %v1770
    %v1772 = vsel %vm450, %v1769, 0.0
    %1773 = vadd.xlane.f32.xlu0 %v1772
    %v1774 = vpop.xlane.xlu0 %1773
    %v1775 = vsel %vm450, %v1771, 0.0
    %1776 = vadd.xlane.f32.xlu0 %v1775
    %v1777 = vpop.xlane.xlu0 %1776
    %v1778 = vrcp.pop %v1774
    %v1779 = vrcp.pop %v1777
    %v1780 = vmul.f32 %v1769, %v1778
    %v1781 = vmul.f32 %v1771, %v1779
    %v1782 = vmul.f32 %v1655, %v475
    %v1783 = vmul.f32 %v1660, %v475
    %v1784 = vmul.f32 %v1655, %v53
    %v1785 = vmul.f32 %v1660, %v53
    %v1787 = vsel %vm170, %v1784, 0
    %v1790 = vsel %vm170, %v1785, 0
    %1792 = vmatprep.subr.mxu0 0.0
    %1793 = vmatpush1.xpose.msra.mxu0 0.0
    %1794 = vmatprep.subr.mxu0 0.0
    %1795 = vmatpush1.xpose.msra.mxu0 0.0
    %1796 = vmatprep.subr.mxu0 0.0
    %1797 = vmatpush1.xpose.msra.mxu0 0.0
    %1798 = vmatprep.subr.mxu0 0.0
    %1799 = vmatpush1.xpose.msra.mxu0 0.0
    %1800 = vmatprep.subr.mxu0 0.0
    %1801 = vmatpush1.xpose.msra.mxu0 0.0
    %1802 = vmatprep.subr.mxu0 0.0
    %1803 = vmatpush1.xpose.msra.mxu0 0.0
    %1804 = vmatprep.subr.mxu0 0.0
    %1805 = vmatpush1.xpose.msra.mxu0 0.0
    %1806 = vmatprep.subr.mxu0 0.0
    %1807 = vmatpush1.xpose.msra.mxu0 0.0
    %1808 = vmatprep.subr.mxu0 0.0
    %1809 = vmatpush1.xpose.msra.mxu0 0.0
    %1810 = vmatprep.subr.mxu0 0.0
    %1811 = vmatpush1.xpose.msra.mxu0 0.0
    %1812 = vmatprep.subr.mxu0 0.0
    %1813 = vmatpush1.xpose.msra.mxu0 0.0
    %1814 = vmatprep.subr.mxu0 0.0
    %1815 = vmatpush1.xpose.msra.mxu0 0.0
    %1816 = vmatprep.subr.mxu0 0.0
    %1817 = vmatpush1.xpose.msra.mxu0 0.0
    %1818 = vmatprep.subr.mxu0 0.0
    %1819 = vmatpush1.xpose.msra.mxu0 0.0
    %1820 = vmatprep.subr.mxu0 0.0
    %1821 = vmatpush1.xpose.msra.mxu0 %v1679
    %1822 = vmatprep.subr.mxu0 0.0
    %1823 = vmatpush1.xpose.msra.mxu0 %v1677
    %1824 = vmatprep.subr.mxu0 0.0
    %1825 = vmatpush2.xpose.msra.mxu0 0.0
    %1826 = vmatprep.subr.mxu0 0.0
    %1827 = vmatpush2.xpose.msra.mxu0 0.0
    %1828 = vmatprep.subr.mxu0 0.0
    %1829 = vmatpush2.xpose.msra.mxu0 0.0
    %1830 = vmatprep.subr.mxu0 0.0
    %1831 = vmatpush2.xpose.msra.mxu0 0.0
    %1832 = vmatprep.subr.mxu0 0.0
    %1833 = vmatpush2.xpose.msra.mxu0 0.0
    %1834 = vmatprep.subr.mxu0 0.0
    %1835 = vmatpush2.xpose.msra.mxu0 0.0
    %1836 = vmatprep.subr.mxu0 0.0
    %1837 = vmatpush2.xpose.msra.mxu0 0.0
    %1838 = vmatprep.subr.mxu0 0.0
    %1839 = vmatpush2.xpose.msra.mxu0 0.0
    %1840 = vmatprep.subr.mxu0 0.0
    %1841 = vmatpush2.xpose.msra.mxu0 0.0
    %1842 = vmatprep.subr.mxu0 0.0
    %1843 = vmatpush2.xpose.msra.mxu0 0.0
    %1844 = vmatprep.subr.mxu0 0.0
    %1845 = vmatpush2.xpose.msra.mxu0 0.0
    %1846 = vmatprep.subr.mxu0 0.0
    %1847 = vmatpush2.xpose.msra.mxu0 0.0
    %1848 = vmatprep.subr.mxu0 0.0
    %1849 = vmatpush2.xpose.msra.mxu0 0.0
    %1850 = vmatprep.subr.mxu0 0.0
    %1851 = vmatpush2.xpose.msra.mxu0 0.0
    %1852 = vmatprep.subr.mxu0 0.0
    %1853 = vmatpush2.xpose.msra.mxu0 0.0
    %1854 = vmatprep.subr.mxu0 0.0
    %1855 = vmatpush2.xpose.msra.mxu0 0.0
    %1856 = vmatprep.mubr.f32.mxu0 0.0
    %1857 = vmatmul.mubr.f32.gmra.mxu0 %v1787
    %v1858 = vpop.f32.mrf.mxu0
    %v1859 = vadd.f32 0.0, %v1858
    %v1860 = vpop.f32.mrf.mxu0
    %1861 = vmatprep.mubr.f32.mxu0 0.0
    %1862 = vmatmul.mubr.f32.gmra.mxu0 %v1790
    %v1863 = vpop.f32.mrf.mxu0
    %v1864 = vadd.f32 0.0, %v1863
    %v1865 = vpop.f32.mrf.mxu0
    %1866 = vdwg.mxu0
    %v1867 = vmul.f32 %v1859, 0.35355338
    %v1868 = vmul.f32 %v1864, 0.35355338
    %v1869 = vadd.f32 %v1867, %v242
    %v1870 = vadd.f32 %v1868, %v243
    %v1871 = vsel %vm450, %v1869, -inf
    %1872 = vmax.xlane.f32.xlu0 %v1871
    %v1873 = vpop.xlane.xlu0 %1872
    %v1874 = vsel %vm450, %v1870, -inf
    %1875 = vmax.xlane.f32.xlu0 %v1874
    %v1876 = vpop.xlane.xlu0 %1875
    %v1877 = vsub.f32 %v1869, %v1873
    %v1878 = vsub.f32 %v1870, %v1876
    %v1879 = vmul.f32 %v1877, 1.442695
    %v1880 = vpow.pop %v1879
    %v1881 = vmul.f32 %v1878, 1.442695
    %v1882 = vpow.pop %v1881
    %v1883 = vsel %vm450, %v1880, 0.0
    %1884 = vadd.xlane.f32.xlu0 %v1883
    %v1885 = vpop.xlane.xlu0 %1884
    %v1886 = vsel %vm450, %v1882, 0.0
    %1887 = vadd.xlane.f32.xlu0 %v1886
    %v1888 = vpop.xlane.xlu0 %1887
    %v1889 = vrcp.pop %v1885
    %v1890 = vrcp.pop %v1888
    %v1891 = vmul.f32 %v1880, %v1889
    %v1892 = vmul.f32 %v1882, %v1890
    %v1893 = vmul.f32 %v1655, %v590
    %v1894 = vmul.f32 %v1660, %v590
    %1897 = vrot.lane.b32.xlu0 %v1893, 64
    %v1898 = vpop.permute.xlu0 %1897
    %1899 = vrot.lane.b32.xlu0 %v1894, 64
    %v1900 = vpop.permute.xlu0 %1899
    %v1904 = vsel %vm450, %v1891, 0
    %v1907 = vsel %vm450, %v1892, 0
    %1909 = vmatprep.subr.mxu0 0.0
    %1910 = vmatpush1.msra.mxu0 0.0
    %1911 = vmatprep.subr.mxu0 0.0
    %1912 = vmatpush1.msra.mxu0 0.0
    %1913 = vmatprep.subr.mxu0 0.0
    %1914 = vmatpush1.msra.mxu0 0.0
    %1915 = vmatprep.subr.mxu0 0.0
    %1916 = vmatpush1.msra.mxu0 0.0
    %1917 = vmatprep.subr.mxu0 0.0
    %1918 = vmatpush1.msra.mxu0 0.0
    %1919 = vmatprep.subr.mxu0 0.0
    %1920 = vmatpush1.msra.mxu0 0.0
    %1921 = vmatprep.subr.mxu0 0.0
    %1922 = vmatpush1.msra.mxu0 0.0
    %1923 = vmatprep.subr.mxu0 0.0
    %1924 = vmatpush1.msra.mxu0 0.0
    %1925 = vmatprep.subr.mxu0 0.0
    %1926 = vmatpush1.msra.mxu0 0.0
    %1927 = vmatprep.subr.mxu0 0.0
    %1928 = vmatpush1.msra.mxu0 0.0
    %1929 = vmatprep.subr.mxu0 0.0
    %1930 = vmatpush1.msra.mxu0 0.0
    %1931 = vmatprep.subr.mxu0 0.0
    %1932 = vmatpush1.msra.mxu0 0.0
    %1933 = vmatprep.subr.mxu0 0.0
    %1934 = vmatpush1.msra.mxu0 0.0
    %1935 = vmatprep.subr.mxu0 0.0
    %1936 = vmatpush1.msra.mxu0 0.0
    %1937 = vmatprep.subr.mxu0 0.0
    %1938 = vmatpush1.msra.mxu0 %v1900
    %1939 = vmatprep.subr.mxu0 0.0
    %1940 = vmatpush1.msra.mxu0 %v1898
    %1941 = vmatprep.subr.mxu0 0.0
    %1942 = vmatpush2.msra.mxu0 0.0
    %1943 = vmatprep.subr.mxu0 0.0
    %1944 = vmatpush2.msra.mxu0 0.0
    %1945 = vmatprep.subr.mxu0 0.0
    %1946 = vmatpush2.msra.mxu0 0.0
    %1947 = vmatprep.subr.mxu0 0.0
    %1948 = vmatpush2.msra.mxu0 0.0
    %1949 = vmatprep.subr.mxu0 0.0
    %1950 = vmatpush2.msra.mxu0 0.0
    %1951 = vmatprep.subr.mxu0 0.0
    %1952 = vmatpush2.msra.mxu0 0.0
    %1953 = vmatprep.subr.mxu0 0.0
    %1954 = vmatpush2.msra.mxu0 0.0
    %1955 = vmatprep.subr.mxu0 0.0
    %1956 = vmatpush2.msra.mxu0 0.0
    %1957 = vmatprep.subr.mxu0 0.0
    %1958 = vmatpush2.msra.mxu0 0.0
    %1959 = vmatprep.subr.mxu0 0.0
    %1960 = vmatpush2.msra.mxu0 0.0
    %1961 = vmatprep.subr.mxu0 0.0
    %1962 = vmatpush2.msra.mxu0 0.0
    %1963 = vmatprep.subr.mxu0 0.0
    %1964 = vmatpush2.msra.mxu0 0.0
    %1965 = vmatprep.subr.mxu0 0.0
    %1966 = vmatpush2.msra.mxu0 0.0
    %1967 = vmatprep.subr.mxu0 0.0
    %1968 = vmatpush2.msra.mxu0 0.0
    %1969 = vmatprep.subr.mxu0 0.0
    %1970 = vmatpush2.msra.mxu0 0.0
    %1971 = vmatprep.subr.mxu0 0.0
    %1972 = vmatpush2.msra.mxu0 0.0
    %1973 = vmatprep.mubr.f32.mxu0 0.0
    %1974 = vmatmul.mubr.f32.gmra.mxu0 %v1904
    %v1975 = vpop.f32.mrf.mxu0
    %v1976 = vadd.f32 0.0, %v1975
    %v1977 = vpop.f32.mrf.mxu0
    %1978 = vmatprep.mubr.f32.mxu0 0.0
    %1979 = vmatmul.mubr.f32.gmra.mxu0 %v1907
    %v1980 = vpop.f32.mrf.mxu0
    %v1981 = vadd.f32 0.0, %v1980
    %v1982 = vpop.f32.mrf.mxu0
    %1983 = vdwg.mxu0
    %1986 = vrot.lane.b32.xlu0 %v1782, 64
    %v1987 = vpop.permute.xlu0 %1986
    %1988 = vrot.lane.b32.xlu0 %v1783, 64
    %v1989 = vpop.permute.xlu0 %1988
    %v1993 = vsel %vm450, %v1780, 0
    %v1996 = vsel %vm450, %v1781, 0
    %1998 = vmatprep.subr.mxu0 0.0
    %1999 = vmatpush1.msra.mxu0 0.0
    %2000 = vmatprep.subr.mxu0 0.0
    %2001 = vmatpush1.msra.mxu0 0.0
    %2002 = vmatprep.subr.mxu0 0.0
    %2003 = vmatpush1.msra.mxu0 0.0
    %2004 = vmatprep.subr.mxu0 0.0
    %2005 = vmatpush1.msra.mxu0 0.0
    %2006 = vmatprep.subr.mxu0 0.0
    %2007 = vmatpush1.msra.mxu0 0.0
    %2008 = vmatprep.subr.mxu0 0.0
    %2009 = vmatpush1.msra.mxu0 0.0
    %2010 = vmatprep.subr.mxu0 0.0
    %2011 = vmatpush1.msra.mxu0 0.0
    %2012 = vmatprep.subr.mxu0 0.0
    %2013 = vmatpush1.msra.mxu0 0.0
    %2014 = vmatprep.subr.mxu0 0.0
    %2015 = vmatpush1.msra.mxu0 0.0
    %2016 = vmatprep.subr.mxu0 0.0
    %2017 = vmatpush1.msra.mxu0 0.0
    %2018 = vmatprep.subr.mxu0 0.0
    %2019 = vmatpush1.msra.mxu0 0.0
    %2020 = vmatprep.subr.mxu0 0.0
    %2021 = vmatpush1.msra.mxu0 0.0
    %2022 = vmatprep.subr.mxu0 0.0
    %2023 = vmatpush1.msra.mxu0 0.0
    %2024 = vmatprep.subr.mxu0 0.0
    %2025 = vmatpush1.msra.mxu0 0.0
    %2026 = vmatprep.subr.mxu0 0.0
    %2027 = vmatpush1.msra.mxu0 %v1989
    %2028 = vmatprep.subr.mxu0 0.0
    %2029 = vmatpush1.msra.mxu0 %v1987
    %2030 = vmatprep.subr.mxu0 0.0
    %2031 = vmatpush2.msra.mxu0 0.0
    %2032 = vmatprep.subr.mxu0 0.0
    %2033 = vmatpush2.msra.mxu0 0.0
    %2034 = vmatprep.subr.mxu0 0.0
    %2035 = vmatpush2.msra.mxu0 0.0
    %2036 = vmatprep.subr.mxu0 0.0
    %2037 = vmatpush2.msra.mxu0 0.0
    %2038 = vmatprep.subr.mxu0 0.0
    %2039 = vmatpush2.msra.mxu0 0.0
    %2040 = vmatprep.subr.mxu0 0.0
    %2041 = vmatpush2.msra.mxu0 0.0
    %2042 = vmatprep.subr.mxu0 0.0
    %2043 = vmatpush2.msra.mxu0 0.0
    %2044 = vmatprep.subr.mxu0 0.0
    %2045 = vmatpush2.msra.mxu0 0.0
    %2046 = vmatprep.subr.mxu0 0.0
    %2047 = vmatpush2.msra.mxu0 0.0
    %2048 = vmatprep.subr.mxu0 0.0
    %2049 = vmatpush2.msra.mxu0 0.0
    %2050 = vmatprep.subr.mxu0 0.0
    %2051 = vmatpush2.msra.mxu0 0.0
    %2052 = vmatprep.subr.mxu0 0.0
    %2053 = vmatpush2.msra.mxu0 0.0
    %2054 = vmatprep.subr.mxu0 0.0
    %2055 = vmatpush2.msra.mxu0 0.0
    %2056 = vmatprep.subr.mxu0 0.0
    %2057 = vmatpush2.msra.mxu0 0.0
    %2058 = vmatprep.subr.mxu0 0.0
    %2059 = vmatpush2.msra.mxu0 0.0
    %2060 = vmatprep.subr.mxu0 0.0
    %2061 = vmatpush2.msra.mxu0 0.0
    %2062 = vmatprep.mubr.f32.mxu0 0.0
    %2063 = vmatmul.mubr.f32.gmra.mxu0 %v1993
    %v2064 = vpop.f32.mrf.mxu0
    %v2065 = vadd.f32 %v1976, %v2064
    %v2066 = vpop.f32.mrf.mxu0
    %2067 = vmatprep.mubr.f32.mxu0 0.0
    %2068 = vmatmul.mubr.f32.gmra.mxu0 %v1996
    %v2069 = vpop.f32.mrf.mxu0
    %v2070 = vadd.f32 %v1981, %v2069
    %v2071 = vpop.f32.mrf.mxu0
    %2072 = vdwg.mxu0
    %v2073 = vmul.f32 %v1655, %v58
    %v2074 = vmul.f32 %v1660, %v58
    %v2076 = vsel %vm170, %v2073, 0
    %v2079 = vsel %vm170, %v2074, 0
    %2081 = vmatprep.subr.mxu0 0.0
    %2082 = vmatpush1.xpose.msra.mxu0 0.0
    %2083 = vmatprep.subr.mxu0 0.0
    %2084 = vmatpush1.xpose.msra.mxu0 0.0
    %2085 = vmatprep.subr.mxu0 0.0
    %2086 = vmatpush1.xpose.msra.mxu0 0.0
    %2087 = vmatprep.subr.mxu0 0.0
    %2088 = vmatpush1.xpose.msra.mxu0 0.0
    %2089 = vmatprep.subr.mxu0 0.0
    %2090 = vmatpush1.xpose.msra.mxu0 0.0
    %2091 = vmatprep.subr.mxu0 0.0
    %2092 = vmatpush1.xpose.msra.mxu0 0.0
    %2093 = vmatprep.subr.mxu0 0.0
    %2094 = vmatpush1.xpose.msra.mxu0 0.0
    %2095 = vmatprep.subr.mxu0 0.0
    %2096 = vmatpush1.xpose.msra.mxu0 0.0
    %2097 = vmatprep.subr.mxu0 0.0
    %2098 = vmatpush1.xpose.msra.mxu0 0.0
    %2099 = vmatprep.subr.mxu0 0.0
    %2100 = vmatpush1.xpose.msra.mxu0 0.0
    %2101 = vmatprep.subr.mxu0 0.0
    %2102 = vmatpush1.xpose.msra.mxu0 0.0
    %2103 = vmatprep.subr.mxu0 0.0
    %2104 = vmatpush1.xpose.msra.mxu0 0.0
    %2105 = vmatprep.subr.mxu0 0.0
    %2106 = vmatpush1.xpose.msra.mxu0 0.0
    %2107 = vmatprep.subr.mxu0 0.0
    %2108 = vmatpush1.xpose.msra.mxu0 0.0
    %2109 = vmatprep.subr.mxu0 0.0
    %2110 = vmatpush1.xpose.msra.mxu0 %v1679
    %2111 = vmatprep.subr.mxu0 0.0
    %2112 = vmatpush1.xpose.msra.mxu0 %v1677
    %2113 = vmatprep.subr.mxu0 0.0
    %2114 = vmatpush2.xpose.msra.mxu0 0.0
    %2115 = vmatprep.subr.mxu0 0.0
    %2116 = vmatpush2.xpose.msra.mxu0 0.0
    %2117 = vmatprep.subr.mxu0 0.0
    %2118 = vmatpush2.xpose.msra.mxu0 0.0
    %2119 = vmatprep.subr.mxu0 0.0
    %2120 = vmatpush2.xpose.msra.mxu0 0.0
    %2121 = vmatprep.subr.mxu0 0.0
    %2122 = vmatpush2.xpose.msra.mxu0 0.0
    %2123 = vmatprep.subr.mxu0 0.0
    %2124 = vmatpush2.xpose.msra.mxu0 0.0
    %2125 = vmatprep.subr.mxu0 0.0
    %2126 = vmatpush2.xpose.msra.mxu0 0.0
    %2127 = vmatprep.subr.mxu0 0.0
    %2128 = vmatpush2.xpose.msra.mxu0 0.0
    %2129 = vmatprep.subr.mxu0 0.0
    %2130 = vmatpush2.xpose.msra.mxu0 0.0
    %2131 = vmatprep.subr.mxu0 0.0
    %2132 = vmatpush2.xpose.msra.mxu0 0.0
    %2133 = vmatprep.subr.mxu0 0.0
    %2134 = vmatpush2.xpose.msra.mxu0 0.0
    %2135 = vmatprep.subr.mxu0 0.0
    %2136 = vmatpush2.xpose.msra.mxu0 0.0
    %2137 = vmatprep.subr.mxu0 0.0
    %2138 = vmatpush2.xpose.msra.mxu0 0.0
    %2139 = vmatprep.subr.mxu0 0.0
    %2140 = vmatpush2.xpose.msra.mxu0 0.0
    %2141 = vmatprep.subr.mxu0 0.0
    %2142 = vmatpush2.xpose.msra.mxu0 0.0
    %2143 = vmatprep.subr.mxu0 0.0
    %2144 = vmatpush2.xpose.msra.mxu0 0.0
    %2145 = vmatprep.mubr.f32.mxu0 0.0
    %2146 = vmatmul.mubr.f32.gmra.mxu0 %v2076
    %v2147 = vpop.f32.mrf.mxu0
    %v2148 = vadd.f32 0.0, %v2147
    %v2149 = vpop.f32.mrf.mxu0
    %2150 = vmatprep.mubr.f32.mxu0 0.0
    %2151 = vmatmul.mubr.f32.gmra.mxu0 %v2079
    %v2152 = vpop.f32.mrf.mxu0
    %v2153 = vadd.f32 0.0, %v2152
    %v2154 = vpop.f32.mrf.mxu0
    %2155 = vdwg.mxu0
    %v2156 = vmul.f32 %v2148, 0.35355338
    %v2157 = vmul.f32 %v2153, 0.35355338
    %v2158 = vadd.f32 %v2156, %v242
    %v2159 = vadd.f32 %v2157, %v243
    %v2160 = vsel %vm450, %v2158, -inf
    %2161 = vmax.xlane.f32.xlu0 %v2160
    %v2162 = vpop.xlane.xlu0 %2161
    %v2163 = vsel %vm450, %v2159, -inf
    %2164 = vmax.xlane.f32.xlu0 %v2163
    %v2165 = vpop.xlane.xlu0 %2164
    %v2166 = vsub.f32 %v2158, %v2162
    %v2167 = vsub.f32 %v2159, %v2165
    %v2168 = vmul.f32 %v2166, 1.442695
    %v2169 = vpow.pop %v2168
    %v2170 = vmul.f32 %v2167, 1.442695
    %v2171 = vpow.pop %v2170
    %v2172 = vsel %vm450, %v2169, 0.0
    %2173 = vadd.xlane.f32.xlu0 %v2172
    %v2174 = vpop.xlane.xlu0 %2173
    %v2175 = vsel %vm450, %v2171, 0.0
    %2176 = vadd.xlane.f32.xlu0 %v2175
    %v2177 = vpop.xlane.xlu0 %2176
    %v2178 = vrcp.pop %v2174
    %v2179 = vrcp.pop %v2177
    %v2180 = vmul.f32 %v2169, %v2178
    %v2181 = vmul.f32 %v2171, %v2179
    %v2182 = vmul.f32 %v1655, %v883
    %v2183 = vmul.f32 %v1660, %v883
    %2186 = vrot.lane.b32.xlu0 %v2182, 64
    %v2187 = vpop.permute.xlu0 %2186
    %2188 = vrot.lane.b32.xlu0 %v2183, 64
    %v2189 = vpop.permute.xlu0 %2188
    %v2193 = vsel %vm450, %v2180, 0
    %v2196 = vsel %vm450, %v2181, 0
    %2198 = vmatprep.subr.mxu0 0.0
    %2199 = vmatpush1.msra.mxu0 0.0
    %2200 = vmatprep.subr.mxu0 0.0
    %2201 = vmatpush1.msra.mxu0 0.0
    %2202 = vmatprep.subr.mxu0 0.0
    %2203 = vmatpush1.msra.mxu0 0.0
    %2204 = vmatprep.subr.mxu0 0.0
    %2205 = vmatpush1.msra.mxu0 0.0
    %2206 = vmatprep.subr.mxu0 0.0
    %2207 = vmatpush1.msra.mxu0 0.0
    %2208 = vmatprep.subr.mxu0 0.0
    %2209 = vmatpush1.msra.mxu0 0.0
    %2210 = vmatprep.subr.mxu0 0.0
    %2211 = vmatpush1.msra.mxu0 0.0
    %2212 = vmatprep.subr.mxu0 0.0
    %2213 = vmatpush1.msra.mxu0 0.0
    %2214 = vmatprep.subr.mxu0 0.0
    %2215 = vmatpush1.msra.mxu0 0.0
    %2216 = vmatprep.subr.mxu0 0.0
    %2217 = vmatpush1.msra.mxu0 0.0
    %2218 = vmatprep.subr.mxu0 0.0
    %2219 = vmatpush1.msra.mxu0 0.0
    %2220 = vmatprep.subr.mxu0 0.0
    %2221 = vmatpush1.msra.mxu0 0.0
    %2222 = vmatprep.subr.mxu0 0.0
    %2223 = vmatpush1.msra.mxu0 0.0
    %2224 = vmatprep.subr.mxu0 0.0
    %2225 = vmatpush1.msra.mxu0 0.0
    %2226 = vmatprep.subr.mxu0 0.0
    %2227 = vmatpush1.msra.mxu0 %v2189
    %2228 = vmatprep.subr.mxu0 0.0
    %2229 = vmatpush1.msra.mxu0 %v2187
    %2230 = vmatprep.subr.mxu0 0.0
    %2231 = vmatpush2.msra.mxu0 0.0
    %2232 = vmatprep.subr.mxu0 0.0
    %2233 = vmatpush2.msra.mxu0 0.0
    %2234 = vmatprep.subr.mxu0 0.0
    %2235 = vmatpush2.msra.mxu0 0.0
    %2236 = vmatprep.subr.mxu0 0.0
    %2237 = vmatpush2.msra.mxu0 0.0
    %2238 = vmatprep.subr.mxu0 0.0
    %2239 = vmatpush2.msra.mxu0 0.0
    %2240 = vmatprep.subr.mxu0 0.0
    %2241 = vmatpush2.msra.mxu0 0.0
    %2242 = vmatprep.subr.mxu0 0.0
    %2243 = vmatpush2.msra.mxu0 0.0
    %2244 = vmatprep.subr.mxu0 0.0
    %2245 = vmatpush2.msra.mxu0 0.0
    %2246 = vmatprep.subr.mxu0 0.0
    %2247 = vmatpush2.msra.mxu0 0.0
    %2248 = vmatprep.subr.mxu0 0.0
    %2249 = vmatpush2.msra.mxu0 0.0
    %2250 = vmatprep.subr.mxu0 0.0
    %2251 = vmatpush2.msra.mxu0 0.0
    %2252 = vmatprep.subr.mxu0 0.0
    %2253 = vmatpush2.msra.mxu0 0.0
    %2254 = vmatprep.subr.mxu0 0.0
    %2255 = vmatpush2.msra.mxu0 0.0
    %2256 = vmatprep.subr.mxu0 0.0
    %2257 = vmatpush2.msra.mxu0 0.0
    %2258 = vmatprep.subr.mxu0 0.0
    %2259 = vmatpush2.msra.mxu0 0.0
    %2260 = vmatprep.subr.mxu0 0.0
    %2261 = vmatpush2.msra.mxu0 0.0
    %2262 = vmatprep.mubr.f32.mxu0 0.0
    %2263 = vmatmul.mubr.f32.gmra.mxu0 %v2193
    %v2264 = vpop.f32.mrf.mxu0
    %v2265 = vadd.f32 0.0, %v2264
    %v2266 = vpop.f32.mrf.mxu0
    %2267 = vmatprep.mubr.f32.mxu0 0.0
    %2268 = vmatmul.mubr.f32.gmra.mxu0 %v2196
    %v2269 = vpop.f32.mrf.mxu0
    %v2270 = vadd.f32 0.0, %v2269
    %v2271 = vpop.f32.mrf.mxu0
    %2272 = vdwg.mxu0
    %v2273 = vadd.f32 %v2065, %v2265
    %v2274 = vadd.f32 %v2070, %v2270
    %v2275 = vmul.f32 %v1655, %v63
    %v2276 = vmul.f32 %v1660, %v63
    %v2278 = vsel %vm170, %v2275, 0
    %v2281 = vsel %vm170, %v2276, 0
    %2283 = vmatprep.subr.mxu0 0.0
    %2284 = vmatpush1.xpose.msra.mxu0 0.0
    %2285 = vmatprep.subr.mxu0 0.0
    %2286 = vmatpush1.xpose.msra.mxu0 0.0
    %2287 = vmatprep.subr.mxu0 0.0
    %2288 = vmatpush1.xpose.msra.mxu0 0.0
    %2289 = vmatprep.subr.mxu0 0.0
    %2290 = vmatpush1.xpose.msra.mxu0 0.0
    %2291 = vmatprep.subr.mxu0 0.0
    %2292 = vmatpush1.xpose.msra.mxu0 0.0
    %2293 = vmatprep.subr.mxu0 0.0
    %2294 = vmatpush1.xpose.msra.mxu0 0.0
    %2295 = vmatprep.subr.mxu0 0.0
    %2296 = vmatpush1.xpose.msra.mxu0 0.0
    %2297 = vmatprep.subr.mxu0 0.0
    %2298 = vmatpush1.xpose.msra.mxu0 0.0
    %2299 = vmatprep.subr.mxu0 0.0
    %2300 = vmatpush1.xpose.msra.mxu0 0.0
    %2301 = vmatprep.subr.mxu0 0.0
    %2302 = vmatpush1.xpose.msra.mxu0 0.0
    %2303 = vmatprep.subr.mxu0 0.0
    %2304 = vmatpush1.xpose.msra.mxu0 0.0
    %2305 = vmatprep.subr.mxu0 0.0
    %2306 = vmatpush1.xpose.msra.mxu0 0.0
    %2307 = vmatprep.subr.mxu0 0.0
    %2308 = vmatpush1.xpose.msra.mxu0 0.0
    %2309 = vmatprep.subr.mxu0 0.0
    %2310 = vmatpush1.xpose.msra.mxu0 0.0
    %2311 = vmatprep.subr.mxu0 0.0
    %2312 = vmatpush1.xpose.msra.mxu0 %v1679
    %2313 = vmatprep.subr.mxu0 0.0
    %2314 = vmatpush1.xpose.msra.mxu0 %v1677
    %2315 = vmatprep.subr.mxu0 0.0
    %2316 = vmatpush2.xpose.msra.mxu0 0.0
    %2317 = vmatprep.subr.mxu0 0.0
    %2318 = vmatpush2.xpose.msra.mxu0 0.0
    %2319 = vmatprep.subr.mxu0 0.0
    %2320 = vmatpush2.xpose.msra.mxu0 0.0
    %2321 = vmatprep.subr.mxu0 0.0
    %2322 = vmatpush2.xpose.msra.mxu0 0.0
    %2323 = vmatprep.subr.mxu0 0.0
    %2324 = vmatpush2.xpose.msra.mxu0 0.0
    %2325 = vmatprep.subr.mxu0 0.0
    %2326 = vmatpush2.xpose.msra.mxu0 0.0
    %2327 = vmatprep.subr.mxu0 0.0
    %2328 = vmatpush2.xpose.msra.mxu0 0.0
    %2329 = vmatprep.subr.mxu0 0.0
    %2330 = vmatpush2.xpose.msra.mxu0 0.0
    %2331 = vmatprep.subr.mxu0 0.0
    %2332 = vmatpush2.xpose.msra.mxu0 0.0
    %2333 = vmatprep.subr.mxu0 0.0
    %2334 = vmatpush2.xpose.msra.mxu0 0.0
    %2335 = vmatprep.subr.mxu0 0.0
    %2336 = vmatpush2.xpose.msra.mxu0 0.0
    %2337 = vmatprep.subr.mxu0 0.0
    %2338 = vmatpush2.xpose.msra.mxu0 0.0
    %2339 = vmatprep.subr.mxu0 0.0
    %2340 = vmatpush2.xpose.msra.mxu0 0.0
    %2341 = vmatprep.subr.mxu0 0.0
    %2342 = vmatpush2.xpose.msra.mxu0 0.0
    %2343 = vmatprep.subr.mxu0 0.0
    %2344 = vmatpush2.xpose.msra.mxu0 0.0
    %2345 = vmatprep.subr.mxu0 0.0
    %2346 = vmatpush2.xpose.msra.mxu0 0.0
    %2347 = vmatprep.mubr.f32.mxu0 0.0
    %2348 = vmatmul.mubr.f32.gmra.mxu0 %v2278
    %v2349 = vpop.f32.mrf.mxu0
    %v2350 = vadd.f32 0.0, %v2349
    %v2351 = vpop.f32.mrf.mxu0
    %2352 = vmatprep.mubr.f32.mxu0 0.0
    %2353 = vmatmul.mubr.f32.gmra.mxu0 %v2281
    %v2354 = vpop.f32.mrf.mxu0
    %v2355 = vadd.f32 0.0, %v2354
    %v2356 = vpop.f32.mrf.mxu0
    %2357 = vdwg.mxu0
    %v2358 = vmul.f32 %v2350, 0.35355338
    %v2359 = vmul.f32 %v2355, 0.35355338
    %v2360 = vadd.f32 %v2358, %v242
    %v2361 = vadd.f32 %v2359, %v243
    %v2362 = vsel %vm450, %v2360, -inf
    %2363 = vmax.xlane.f32.xlu0 %v2362
    %v2364 = vpop.xlane.xlu0 %2363
    %v2365 = vsel %vm450, %v2361, -inf
    %2366 = vmax.xlane.f32.xlu0 %v2365
    %v2367 = vpop.xlane.xlu0 %2366
    %v2368 = vsub.f32 %v2360, %v2364
    %v2369 = vsub.f32 %v2361, %v2367
    %v2370 = vmul.f32 %v2368, 1.442695
    %v2371 = vpow.pop %v2370
    %v2372 = vmul.f32 %v2369, 1.442695
    %v2373 = vpow.pop %v2372
    %v2374 = vsel %vm450, %v2371, 0.0
    %2375 = vadd.xlane.f32.xlu0 %v2374
    %v2376 = vpop.xlane.xlu0 %2375
    %v2377 = vsel %vm450, %v2373, 0.0
    %2378 = vadd.xlane.f32.xlu0 %v2377
    %v2379 = vpop.xlane.xlu0 %2378
    %v2380 = vrcp.pop %v2376
    %v2381 = vrcp.pop %v2379
    %v2382 = vmul.f32 %v2371, %v2380
    %v2383 = vmul.f32 %v2373, %v2381
    %v2384 = vmul.f32 %v1655, %v1089
    %v2385 = vmul.f32 %v1660, %v1089
    %2388 = vrot.lane.b32.xlu0 %v2384, 64
    %v2389 = vpop.permute.xlu0 %2388
    %2390 = vrot.lane.b32.xlu0 %v2385, 64
    %v2391 = vpop.permute.xlu0 %2390
    %v2395 = vsel %vm450, %v2382, 0
    %v2398 = vsel %vm450, %v2383, 0
    %2400 = vmatprep.subr.mxu0 0.0
    %2401 = vmatpush1.msra.mxu0 0.0
    %2402 = vmatprep.subr.mxu0 0.0
    %2403 = vmatpush1.msra.mxu0 0.0
    %2404 = vmatprep.subr.mxu0 0.0
    %2405 = vmatpush1.msra.mxu0 0.0
    %2406 = vmatprep.subr.mxu0 0.0
    %2407 = vmatpush1.msra.mxu0 0.0
    %2408 = vmatprep.subr.mxu0 0.0
    %2409 = vmatpush1.msra.mxu0 0.0
    %2410 = vmatprep.subr.mxu0 0.0
    %2411 = vmatpush1.msra.mxu0 0.0
    %2412 = vmatprep.subr.mxu0 0.0
    %2413 = vmatpush1.msra.mxu0 0.0
    %2414 = vmatprep.subr.mxu0 0.0
    %2415 = vmatpush1.msra.mxu0 0.0
    %2416 = vmatprep.subr.mxu0 0.0
    %2417 = vmatpush1.msra.mxu0 0.0
    %2418 = vmatprep.subr.mxu0 0.0
    %2419 = vmatpush1.msra.mxu0 0.0
    %2420 = vmatprep.subr.mxu0 0.0
    %2421 = vmatpush1.msra.mxu0 0.0
    %2422 = vmatprep.subr.mxu0 0.0
    %2423 = vmatpush1.msra.mxu0 0.0
    %2424 = vmatprep.subr.mxu0 0.0
    %2425 = vmatpush1.msra.mxu0 0.0
    %2426 = vmatprep.subr.mxu0 0.0
    %2427 = vmatpush1.msra.mxu0 0.0
    %2428 = vmatprep.subr.mxu0 0.0
    %2429 = vmatpush1.msra.mxu0 %v2391
    %2430 = vmatprep.subr.mxu0 0.0
    %2431 = vmatpush1.msra.mxu0 %v2389
    %2432 = vmatprep.subr.mxu0 0.0
    %2433 = vmatpush2.msra.mxu0 0.0
    %2434 = vmatprep.subr.mxu0 0.0
    %2435 = vmatpush2.msra.mxu0 0.0
    %2436 = vmatprep.subr.mxu0 0.0
    %2437 = vmatpush2.msra.mxu0 0.0
    %2438 = vmatprep.subr.mxu0 0.0
    %2439 = vmatpush2.msra.mxu0 0.0
    %2440 = vmatprep.subr.mxu0 0.0
    %2441 = vmatpush2.msra.mxu0 0.0
    %2442 = vmatprep.subr.mxu0 0.0
    %2443 = vmatpush2.msra.mxu0 0.0
    %2444 = vmatprep.subr.mxu0 0.0
    %2445 = vmatpush2.msra.mxu0 0.0
    %2446 = vmatprep.subr.mxu0 0.0
    %2447 = vmatpush2.msra.mxu0 0.0
    %2448 = vmatprep.subr.mxu0 0.0
    %2449 = vmatpush2.msra.mxu0 0.0
    %2450 = vmatprep.subr.mxu0 0.0
    %2451 = vmatpush2.msra.mxu0 0.0
    %2452 = vmatprep.subr.mxu0 0.0
    %2453 = vmatpush2.msra.mxu0 0.0
    %2454 = vmatprep.subr.mxu0 0.0
    %2455 = vmatpush2.msra.mxu0 0.0
    %2456 = vmatprep.subr.mxu0 0.0
    %2457 = vmatpush2.msra.mxu0 0.0
    %2458 = vmatprep.subr.mxu0 0.0
    %2459 = vmatpush2.msra.mxu0 0.0
    %2460 = vmatprep.subr.mxu0 0.0
    %2461 = vmatpush2.msra.mxu0 0.0
    %2462 = vmatprep.subr.mxu0 0.0
    %2463 = vmatpush2.msra.mxu0 0.0
    %2464 = vmatprep.mubr.f32.mxu0 0.0
    %2465 = vmatmul.mubr.f32.gmra.mxu0 %v2395
    %v2466 = vpop.f32.mrf.mxu0
    %v2467 = vadd.f32 0.0, %v2466
    %v2468 = vpop.f32.mrf.mxu0
    %2469 = vmatprep.mubr.f32.mxu0 0.0
    %2470 = vmatmul.mubr.f32.gmra.mxu0 %v2398
    %v2471 = vpop.f32.mrf.mxu0
    %v2472 = vadd.f32 0.0, %v2471
    %v2473 = vpop.f32.mrf.mxu0
    %2474 = vdwg.mxu0
    %v2475 = vadd.f32 %v2273, %v2467
    %v2476 = vadd.f32 %v2274, %v2472
    %v2477 = vlaneseq
    %v2478 = vshrl.u32 %v2477, 7
    %v2479 = vsub.s32 0, %v2478
    %v2480 = vrot.slane %v1571, %v2479
    %2485 = vrot.lane.b32.xlu0 %v1554, 32
    %v2486 = vpop.permute.xlu0 %2485
    %2487 = vrot.lane.b32.xlu0 %v1556, 32
    %v2488 = vpop.permute.xlu0 %2487
    %2489 = vrot.lane.b32.xlu0 %v1558, 32
    %v2490 = vpop.permute.xlu0 %2489
    %2491 = vrot.lane.b32.xlu0 %v1560, 32
    %v2492 = vpop.permute.xlu0 %2491
    %v2498 = vsel %vm170, %v2475, 0
    %v2501 = vsel %vm170, %v2476, 0
    %2503 = vmatprep.subr.mxu0 0.0
    %2504 = vmatpush1.msra.mxu0 0.0
    %2505 = vmatprep.subr.mxu0 0.0
    %2506 = vmatpush1.msra.mxu0 0.0
    %2507 = vmatprep.subr.mxu0 0.0
    %2508 = vmatpush1.msra.mxu0 0.0
    %2509 = vmatprep.subr.mxu0 0.0
    %2510 = vmatpush1.msra.mxu0 0.0
    %2511 = vmatprep.subr.mxu0 0.0
    %2512 = vmatpush1.msra.mxu0 0.0
    %2513 = vmatprep.subr.mxu0 0.0
    %2514 = vmatpush1.msra.mxu0 0.0
    %2515 = vmatprep.subr.mxu0 0.0
    %2516 = vmatpush1.msra.mxu0 0.0
    %2517 = vmatprep.subr.mxu0 0.0
    %2518 = vmatpush1.msra.mxu0 0.0
    %2519 = vmatprep.subr.mxu0 0.0
    %2520 = vmatpush1.msra.mxu0 0.0
    %2521 = vmatprep.subr.mxu0 0.0
    %2522 = vmatpush1.msra.mxu0 0.0
    %2523 = vmatprep.subr.mxu0 0.0
    %2524 = vmatpush1.msra.mxu0 0.0
    %2525 = vmatprep.subr.mxu0 0.0
    %2526 = vmatpush1.msra.mxu0 0.0
    %2527 = vmatprep.subr.mxu0 0.0
    %2528 = vmatpush1.msra.mxu0 %v2492
    %2529 = vmatprep.subr.mxu0 0.0
    %2530 = vmatpush1.msra.mxu0 %v2490
    %2531 = vmatprep.subr.mxu0 0.0
    %2532 = vmatpush1.msra.mxu0 %v2488
    %2533 = vmatprep.subr.mxu0 0.0
    %2534 = vmatpush1.msra.mxu0 %v2486
    %2535 = vmatprep.subr.mxu0 0.0
    %2536 = vmatpush2.msra.mxu0 0.0
    %2537 = vmatprep.subr.mxu0 0.0
    %2538 = vmatpush2.msra.mxu0 0.0
    %2539 = vmatprep.subr.mxu0 0.0
    %2540 = vmatpush2.msra.mxu0 0.0
    %2541 = vmatprep.subr.mxu0 0.0
    %2542 = vmatpush2.msra.mxu0 0.0
    %2543 = vmatprep.subr.mxu0 0.0
    %2544 = vmatpush2.msra.mxu0 0.0
    %2545 = vmatprep.subr.mxu0 0.0
    %2546 = vmatpush2.msra.mxu0 0.0
    %2547 = vmatprep.subr.mxu0 0.0
    %2548 = vmatpush2.msra.mxu0 0.0
    %2549 = vmatprep.subr.mxu0 0.0
    %2550 = vmatpush2.msra.mxu0 0.0
    %2551 = vmatprep.subr.mxu0 0.0
    %2552 = vmatpush2.msra.mxu0 0.0
    %2553 = vmatprep.subr.mxu0 0.0
    %2554 = vmatpush2.msra.mxu0 0.0
    %2555 = vmatprep.subr.mxu0 0.0
    %2556 = vmatpush2.msra.mxu0 0.0
    %2557 = vmatprep.subr.mxu0 0.0
    %2558 = vmatpush2.msra.mxu0 0.0
    %2559 = vmatprep.subr.mxu0 0.0
    %2560 = vmatpush2.msra.mxu0 0.0
    %2561 = vmatprep.subr.mxu0 0.0
    %2562 = vmatpush2.msra.mxu0 0.0
    %2563 = vmatprep.subr.mxu0 0.0
    %2564 = vmatpush2.msra.mxu0 0.0
    %2565 = vmatprep.subr.mxu0 0.0
    %2566 = vmatpush2.msra.mxu0 0.0
    %2567 = vmatprep.mubr.f32.mxu0 0.0
    %2568 = vmatmul.mubr.f32.gmra.mxu0 %v2498
    %v2569 = vpop.f32.mrf.mxu0
    %v2570 = vadd.f32 %v2480, %v2569
    %v2571 = vpop.f32.mrf.mxu0
    %2572 = vmatprep.mubr.f32.mxu0 0.0
    %2573 = vmatmul.mubr.f32.gmra.mxu0 %v2501
    %v2574 = vpop.f32.mrf.mxu0
    %v2575 = vadd.f32 %v2480, %v2574
    %v2576 = vpop.f32.mrf.mxu0
    %2577 = vdwg.mxu0
    %v2578 = vadd.f32 %v2570, %v1552
    %v2579 = vadd.f32 %v2575, %v1553
    %v2580 = vsel %vm170, %v2578, 0.0
    %2581 = vadd.xlane.f32.xlu0 %v2580
    %v2582 = vpop.xlane.xlu0 %2581
    %v2583 = vsel %vm170, %v2579, 0.0
    %2584 = vadd.xlane.f32.xlu0 %v2583
    %v2585 = vpop.xlane.xlu0 %2584
    %v2586 = vmul.f32 %v2582, %v177
    %v2587 = vmul.f32 %v2585, %v177
    %v2588 = vsub.f32 %v2578, %v2586
    %v2589 = vsub.f32 %v2579, %v2587
    %v2590 = vmul.f32 %v2588, %v2588
    %v2591 = vmul.f32 %v2589, %v2589
    %v2592 = vsel %vm170, %v2590, 0.0
    %2593 = vadd.xlane.f32.xlu0 %v2592
    %v2594 = vpop.xlane.xlu0 %2593
    %v2595 = vsel %vm170, %v2591, 0.0
    %2596 = vadd.xlane.f32.xlu0 %v2595
    %v2597 = vpop.xlane.xlu0 %2596
    %v2598 = vmul.f32 %v2594, %v177
    %v2599 = vmul.f32 %v2597, %v177
    %v2600 = vadd.f32 %v2598, 1e-12
    %v2601 = vadd.f32 %v2599, 1e-12
    %v2602 = vrsqrt.pop %v2600
    %v2603 = vrsqrt.pop %v2601
    %v2604 = vmul.f32 %v2588, %v2602
    %v2605 = vmul.f32 %v2589, %v2603
    %v2606 = vlaneseq
    %v2607 = vshrl.u32 %v2606, 7
    %v2608 = vsub.s32 0, %v2607
    %v2609 = vrot.slane %v1572, %v2608
    %v2610 = vmul.f32 %v2604, %v2609
    %v2611 = vmul.f32 %v2605, %v2609
    %v2612 = vlaneseq
    %v2613 = vshrl.u32 %v2612, 7
    %v2614 = vsub.s32 0, %v2613
    %v2615 = vrot.slane %v1573, %v2614
    %v2616 = vadd.f32 %v2610, %v2615
    %v2617 = vadd.f32 %v2611, %v2615
    %v2618 = vlaneseq
    %v2619 = vshrl.u32 %v2618, 7
    %v2620 = vsub.s32 0, %v2619
    %v2621 = vrot.slane %v1574, %v2620
    %v2623 = vsel %vm170, %v2616, 0
    %v2626 = vsel %vm170, %v2617, 0
    %2628 = vmatprep.subr.mxu0 0.0
    %2629 = vmatpush1.msra.mxu0 0.0
    %2630 = vmatprep.subr.mxu0 0.0
    %2631 = vmatpush1.msra.mxu0 0.0
    %2632 = vmatprep.subr.mxu0 0.0
    %2633 = vmatpush1.msra.mxu0 0.0
    %2634 = vmatprep.subr.mxu0 0.0
    %2635 = vmatpush1.msra.mxu0 0.0
    %2636 = vmatprep.subr.mxu0 0.0
    %2637 = vmatpush1.msra.mxu0 0.0
    %2638 = vmatprep.subr.mxu0 0.0
    %2639 = vmatpush1.msra.mxu0 0.0
    %2640 = vmatprep.subr.mxu0 0.0
    %2641 = vmatpush1.msra.mxu0 0.0
    %2642 = vmatprep.subr.mxu0 0.0
    %2643 = vmatpush1.msra.mxu0 0.0
    %2644 = vmatprep.subr.mxu0 0.0
    %2645 = vmatpush1.msra.mxu0 0.0
    %2646 = vmatprep.subr.mxu0 0.0
    %2647 = vmatpush1.msra.mxu0 0.0
    %2648 = vmatprep.subr.mxu0 0.0
    %2649 = vmatpush1.msra.mxu0 0.0
    %2650 = vmatprep.subr.mxu0 0.0
    %2651 = vmatpush1.msra.mxu0 0.0
    %2652 = vmatprep.subr.mxu0 0.0
    %2653 = vmatpush1.msra.mxu0 %v1561
    %2654 = vmatprep.subr.mxu0 0.0
    %2655 = vmatpush1.msra.mxu0 %v1559
    %2656 = vmatprep.subr.mxu0 0.0
    %2657 = vmatpush1.msra.mxu0 %v1557
    %2658 = vmatprep.subr.mxu0 0.0
    %2659 = vmatpush1.msra.mxu0 %v1555
    %2660 = vmatprep.subr.mxu0 0.0
    %2661 = vmatpush2.msra.mxu0 0.0
    %2662 = vmatprep.subr.mxu0 0.0
    %2663 = vmatpush2.msra.mxu0 0.0
    %2664 = vmatprep.subr.mxu0 0.0
    %2665 = vmatpush2.msra.mxu0 0.0
    %2666 = vmatprep.subr.mxu0 0.0
    %2667 = vmatpush2.msra.mxu0 0.0
    %2668 = vmatprep.subr.mxu0 0.0
    %2669 = vmatpush2.msra.mxu0 0.0
    %2670 = vmatprep.subr.mxu0 0.0
    %2671 = vmatpush2.msra.mxu0 0.0
    %2672 = vmatprep.subr.mxu0 0.0
    %2673 = vmatpush2.msra.mxu0 0.0
    %2674 = vmatprep.subr.mxu0 0.0
    %2675 = vmatpush2.msra.mxu0 0.0
    %2676 = vmatprep.subr.mxu0 0.0
    %2677 = vmatpush2.msra.mxu0 0.0
    %2678 = vmatprep.subr.mxu0 0.0
    %2679 = vmatpush2.msra.mxu0 0.0
    %2680 = vmatprep.subr.mxu0 0.0
    %2681 = vmatpush2.msra.mxu0 0.0
    %2682 = vmatprep.subr.mxu0 0.0
    %2683 = vmatpush2.msra.mxu0 0.0
    %2684 = vmatprep.subr.mxu0 0.0
    %2685 = vmatpush2.msra.mxu0 0.0
    %2686 = vmatprep.subr.mxu0 0.0
    %2687 = vmatpush2.msra.mxu0 0.0
    %2688 = vmatprep.subr.mxu0 0.0
    %2689 = vmatpush2.msra.mxu0 0.0
    %2690 = vmatprep.subr.mxu0 0.0
    %2691 = vmatpush2.msra.mxu0 0.0
    %2692 = vmatprep.mubr.f32.mxu0 0.0
    %2693 = vmatmul.mubr.f32.gmra.mxu0 %v2623
    %v2694 = vpop.f32.mrf.mxu0
    %v2695 = vadd.f32 %v2621, %v2694
    %v2696 = vpop.f32.mrf.mxu0
    %2697 = vmatprep.mubr.f32.mxu0 0.0
    %2698 = vmatmul.mubr.f32.gmra.mxu0 %v2626
    %v2699 = vpop.f32.mrf.mxu0
    %v2700 = vadd.f32 %v2621, %v2699
    %v2701 = vpop.f32.mrf.mxu0
    %2702 = vdwg.mxu0
    %v2703 = vmul.f32 %v2695, 0.5
    %v2704 = vmul.f32 %v2700, 0.5
    %v2705 = vmul.f32 %v2695, 0.044715
    %v2706 = vmul.f32 %v2700, 0.044715
    %v2707 = vmul.f32 %v2705, %v2695
    %v2708 = vmul.f32 %v2706, %v2700
    %v2709 = vmul.f32 %v2707, %v2695
    %v2710 = vmul.f32 %v2708, %v2700
    %v2711 = vadd.f32 %v2695, %v2709
    %v2712 = vadd.f32 %v2700, %v2710
    %v2713 = vmul.f32 %v2711, 0.7978846
    %v2714 = vmul.f32 %v2712, 0.7978846
    %v2715 = vtanh.pop %v2713
    %v2716 = vtanh.pop %v2714
    %v2717 = vadd.f32 %v2715, 1.0
    %v2718 = vadd.f32 %v2716, 1.0
    %v2719 = vmul.f32 %v2703, %v2717
    %v2720 = vmul.f32 %v2704, %v2718
    %v2721 = vlaneseq
    %v2722 = vshrl.u32 %v2721, 7
    %v2723 = vsub.s32 0, %v2722
    %v2724 = vrot.slane %v1575, %v2723
    %v2726 = vsel %vm1432, %v2719, 0
    %v2729 = vsel %vm1432, %v2720, 0
    %2731 = vmatprep.subr.mxu0 0.0
    %2732 = vmatpush1.msra.mxu0 0.0
    %2733 = vmatprep.subr.mxu0 0.0
    %2734 = vmatpush1.msra.mxu0 0.0
    %2735 = vmatprep.subr.mxu0 0.0
    %2736 = vmatpush1.msra.mxu0 0.0
    %2737 = vmatprep.subr.mxu0 0.0
    %2738 = vmatpush1.msra.mxu0 0.0
    %2739 = vmatprep.subr.mxu0 0.0
    %2740 = vmatpush1.msra.mxu0 0.0
    %2741 = vmatprep.subr.mxu0 0.0
    %2742 = vmatpush1.msra.mxu0 0.0
    %2743 = vmatprep.subr.mxu0 0.0
    %2744 = vmatpush1.msra.mxu0 0.0
    %2745 = vmatprep.subr.mxu0 0.0
    %2746 = vmatpush1.msra.mxu0 0.0
    %2747 = vmatprep.subr.mxu0 0.0
    %2748 = vmatpush1.msra.mxu0 %v1569
    %2749 = vmatprep.subr.mxu0 0.0
    %2750 = vmatpush1.msra.mxu0 %v1568
    %2751 = vmatprep.subr.mxu0 0.0
    %2752 = vmatpush1.msra.mxu0 %v1567
    %2753 = vmatprep.subr.mxu0 0.0
    %2754 = vmatpush1.msra.mxu0 %v1566
    %2755 = vmatprep.subr.mxu0 0.0
    %2756 = vmatpush1.msra.mxu0 %v1565
    %2757 = vmatprep.subr.mxu0 0.0
    %2758 = vmatpush1.msra.mxu0 %v1564
    %2759 = vmatprep.subr.mxu0 0.0
    %2760 = vmatpush1.msra.mxu0 %v1563
    %2761 = vmatprep.subr.mxu0 0.0
    %2762 = vmatpush1.msra.mxu0 %v1562
    %2763 = vmatprep.subr.mxu0 0.0
    %2764 = vmatpush2.msra.mxu0 0.0
    %2765 = vmatprep.subr.mxu0 0.0
    %2766 = vmatpush2.msra.mxu0 0.0
    %2767 = vmatprep.subr.mxu0 0.0
    %2768 = vmatpush2.msra.mxu0 0.0
    %2769 = vmatprep.subr.mxu0 0.0
    %2770 = vmatpush2.msra.mxu0 0.0
    %2771 = vmatprep.subr.mxu0 0.0
    %2772 = vmatpush2.msra.mxu0 0.0
    %2773 = vmatprep.subr.mxu0 0.0
    %2774 = vmatpush2.msra.mxu0 0.0
    %2775 = vmatprep.subr.mxu0 0.0
    %2776 = vmatpush2.msra.mxu0 0.0
    %2777 = vmatprep.subr.mxu0 0.0
    %2778 = vmatpush2.msra.mxu0 0.0
    %2779 = vmatprep.subr.mxu0 0.0
    %2780 = vmatpush2.msra.mxu0 0.0
    %2781 = vmatprep.subr.mxu0 0.0
    %2782 = vmatpush2.msra.mxu0 0.0
    %2783 = vmatprep.subr.mxu0 0.0
    %2784 = vmatpush2.msra.mxu0 0.0
    %2785 = vmatprep.subr.mxu0 0.0
    %2786 = vmatpush2.msra.mxu0 0.0
    %2787 = vmatprep.subr.mxu0 0.0
    %2788 = vmatpush2.msra.mxu0 0.0
    %2789 = vmatprep.subr.mxu0 0.0
    %2790 = vmatpush2.msra.mxu0 0.0
    %2791 = vmatprep.subr.mxu0 0.0
    %2792 = vmatpush2.msra.mxu0 0.0
    %2793 = vmatprep.subr.mxu0 0.0
    %2794 = vmatpush2.msra.mxu0 0.0
    %2795 = vmatprep.mubr.f32.mxu0 0.0
    %2796 = vmatmul.mubr.f32.gmra.mxu0 %v2726
    %v2797 = vpop.f32.mrf.mxu0
    %v2798 = vadd.f32 %v2724, %v2797
    %v2799 = vpop.f32.mrf.mxu0
    %2800 = vmatprep.mubr.f32.mxu0 0.0
    %2801 = vmatmul.mubr.f32.gmra.mxu0 %v2729
    %v2802 = vpop.f32.mrf.mxu0
    %v2803 = vadd.f32 %v2724, %v2802
    %v2804 = vpop.f32.mrf.mxu0
    %2805 = vdwg.mxu0
    %v2806 = vadd.f32 %v2798, %v2616
    %v2807 = vadd.f32 %v2803, %v2617
    %v2808 = vsel %vm170, %v2806, 0.0
    %2809 = vadd.xlane.f32.xlu0 %v2808
    %v2810 = vpop.xlane.xlu0 %2809
    %v2811 = vsel %vm170, %v2807, 0.0
    %2812 = vadd.xlane.f32.xlu0 %v2811
    %v2813 = vpop.xlane.xlu0 %2812
    %v2814 = vmul.f32 %v2810, %v177
    %v2815 = vmul.f32 %v2813, %v177
    %v2816 = vsub.f32 %v2806, %v2814
    %v2817 = vsub.f32 %v2807, %v2815
    %v2818 = vmul.f32 %v2816, %v2816
    %v2819 = vmul.f32 %v2817, %v2817
    %v2820 = vsel %vm170, %v2818, 0.0
    %2821 = vadd.xlane.f32.xlu0 %v2820
    %v2822 = vpop.xlane.xlu0 %2821
    %v2823 = vsel %vm170, %v2819, 0.0
    %2824 = vadd.xlane.f32.xlu0 %v2823
    %v2825 = vpop.xlane.xlu0 %2824
    %v2826 = vmul.f32 %v2822, %v177
    %v2827 = vmul.f32 %v2825, %v177
    %v2828 = vadd.f32 %v2826, 1e-12
    %v2829 = vadd.f32 %v2827, 1e-12
    %v2830 = vrsqrt.pop %v2828
    %v2831 = vrsqrt.pop %v2829
    %v2832 = vmul.f32 %v2816, %v2830
    %v2833 = vmul.f32 %v2817, %v2831
    %v2834 = vlaneseq
    %v2835 = vshrl.u32 %v2834, 7
    %v2836 = vsub.s32 0, %v2835
    %v2837 = vrot.slane %v1576, %v2836
    %v2838 = vmul.f32 %v2832, %v2837
    %v2839 = vmul.f32 %v2833, %v2837
    %v2840 = vlaneseq
    %v2841 = vshrl.u32 %v2840, 7
    %v2842 = vsub.s32 0, %v2841
    %v2843 = vrot.slane %v1577, %v2842
    %v2844 = vadd.f32 %v2838, %v2843
    %v2845 = vadd.f32 %v2839, %v2843
    %v2846 = vlaneseq
    %v2847 = vshrl.u32 %v2846, 7
    %v2848 = vsub.s32 0, %v2847
    %v2849 = vrot.slane %v32, %v2848
    %v2851 = vsel %vm170, %v2844, 0
    %v2854 = vsel %vm170, %v2845, 0
    %2856 = vmatprep.subr.mxu0 0.0
    %2857 = vmatpush1.msra.mxu0 0.0
    %2858 = vmatprep.subr.mxu0 0.0
    %2859 = vmatpush1.msra.mxu0 0.0
    %2860 = vmatprep.subr.mxu0 0.0
    %2861 = vmatpush1.msra.mxu0 0.0
    %2862 = vmatprep.subr.mxu0 0.0
    %2863 = vmatpush1.msra.mxu0 0.0
    %2864 = vmatprep.subr.mxu0 0.0
    %2865 = vmatpush1.msra.mxu0 0.0
    %2866 = vmatprep.subr.mxu0 0.0
    %2867 = vmatpush1.msra.mxu0 0.0
    %2868 = vmatprep.subr.mxu0 0.0
    %2869 = vmatpush1.msra.mxu0 0.0
    %2870 = vmatprep.subr.mxu0 0.0
    %2871 = vmatpush1.msra.mxu0 0.0
    %2872 = vmatprep.subr.mxu0 0.0
    %2873 = vmatpush1.msra.mxu0 0.0
    %2874 = vmatprep.subr.mxu0 0.0
    %2875 = vmatpush1.msra.mxu0 0.0
    %2876 = vmatprep.subr.mxu0 0.0
    %2877 = vmatpush1.msra.mxu0 0.0
    %2878 = vmatprep.subr.mxu0 0.0
    %2879 = vmatpush1.msra.mxu0 0.0
    %2880 = vmatprep.subr.mxu0 0.0
    %2881 = vmatpush1.msra.mxu0 %v41
    %2882 = vmatprep.subr.mxu0 0.0
    %2883 = vmatpush1.msra.mxu0 %v39
    %2884 = vmatprep.subr.mxu0 0.0
    %2885 = vmatpush1.msra.mxu0 %v37
    %2886 = vmatprep.subr.mxu0 0.0
    %2887 = vmatpush1.msra.mxu0 %v35
    %2888 = vmatprep.subr.mxu0 0.0
    %2889 = vmatpush2.msra.mxu0 0.0
    %2890 = vmatprep.subr.mxu0 0.0
    %2891 = vmatpush2.msra.mxu0 0.0
    %2892 = vmatprep.subr.mxu0 0.0
    %2893 = vmatpush2.msra.mxu0 0.0
    %2894 = vmatprep.subr.mxu0 0.0
    %2895 = vmatpush2.msra.mxu0 0.0
    %2896 = vmatprep.subr.mxu0 0.0
    %2897 = vmatpush2.msra.mxu0 0.0
    %2898 = vmatprep.subr.mxu0 0.0
    %2899 = vmatpush2.msra.mxu0 0.0
    %2900 = vmatprep.subr.mxu0 0.0
    %2901 = vmatpush2.msra.mxu0 0.0
    %2902 = vmatprep.subr.mxu0 0.0
    %2903 = vmatpush2.msra.mxu0 0.0
    %2904 = vmatprep.subr.mxu0 0.0
    %2905 = vmatpush2.msra.mxu0 0.0
    %2906 = vmatprep.subr.mxu0 0.0
    %2907 = vmatpush2.msra.mxu0 0.0
    %2908 = vmatprep.subr.mxu0 0.0
    %2909 = vmatpush2.msra.mxu0 0.0
    %2910 = vmatprep.subr.mxu0 0.0
    %2911 = vmatpush2.msra.mxu0 0.0
    %2912 = vmatprep.subr.mxu0 0.0
    %2913 = vmatpush2.msra.mxu0 0.0
    %2914 = vmatprep.subr.mxu0 0.0
    %2915 = vmatpush2.msra.mxu0 0.0
    %2916 = vmatprep.subr.mxu0 0.0
    %2917 = vmatpush2.msra.mxu0 0.0
    %2918 = vmatprep.subr.mxu0 0.0
    %2919 = vmatpush2.msra.mxu0 0.0
    %2920 = vmatprep.mubr.f32.mxu0 0.0
    %2921 = vmatmul.mubr.f32.gmra.mxu0 %v2851
    %v2922 = vpop.f32.mrf.mxu0
    %v2923 = vadd.f32 %v2849, %v2922
    %v2924 = vpop.f32.mrf.mxu0
    %2925 = vmatprep.mubr.f32.mxu0 0.0
    %2926 = vmatmul.mubr.f32.gmra.mxu0 %v2854
    %v2927 = vpop.f32.mrf.mxu0
    %v2928 = vadd.f32 %v2849, %v2927
    %v2929 = vpop.f32.mrf.mxu0
    %2930 = vdwg.mxu0
    %v2931 = vmax.f32 %v2923, 0.0
    %v2932 = vmax.f32 %v2928, 0.0
    %v2933 = vlaneseq
    %v2934 = vshrl.u32 %v2933, 7
    %v2935 = vsub.s32 0, %v2934
    %v2936 = vrot.slane %v33, %v2935
    %v2938 = vsel %vm170, %v2931, 0
    %v2941 = vsel %vm170, %v2932, 0
    %2943 = vmatprep.subr.mxu0 0.0
    %2944 = vmatpush1.msra.mxu0 0.0
    %2945 = vmatprep.subr.mxu0 0.0
    %2946 = vmatpush1.msra.mxu0 0.0
    %2947 = vmatprep.subr.mxu0 0.0
    %2948 = vmatpush1.msra.mxu0 0.0
    %2949 = vmatprep.subr.mxu0 0.0
    %2950 = vmatpush1.msra.mxu0 0.0
    %2951 = vmatprep.subr.mxu0 0.0
    %2952 = vmatpush1.msra.mxu0 0.0
    %2953 = vmatprep.subr.mxu0 0.0
    %2954 = vmatpush1.msra.mxu0 0.0
    %2955 = vmatprep.subr.mxu0 0.0
    %2956 = vmatpush1.msra.mxu0 0.0
    %2957 = vmatprep.subr.mxu0 0.0
    %2958 = vmatpush1.msra.mxu0 0.0
    %2959 = vmatprep.subr.mxu0 0.0
    %2960 = vmatpush1.msra.mxu0 0.0
    %2961 = vmatprep.subr.mxu0 0.0
    %2962 = vmatpush1.msra.mxu0 0.0
    %2963 = vmatprep.subr.mxu0 0.0
    %2964 = vmatpush1.msra.mxu0 0.0
    %2965 = vmatprep.subr.mxu0 0.0
    %2966 = vmatpush1.msra.mxu0 0.0
    %2967 = vmatprep.subr.mxu0 0.0
    %2968 = vmatpush1.msra.mxu0 %v40
    %2969 = vmatprep.subr.mxu0 0.0
    %2970 = vmatpush1.msra.mxu0 %v38
    %2971 = vmatprep.subr.mxu0 0.0
    %2972 = vmatpush1.msra.mxu0 %v36
    %2973 = vmatprep.subr.mxu0 0.0
    %2974 = vmatpush1.msra.mxu0 %v34
    %2975 = vmatprep.subr.mxu0 0.0
    %2976 = vmatpush2.msra.mxu0 0.0
    %2977 = vmatprep.subr.mxu0 0.0
    %2978 = vmatpush2.msra.mxu0 0.0
    %2979 = vmatprep.subr.mxu0 0.0
    %2980 = vmatpush2.msra.mxu0 0.0
    %2981 = vmatprep.subr.mxu0 0.0
    %2982 = vmatpush2.msra.mxu0 0.0
    %2983 = vmatprep.subr.mxu0 0.0
    %2984 = vmatpush2.msra.mxu0 0.0
    %2985 = vmatprep.subr.mxu0 0.0
    %2986 = vmatpush2.msra.mxu0 0.0
    %2987 = vmatprep.subr.mxu0 0.0
    %2988 = vmatpush2.msra.mxu0 0.0
    %2989 = vmatprep.subr.mxu0 0.0
    %2990 = vmatpush2.msra.mxu0 0.0
    %2991 = vmatprep.subr.mxu0 0.0
    %2992 = vmatpush2.msra.mxu0 0.0
    %2993 = vmatprep.subr.mxu0 0.0
    %2994 = vmatpush2.msra.mxu0 0.0
    %2995 = vmatprep.subr.mxu0 0.0
    %2996 = vmatpush2.msra.mxu0 0.0
    %2997 = vmatprep.subr.mxu0 0.0
    %2998 = vmatpush2.msra.mxu0 0.0
    %2999 = vmatprep.subr.mxu0 0.0
    %3000 = vmatpush2.msra.mxu0 0.0
    %3001 = vmatprep.subr.mxu0 0.0
    %3002 = vmatpush2.msra.mxu0 0.0
    %3003 = vmatprep.subr.mxu0 0.0
    %3004 = vmatpush2.msra.mxu0 0.0
    %3005 = vmatprep.subr.mxu0 0.0
    %3006 = vmatpush2.msra.mxu0 0.0
    %3007 = vmatprep.mubr.f32.mxu0 0.0
    %3008 = vmatmul.mubr.f32.gmra.mxu0 %v2938
    %v3009 = vpop.f32.mrf.mxu0
    %v3010 = vadd.f32 %v2936, %v3009
    %v3011 = vpop.f32.mrf.mxu0
    %3012 = vmatprep.mubr.f32.mxu0 0.0
    %3013 = vmatmul.mubr.f32.gmra.mxu0 %v2941
    %v3014 = vpop.f32.mrf.mxu0
    %v3015 = vadd.f32 %v2936, %v3014
    %v3016 = vpop.f32.mrf.mxu0
    %3017 = vdwg.mxu0
    %3018 = vst [vmem:[#allocation2] sm:$0x1] %v3010
    %3019 = vst [vmem:[#allocation2 + $0x1] sm:$0x1] %v3015
    // Predicated region
    $region34: #{forward.1} parent=1 // pred_check
      _
    $region35: #{forward.1} parent=1 // pred_check_branch
      %3021 = sbr.rel (0) target = $region37
    $region36: #{forward.1} parent=1 // pred_region
      %s3023 = ssub.s32 32, 32
      %3024 = vsyncadd [#allocation3], %s3023
      %s3026 = sshll.u32 [#allocation2], 4
      %s3027 = int_to_ptr.vmem [resolvable:$true] %s3026
      %3029 = dma.vmem_to_hbm [thread:$0]  %s3027, 32, %s8, [#allocation3]
    $region37: #{forward.1} parent=1 // pred_fallthru
      _
    // Predicated region
    $region38: #{forward.1} parent=1 // pred_check
      _
    $region39: #{forward.1} parent=1 // pred_check_branch
      %3031 = sbr.rel (0) target = $region41
    $region40: #{forward.1} parent=1 // pred_region
      %3032 = dma.done [#allocation3], 32
    $region41: #{forward.1} parent=1 // pred_fallthru
      _
    %3033 = vsyncpa [#allocation3], 1

</llo_original>
